<compile_context>
chip_gen: v7x
topology: tpu7x:2x2x1
jax: 0.10.0
libtpu: 0.0.40
codegen_flags: <defaults>
</compile_context>

<pallas_src>
import jax
import jax.numpy as jnp
from jax.experimental import pallas as pl
from jax.experimental.pallas import tpu as pltpu

BOARD_LEN = 7
C_IN, C_OUT, KH, KW = 3, 128, 3, 3
PADDED = BOARD_LEN + 2                     # 9   (board padded by 1 on each side)
K_FLAT = C_IN * PADDED * PADDED            # 243 rows    = (c, py, px)
K_PAD = 256                                # contraction dim padded for MXU alignment
PIX = BOARD_LEN * BOARD_LEN                # 49
N_FLAT = C_OUT * PIX                       # 6272 cols   = (o, y, x)  -> NCHW view
BN_EPS = 1e-5
MATMUL_DTYPE = jnp.bfloat16                # MXU inputs; accumulate/epilogue in f32


def _round_up(v, m):
    return (v + m - 1) // m * m


# ---------------------------------------------------------------------------
# Phase 1: per-column sum / sum-of-squares of the (bias-free) conv output.
# Padded boards are all-zero input rows and the bias is not applied here, so they
# contribute exactly zero to both accumulators -> no masking needed.
# ---------------------------------------------------------------------------
def _stats_kernel(x_ref, w_ref, sum_ref, ssq_ref):
    @pl.when(pl.program_id(0) == 0)
    def _init():
        sum_ref[...] = jnp.zeros_like(sum_ref)
        ssq_ref[...] = jnp.zeros_like(ssq_ref)

    d = jnp.dot(x_ref[...], w_ref[...], preferred_element_type=jnp.float32)  # (NB, 6272) f32
    sum_ref[...] += jnp.sum(d, axis=0, keepdims=True)
    ssq_ref[...] += jnp.sum(d * d, axis=0, keepdims=True)


# ---------------------------------------------------------------------------
# Phase 2: recompute conv and apply fused BN(affine) + ReLU.
# ---------------------------------------------------------------------------
def _apply_kernel(x_ref, w_ref, scale_ref, shift_ref, o_ref):
    d = jnp.dot(x_ref[...], w_ref[...], preferred_element_type=jnp.float32)  # (NB, 6272) f32
    o_ref[...] = jnp.maximum(d * scale_ref[...] + shift_ref[...], 0.0).astype(o_ref.dtype)


def _build_conv_matrix(w, dtype):
    """W_big[(c,py,px), (o,y,x)] = w[o, c, py-y, px-x] inside the 3x3 window, else 0."""
    w = w.astype(jnp.float32)
    ky = jnp.arange(KH)[:, None, None]
    py = jnp.arange(PADDED)[None, :, None]
    yy = jnp.arange(BOARD_LEN)[None, None, :]
    sy = (py == yy + ky).astype(jnp.float32)                  # (3, 9, 7)
    kx = jnp.arange(KW)[:, None, None]
    px = jnp.arange(PADDED)[None, :, None]
    xx = jnp.arange(BOARD_LEN)[None, None, :]
    sx = (px == xx + kx).astype(jnp.float32)                  # (3, 9, 7)
    w6 = jnp.einsum("apy,bqx,ocab->cpqoyx", sy, sx, w)        # (3,9,9,128,7,7)
    wk = w6.reshape(K_FLAT, N_FLAT)
    return jnp.pad(wk, ((0, K_PAD - K_FLAT), (0, 0))).astype(dtype)   # (256, 6272)


def conv_block_forward(s, w, b, gamma, beta, *, block_boards=128):
    """ConvBlock forward (training-mode BatchNorm, as in a freshly constructed module).

    s     : reshapeable to (-1, 3, 7, 7) NCHW
    w     : (128, 3, 3, 3) conv weight (torch OIHW layout)
    b     : (128,) conv bias -- mathematically cancels under training-mode BN
    gamma : (128,) BN weight
    beta  : (128,) BN bias
    returns (N, 128, 7, 7) float32 (NCHW)
    """
    del b  # exactly cancelled by the batch-mean subtraction of training-mode BN
    x = s.reshape(-1, C_IN, BOARD_LEN, BOARD_LEN).astype(jnp.float32)
    n = x.shape[0]

    nb = min(block_boards, _round_up(n, 16))       # boards per tile (bf16 sublane friendly)
    num_tiles = pl.cdiv(n, nb)
    n_pad = num_tiles * nb

    # Cheap layout plumbing only: zero-pad board to 9x9, pad batch to a tile multiple,
    # flatten each padded NCHW board to a 243-vector (row order matches W_big rows) and
    # zero-pad the contraction dim to 256.
    xp = jnp.pad(x, ((0, n_pad - n), (0, 0), (1, 1), (1, 1)))          # (n_pad, 3, 9, 9)
    xflat = xp.reshape(n_pad, K_FLAT)
    xflat = jnp.pad(xflat, ((0, 0), (0, K_PAD - K_FLAT))).astype(MATMUL_DTYPE)  # (n_pad, 256)
    w_big = _build_conv_matrix(w, MATMUL_DTYPE)                        # (256, 6272) bf16

    vmem_cap = 32 * 1024 * 1024

    # ----- phase 1: batch statistics (accumulator outputs -> "arbitrary" grid) -----
    sums, ssqs = pl.pallas_call(
        _stats_kernel,
        out_shape=(jax.ShapeDtypeStruct((1, N_FLAT), jnp.float32),
                   jax.ShapeDtypeStruct((1, N_FLAT), jnp.float32)),
        grid=(num_tiles,),
        in_specs=[pl.BlockSpec((nb, K_PAD), lambda t: (t, 0)),
                  pl.BlockSpec((K_PAD, N_FLAT), lambda t: (0, 0))],
        out_specs=[pl.BlockSpec((1, N_FLAT), lambda t: (0, 0)),
                   pl.BlockSpec((1, N_FLAT), lambda t: (0, 0))],
        compiler_params=pltpu.CompilerParams(
            dimension_semantics=("arbitrary",),
            vmem_limit_bytes=vmem_cap),
    )(xflat, w_big)

    # ----- tiny glue (128-wide math): fold stats + gamma/beta into scale/shift -----
    m_valid = jnp.float32(n * PIX)
    sum_c = sums.reshape(C_OUT, PIX).sum(axis=1)               # per-output-channel
    ssq_c = ssqs.reshape(C_OUT, PIX).sum(axis=1)
    mean = sum_c / m_valid
    var = jnp.maximum(ssq_c / m_valid - mean * mean, 0.0)      # biased (PyTorch BN)
    inv = jax.lax.rsqrt(var + BN_EPS)
    scale = gamma.astype(jnp.float32) * inv
    shift = beta.astype(jnp.float32) - mean * scale
    scale_full = jnp.repeat(scale, PIX).reshape(1, N_FLAT)     # column order (o, y, x)
    shift_full = jnp.repeat(shift, PIX).reshape(1, N_FLAT)

    # ----- phase 2: recompute conv, apply BN + ReLU ("parallel" -> v7x megacore) -----
    out_flat = pl.pallas_call(
        _apply_kernel,
        out_shape=jax.ShapeDtypeStruct((n_pad, N_FLAT), jnp.float32),
        grid=(num_tiles,),
        in_specs=[pl.BlockSpec((nb, K_PAD), lambda t: (t, 0)),
                  pl.BlockSpec((K_PAD, N_FLAT), lambda t: (0, 0)),
                  pl.BlockSpec((1, N_FLAT), lambda t: (0, 0)),
                  pl.BlockSpec((1, N_FLAT), lambda t: (0, 0))],
        out_specs=pl.BlockSpec((nb, N_FLAT), lambda t: (t, 0)),
        compiler_params=pltpu.CompilerParams(
            dimension_semantics=("parallel",),
            vmem_limit_bytes=vmem_cap),
    )(xflat, w_big, scale_full, shift_full)

    # Columns are (o, y, x) -> NCHW is a pure view reshape; no output transpose.
    return out_flat[:n].reshape(n, C_OUT, BOARD_LEN, BOARD_LEN)


if __name__ == "__main__":
    key = jax.random.PRNGKey(0)
    kx, kw, kb, kg, kbeta = jax.random.split(key, 5)

    # Small deterministic inputs consistent with the module: batch=2, (3, 7, 7) boards.
    x = jax.random.normal(kx, (2, C_IN, BOARD_LEN, BOARD_LEN), dtype=jnp.float32)
    w = 0.1 * jax.random.normal(kw, (C_OUT, C_IN, KH, KW), dtype=jnp.float32)
    b = 0.05 * jax.random.normal(kb, (C_OUT,), dtype=jnp.float32)
    gamma = 1.0 + 0.1 * jax.random.normal(kg, (C_OUT,), dtype=jnp.float32)
    beta = 0.1 * jax.random.normal(kbeta, (C_OUT,), dtype=jnp.float32)

    out = conv_block_forward(x, w, b, gamma, beta)
    jax.block_until_ready(out)
    assert out.shape == (2, C_OUT, BOARD_LEN, BOARD_LEN)

    # Pure-JAX f32 reference: Conv2d + training-mode BatchNorm + ReLU.
    conv = jax.lax.conv_general_dilated(
        x, w, window_strides=(1, 1), padding=((1, 1), (1, 1)),
        dimension_numbers=("NCHW", "OIHW", "NCHW")) + b[None, :, None, None]
    mu = conv.mean(axis=(0, 2, 3), keepdims=True)
    var = conv.var(axis=(0, 2, 3), keepdims=True)
    ref = jnp.maximum(
        (conv - mu) * jax.lax.rsqrt(var + BN_EPS) * gamma[None, :, None, None]
        + beta[None, :, None, None], 0.0)
    # bf16 MXU inputs -> small drift vs f32 reference.
    assert jnp.allclose(out, ref, atol=5e-2, rtol=5e-2), \
        float(jnp.max(jnp.abs(out - ref)))

    print("KERNEL_OK")
</pallas_src>

<mosaic_0001>
module attributes {stable_mosaic.version = 11 : i64} {
  func.func @_stats_kernel(%arg0: i32, %arg1: memref<16x256xbf16, #tpu.memory_space<vmem>>, %arg2: memref<256x6272xbf16, #tpu.memory_space<vmem>>, %arg3: memref<1x6272xf32, #tpu.memory_space<vmem>>, %arg4: memref<1x6272xf32, #tpu.memory_space<vmem>>) attributes {dimension_semantics = [#tpu.dimension_semantics<arbitrary>], iteration_bounds = array<i64: 1>, scalar_prefetch = 0 : i64, scratch_operands = 0 : i64, tpu.core_type = #tpu.core_type<tc>, window_params = [{transform_indices = @transform_0, window_bounds = array<i64: 16, 256>}, {pipeline_mode = #tpu.pipeline_mode<synchronous>, transform_indices = @transform_1, window_bounds = array<i64: 256, 6272>}, {pipeline_mode = #tpu.pipeline_mode<synchronous>, transform_indices = @transform_2, window_bounds = array<i64: 1, 6272>}, {pipeline_mode = #tpu.pipeline_mode<synchronous>, transform_indices = @transform_3, window_bounds = array<i64: 1, 6272>}]} {
    %c0_i32 = arith.constant 0 : i32
    %0 = arith.cmpi eq, %arg0, %c0_i32 : i32
    %1 = arith.extui %0 : i1 to i32
    %c0_i32_0 = arith.constant 0 : i32
    %2 = arith.cmpi ne, %1, %c0_i32_0 : i32
    scf.if %2 {
      %cst_14 = arith.constant 0.000000e+00 : f32
      %17 = vector.broadcast %cst_14 : f32 to vector<1x6272xf32>
      %c0_15 = arith.constant 0 : index
      %c0_16 = arith.constant 0 : index
      %18 = vector.load %arg3[%c0_15, %c0_16] : memref<1x6272xf32, #tpu.memory_space<vmem>>, vector<1x6272xf32>
      tpu.vector_store %arg3[%c0_15, %c0_16], %17 {strides = array<i32>} : memref<1x6272xf32, #tpu.memory_space<vmem>>, vector<1x6272xf32>,
      %cst_17 = arith.constant 0.000000e+00 : f32
      %19 = vector.broadcast %cst_17 : f32 to vector<1x6272xf32>
      %c0_18 = arith.constant 0 : index
      %c0_19 = arith.constant 0 : index
      %20 = vector.load %arg4[%c0_18, %c0_19] : memref<1x6272xf32, #tpu.memory_space<vmem>>, vector<1x6272xf32>
      tpu.vector_store %arg4[%c0_18, %c0_19], %19 {strides = array<i32>} : memref<1x6272xf32, #tpu.memory_space<vmem>>, vector<1x6272xf32>,
    } else {
    }
    %c0 = arith.constant 0 : index
    %c0_1 = arith.constant 0 : index
    %3 = vector.load %arg1[%c0, %c0_1] : memref<16x256xbf16, #tpu.memory_space<vmem>>, vector<16x256xbf16>
    %c0_2 = arith.constant 0 : index
    %c0_3 = arith.constant 0 : index
    %4 = vector.load %arg2[%c0_2, %c0_3] : memref<256x6272xbf16, #tpu.memory_space<vmem>>, vector<256x6272xbf16>
    %cst = arith.constant dense<0.000000e+00> : vector<16x6272xf32>
    %5 = tpu.matmul %3, %4, %cst {dimension_numbers = #tpu.dot_dimension_numbers<[1], [0], [0], [1], [0, 0, 1, 1], [], []>} : vector<16x256xbf16>, vector<256x6272xbf16>, vector<16x6272xf32> -> vector<16x6272xf32>
    %c0_4 = arith.constant 0 : index
    %c0_5 = arith.constant 0 : index
    %6 = vector.load %arg3[%c0_4, %c0_5] : memref<1x6272xf32, #tpu.memory_space<vmem>>, vector<1x6272xf32>
    %cst_6 = arith.constant dense<0.000000e+00> : vector<6272xf32>
    %7 = vector.multi_reduction <add>, %5, %cst_6 [0] : vector<16x6272xf32> to vector<6272xf32>
    %8 = vector.shape_cast %7 : vector<6272xf32> to vector<1x6272xf32>
    %9 = arith.addf %6, %8 : vector<1x6272xf32>
    %c0_7 = arith.constant 0 : index
    %c0_8 = arith.constant 0 : index
    %10 = vector.load %arg3[%c0_7, %c0_8] : memref<1x6272xf32, #tpu.memory_space<vmem>>, vector<1x6272xf32>
    tpu.vector_store %arg3[%c0_7, %c0_8], %9 {strides = array<i32>} : memref<1x6272xf32, #tpu.memory_space<vmem>>, vector<1x6272xf32>,
    %c0_9 = arith.constant 0 : index
    %c0_10 = arith.constant 0 : index
    %11 = vector.load %arg4[%c0_9, %c0_10] : memref<1x6272xf32, #tpu.memory_space<vmem>>, vector<1x6272xf32>
    %12 = arith.mulf %5, %5 : vector<16x6272xf32>
    %cst_11 = arith.constant dense<0.000000e+00> : vector<6272xf32>
    %13 = vector.multi_reduction <add>, %12, %cst_11 [0] : vector<16x6272xf32> to vector<6272xf32>
    %14 = vector.shape_cast %13 : vector<6272xf32> to vector<1x6272xf32>
    %15 = arith.addf %11, %14 : vector<1x6272xf32>
    %c0_12 = arith.constant 0 : index
    %c0_13 = arith.constant 0 : index
    %16 = vector.load %arg4[%c0_12, %c0_13] : memref<1x6272xf32, #tpu.memory_space<vmem>>, vector<1x6272xf32>
    tpu.vector_store %arg4[%c0_12, %c0_13], %15 {strides = array<i32>} : memref<1x6272xf32, #tpu.memory_space<vmem>>, vector<1x6272xf32>,
    return
  }
  func.func @transform_0(%arg0: i32) -> (i32, i32) {
    %c0_i32 = arith.constant 0 : i32
    %c0_i32_0 = arith.constant 0 : i32
    return %arg0, %c0_i32 : i32, i32
  }
  func.func @transform_1(%arg0: i32) -> (i32, i32) {
    %c0_i32 = arith.constant 0 : i32
    %c0_i32_0 = arith.constant 0 : i32
    %c0_i32_1 = arith.constant 0 : i32
    return %c0_i32, %c0_i32_0 : i32, i32
  }
  func.func @transform_2(%arg0: i32) -> (i32, i32) {
    %c0_i32 = arith.constant 0 : i32
    %c0_i32_0 = arith.constant 0 : i32
    %c0_i32_1 = arith.constant 0 : i32
    return %c0_i32, %c0_i32_0 : i32, i32
  }
  func.func @transform_3(%arg0: i32) -> (i32, i32) {
    %c0_i32 = arith.constant 0 : i32
    %c0_i32_0 = arith.constant 0 : i32
    %c0_i32_1 = arith.constant 0 : i32
    return %c0_i32, %c0_i32_0 : i32, i32
  }
}

</mosaic_0001>

<llo_original>
// kernel: tpu_custom_call.1
$region0: #{tpu_custom_call.1}
  #allocation0 [shape = 'u32[]', space=smem, size = 0x4, offset = 0x4, fixed_abs, tag = 'smem constant byte address 0x4 - core index']
  #allocation1 [shape = 'u32[144,128]{1,0:T(1,128)}', space=vmem, size = 0x12000, scoped, tag = 'internal scratch']
  %s0 = inlined_call_operand.hbm [shape: bf16[16,256], index: 0, kind: input, shape index: {}]
  %s1 = inlined_call_operand.hbm [shape: bf16[256,6272], index: 1, kind: input, shape index: {}]
  %s2 = inlined_call_operand.hbm [shape: f32[1,6272], index: 2, kind: output, shape index: {0}]
  %s3 = inlined_call_operand.hbm [shape: f32[1,6272], index: 3, kind: output, shape index: {1}]
  %4 = xla_tuple %s2, %s3
  %s5 = sld [smem:[#allocation0]]
  $region38: #{tpu_custom_call.1} parent=0
    _
  %s7 = ssub.s32 1, %s5
  %s8 = scalar_select 0, %s7, %s5
  $region1: #{tpu_custom_call.1} parent=0
    #allocation2 [shape = 'u8[8192]{0}', space=vmem, size = 0x2000, scoped, tag = 'input window, operand 0, single buffered']
    #allocation3 [shape = 's32[1]{0}', space=sflag, size = 0x4, scoped, tag = 'scoped memory for tpu_custom_call.1']
    #allocation4 [shape = 's32[1]{0}', space=sflag, size = 0x4, scoped, tag = 'scoped memory for tpu_custom_call.1']
    #allocation5 [shape = 'u8[3211264]{0}', space=vmem, size = 0x310000, scoped, tag = 'input window, operand 1, single buffered']
    #allocation6 [shape = 's32[1]{0}', space=sflag, size = 0x4, scoped, tag = 'scoped memory for tpu_custom_call.1']
    #allocation7 [shape = 'u8[25088]{0}', space=vmem, size = 0x6400, scoped, tag = 'output window, operand 0, single buffered']
    #allocation8 [shape = 'u8[25088]{0}', space=vmem, size = 0x6400, scoped, tag = 'output window, operand 1, single buffered']
    #allocation9 [shape = 's32[1]{0}', space=sflag, size = 0x4, scoped, tag = 'scoped memory for tpu_custom_call.1']
    %9 = vsyncpa [#allocation3], 0
    %10 = vsyncpa [#allocation6], 0
    %11 = vsyncpa [#allocation4], 0
    %12 = vsyncpa [#allocation9], 0
    // Predicated region
    $region2: #{tpu_custom_call.1} parent=1 // pred_check
      _
    $region3: #{tpu_custom_call.1} parent=1 // pred_check_branch
      %14 = sbr.rel (0) target = $region5
    $region4: #{tpu_custom_call.1} parent=1 // pred_region
      %s16 = ssub.s32 256, 256
      %17 = vsyncadd [#allocation3], %s16
      %s18 = sshll.u32 [#allocation2], 4
      %s19 = int_to_ptr.vmem [resolvable:$true] %s18
      %24 = dma.hbm_to_vmem [thread:$0]  %s0, 256, %s19, [#allocation3], 128, 128, 8
    $region5: #{tpu_custom_call.1} parent=1 // pred_fallthru
      _
    // Predicated region
    $region6: #{tpu_custom_call.1} parent=1 // pred_check
      _
    $region7: #{tpu_custom_call.1} parent=1 // pred_check_branch
      %26 = sbr.rel (0) target = $region9
    $region8: #{tpu_custom_call.1} parent=1 // pred_region
      %s28 = ssub.s32 100352, 100352
      %29 = vsyncadd [#allocation6], %s28
      %s30 = sshll.u32 [#allocation5], 4
      %s31 = int_to_ptr.vmem [resolvable:$true] %s30
      %36 = dma.hbm_to_vmem [thread:$0]  %s1, 100352, %s31, [#allocation6], 3136, 3136, 196
    $region9: #{tpu_custom_call.1} parent=1 // pred_fallthru
      _
    // Predicated region
    $region10: #{tpu_custom_call.1} parent=1 // pred_check
      _
    $region11: #{tpu_custom_call.1} parent=1 // pred_check_branch
      %38 = sbr.rel (0) target = $region13
    $region12: #{tpu_custom_call.1} parent=1 // pred_region
      %39 = dma.done [#allocation3], 256
    $region13: #{tpu_custom_call.1} parent=1 // pred_fallthru
      _
    // Predicated region
    $region14: #{tpu_custom_call.1} parent=1 // pred_check
      _
    $region15: #{tpu_custom_call.1} parent=1 // pred_check_branch
      %41 = sbr.rel (0) target = $region17
    $region16: #{tpu_custom_call.1} parent=1 // pred_region
      %42 = dma.done [#allocation6], 100352
    $region17: #{tpu_custom_call.1} parent=1 // pred_fallthru
      _
    %p44 = scmp.eq.s32.totalorder 0, 0
    // Predicated region
    $region18: #{tpu_custom_call.1} parent=1 // pred_check
      %p45 = pneg %p44
    $region19: #{tpu_custom_call.1} parent=1 // pred_check_branch
      %47 = sbr.rel (%p45) target = $region21
    $region20: #{tpu_custom_call.1} parent=1 // pred_region
      %48 = vst [vmem:[#allocation7] sm:$0xff] 0.0
      %49 = vst [vmem:[#allocation7 + $0x8] sm:$0xff] 0.0
      %50 = vst [vmem:[#allocation7 + $0x10] sm:$0xff] 0.0
      %51 = vst [vmem:[#allocation7 + $0x18] sm:$0xff] 0.0
      %52 = vst [vmem:[#allocation7 + $0x20] sm:$0xff] 0.0
      %53 = vst [vmem:[#allocation7 + $0x28] sm:$0xff] 0.0
      %v54 = vlaneseq
      %vm55 = vcmp.ge.s32.totalorder %v54, 0
      %vm56 = vcmp.lt.s32.totalorder %v54, 128
      %vm57 = vmand %vm55, %vm56
      %58 = vst.msk [vmem:[#allocation7 + $0x30] sm:$0x1] %vm57, 0.0
      %59 = vst [vmem:[#allocation8] sm:$0xff] 0.0
      %60 = vst [vmem:[#allocation8 + $0x8] sm:$0xff] 0.0
      %61 = vst [vmem:[#allocation8 + $0x10] sm:$0xff] 0.0
      %62 = vst [vmem:[#allocation8 + $0x18] sm:$0xff] 0.0
      %63 = vst [vmem:[#allocation8 + $0x20] sm:$0xff] 0.0
      %64 = vst [vmem:[#allocation8 + $0x28] sm:$0xff] 0.0
      %65 = vst.msk [vmem:[#allocation8 + $0x30] sm:$0x1] %vm57, 0.0
    $region21: #{tpu_custom_call.1} parent=1 // pred_fallthru
      _
    %v66 = vld [vmem:[#allocation2] sm:$0xff]
    %v67 = vld [vmem:[#allocation2 + $0x8] sm:$0xff]
    %v68 = vld [vmem:[#allocation5] sm:$0xff]
    %v69 = vld [vmem:[#allocation5 + $0x8] sm:$0xff]
    %v70 = vld [vmem:[#allocation5 + $0x10] sm:$0xff]
    %v71 = vld [vmem:[#allocation5 + $0x18] sm:$0xff]
    %v72 = vld [vmem:[#allocation5 + $0x20] sm:$0xff]
    %v73 = vld [vmem:[#allocation5 + $0x28] sm:$0xff]
    %v74 = vld [vmem:[#allocation5 + $0x30] sm:$0xff]
    %v75 = vld [vmem:[#allocation5 + $0x38] sm:$0xff]
    %v76 = vld [vmem:[#allocation5 + $0x40] sm:$0xff]
    %v77 = vld [vmem:[#allocation5 + $0x48] sm:$0xff]
    %v78 = vld [vmem:[#allocation5 + $0x50] sm:$0xff]
    %v79 = vld [vmem:[#allocation5 + $0x58] sm:$0xff]
    %v80 = vld [vmem:[#allocation5 + $0x60] sm:$0xff]
    %v81 = vld [vmem:[#allocation5 + $0x68] sm:$0xff]
    %v82 = vld [vmem:[#allocation5 + $0x70] sm:$0xff]
    %v83 = vld [vmem:[#allocation5 + $0x78] sm:$0xff]
    %v84 = vld [vmem:[#allocation5 + $0x80] sm:$0xff]
    %v85 = vld [vmem:[#allocation5 + $0x88] sm:$0xff]
    %v86 = vld [vmem:[#allocation5 + $0x90] sm:$0xff]
    %v87 = vld [vmem:[#allocation5 + $0x98] sm:$0xff]
    %v88 = vld [vmem:[#allocation5 + $0xa0] sm:$0xff]
    %v89 = vld [vmem:[#allocation5 + $0xa8] sm:$0xff]
    %v90 = vld [vmem:[#allocation5 + $0xb0] sm:$0xff]
    %v91 = vld [vmem:[#allocation5 + $0xb8] sm:$0xff]
    %v92 = vld [vmem:[#allocation5 + $0xc0] sm:$0xf]
    %v93 = vld [vmem:[#allocation5 + $0xc4] sm:$0xff]
    %v94 = vld [vmem:[#allocation5 + $0xcc] sm:$0xff]
    %v95 = vld [vmem:[#allocation5 + $0xd4] sm:$0xff]
    %v96 = vld [vmem:[#allocation5 + $0xdc] sm:$0xff]
    %v97 = vld [vmem:[#allocation5 + $0xe4] sm:$0xff]
    %v98 = vld [vmem:[#allocation5 + $0xec] sm:$0xff]
    %v99 = vld [vmem:[#allocation5 + $0xf4] sm:$0xff]
    %v100 = vld [vmem:[#allocation5 + $0xfc] sm:$0xff]
    %v101 = vld [vmem:[#allocation5 + $0x104] sm:$0xff]
    %v102 = vld [vmem:[#allocation5 + $0x10c] sm:$0xff]
    %v103 = vld [vmem:[#allocation5 + $0x114] sm:$0xff]
    %v104 = vld [vmem:[#allocation5 + $0x11c] sm:$0xff]
    %v105 = vld [vmem:[#allocation5 + $0x124] sm:$0xff]
    %v106 = vld [vmem:[#allocation5 + $0x12c] sm:$0xff]
    %v107 = vld [vmem:[#allocation5 + $0x134] sm:$0xff]
    %v108 = vld [vmem:[#allocation5 + $0x13c] sm:$0xff]
    %v109 = vld [vmem:[#allocation5 + $0x144] sm:$0xff]
    %v110 = vld [vmem:[#allocation5 + $0x14c] sm:$0xff]
    %v111 = vld [vmem:[#allocation5 + $0x154] sm:$0xff]
    %v112 = vld [vmem:[#allocation5 + $0x15c] sm:$0xff]
    %v113 = vld [vmem:[#allocation5 + $0x164] sm:$0xff]
    %v114 = vld [vmem:[#allocation5 + $0x16c] sm:$0xff]
    %v115 = vld [vmem:[#allocation5 + $0x174] sm:$0xff]
    %v116 = vld [vmem:[#allocation5 + $0x17c] sm:$0xff]
    %v117 = vld [vmem:[#allocation5 + $0x184] sm:$0xf]
    %v118 = vld [vmem:[#allocation5 + $0x188] sm:$0xff]
    %v119 = vld [vmem:[#allocation5 + $0x190] sm:$0xff]
    %v120 = vld [vmem:[#allocation5 + $0x198] sm:$0xff]
    %v121 = vld [vmem:[#allocation5 + $0x1a0] sm:$0xff]
    %v122 = vld [vmem:[#allocation5 + $0x1a8] sm:$0xff]
    %v123 = vld [vmem:[#allocation5 + $0x1b0] sm:$0xff]
    %v124 = vld [vmem:[#allocation5 + $0x1b8] sm:$0xff]
    %v125 = vld [vmem:[#allocation5 + $0x1c0] sm:$0xff]
    %v126 = vld [vmem:[#allocation5 + $0x1c8] sm:$0xff]
    %v127 = vld [vmem:[#allocation5 + $0x1d0] sm:$0xff]
    %v128 = vld [vmem:[#allocation5 + $0x1d8] sm:$0xff]
    %v129 = vld [vmem:[#allocation5 + $0x1e0] sm:$0xff]
    %v130 = vld [vmem:[#allocation5 + $0x1e8] sm:$0xff]
    %v131 = vld [vmem:[#allocation5 + $0x1f0] sm:$0xff]
    %v132 = vld [vmem:[#allocation5 + $0x1f8] sm:$0xff]
    %v133 = vld [vmem:[#allocation5 + $0x200] sm:$0xff]
    %v134 = vld [vmem:[#allocation5 + $0x208] sm:$0xff]
    %v135 = vld [vmem:[#allocation5 + $0x210] sm:$0xff]
    %v136 = vld [vmem:[#allocation5 + $0x218] sm:$0xff]
    %v137 = vld [vmem:[#allocation5 + $0x220] sm:$0xff]
    %v138 = vld [vmem:[#allocation5 + $0x228] sm:$0xff]
    %v139 = vld [vmem:[#allocation5 + $0x230] sm:$0xff]
    %v140 = vld [vmem:[#allocation5 + $0x238] sm:$0xff]
    %v141 = vld [vmem:[#allocation5 + $0x240] sm:$0xff]
    %v142 = vld [vmem:[#allocation5 + $0x248] sm:$0xf]
    %v143 = vld [vmem:[#allocation5 + $0x24c] sm:$0xff]
    %v144 = vld [vmem:[#allocation5 + $0x254] sm:$0xff]
    %v145 = vld [vmem:[#allocation5 + $0x25c] sm:$0xff]
    %v146 = vld [vmem:[#allocation5 + $0x264] sm:$0xff]
    %v147 = vld [vmem:[#allocation5 + $0x26c] sm:$0xff]
    %v148 = vld [vmem:[#allocation5 + $0x274] sm:$0xff]
    %v149 = vld [vmem:[#allocation5 + $0x27c] sm:$0xff]
    %v150 = vld [vmem:[#allocation5 + $0x284] sm:$0xff]
    %v151 = vld [vmem:[#allocation5 + $0x28c] sm:$0xff]
    %v152 = vld [vmem:[#allocation5 + $0x294] sm:$0xff]
    %v153 = vld [vmem:[#allocation5 + $0x29c] sm:$0xff]
    %v154 = vld [vmem:[#allocation5 + $0x2a4] sm:$0xff]
    %v155 = vld [vmem:[#allocation5 + $0x2ac] sm:$0xff]
    %v156 = vld [vmem:[#allocation5 + $0x2b4] sm:$0xff]
    %v157 = vld [vmem:[#allocation5 + $0x2bc] sm:$0xff]
    %v158 = vld [vmem:[#allocation5 + $0x2c4] sm:$0xff]
    %v159 = vld [vmem:[#allocation5 + $0x2cc] sm:$0xff]
    %v160 = vld [vmem:[#allocation5 + $0x2d4] sm:$0xff]
    %v161 = vld [vmem:[#allocation5 + $0x2dc] sm:$0xff]
    %v162 = vld [vmem:[#allocation5 + $0x2e4] sm:$0xff]
    %v163 = vld [vmem:[#allocation5 + $0x2ec] sm:$0xff]
    %v164 = vld [vmem:[#allocation5 + $0x2f4] sm:$0xff]
    %v165 = vld [vmem:[#allocation5 + $0x2fc] sm:$0xff]
    %v166 = vld [vmem:[#allocation5 + $0x304] sm:$0xff]
    %v167 = vld [vmem:[#allocation5 + $0x30c] sm:$0xf]
    %v168 = vld [vmem:[#allocation5 + $0x310] sm:$0xff]
    %v169 = vld [vmem:[#allocation5 + $0x318] sm:$0xff]
    %v170 = vld [vmem:[#allocation5 + $0x320] sm:$0xff]
    %v171 = vld [vmem:[#allocation5 + $0x328] sm:$0xff]
    %v172 = vld [vmem:[#allocation5 + $0x330] sm:$0xff]
    %v173 = vld [vmem:[#allocation5 + $0x338] sm:$0xff]
    %v174 = vld [vmem:[#allocation5 + $0x340] sm:$0xff]
    %v175 = vld [vmem:[#allocation5 + $0x348] sm:$0xff]
    %v176 = vld [vmem:[#allocation5 + $0x350] sm:$0xff]
    %v177 = vld [vmem:[#allocation5 + $0x358] sm:$0xff]
    %v178 = vld [vmem:[#allocation5 + $0x360] sm:$0xff]
    %v179 = vld [vmem:[#allocation5 + $0x368] sm:$0xff]
    %v180 = vld [vmem:[#allocation5 + $0x370] sm:$0xff]
    %v181 = vld [vmem:[#allocation5 + $0x378] sm:$0xff]
    %v182 = vld [vmem:[#allocation5 + $0x380] sm:$0xff]
    %v183 = vld [vmem:[#allocation5 + $0x388] sm:$0xff]
    %v184 = vld [vmem:[#allocation5 + $0x390] sm:$0xff]
    %v185 = vld [vmem:[#allocation5 + $0x398] sm:$0xff]
    %v186 = vld [vmem:[#allocation5 + $0x3a0] sm:$0xff]
    %v187 = vld [vmem:[#allocation5 + $0x3a8] sm:$0xff]
    %v188 = vld [vmem:[#allocation5 + $0x3b0] sm:$0xff]
    %v189 = vld [vmem:[#allocation5 + $0x3b8] sm:$0xff]
    %v190 = vld [vmem:[#allocation5 + $0x3c0] sm:$0xff]
    %v191 = vld [vmem:[#allocation5 + $0x3c8] sm:$0xff]
    %v192 = vld [vmem:[#allocation5 + $0x3d0] sm:$0xf]
    %v193 = vld [vmem:[#allocation5 + $0x3d4] sm:$0xff]
    %v194 = vld [vmem:[#allocation5 + $0x3dc] sm:$0xff]
    %v195 = vld [vmem:[#allocation5 + $0x3e4] sm:$0xff]
    %v196 = vld [vmem:[#allocation5 + $0x3ec] sm:$0xff]
    %v197 = vld [vmem:[#allocation5 + $0x3f4] sm:$0xff]
    %v198 = vld [vmem:[#allocation5 + $0x3fc] sm:$0xff]
    %v199 = vld [vmem:[#allocation5 + $0x404] sm:$0xff]
    %v200 = vld [vmem:[#allocation5 + $0x40c] sm:$0xff]
    %v201 = vld [vmem:[#allocation5 + $0x414] sm:$0xff]
    %v202 = vld [vmem:[#allocation5 + $0x41c] sm:$0xff]
    %v203 = vld [vmem:[#allocation5 + $0x424] sm:$0xff]
    %v204 = vld [vmem:[#allocation5 + $0x42c] sm:$0xff]
    %v205 = vld [vmem:[#allocation5 + $0x434] sm:$0xff]
    %v206 = vld [vmem:[#allocation5 + $0x43c] sm:$0xff]
    %v207 = vld [vmem:[#allocation5 + $0x444] sm:$0xff]
    %v208 = vld [vmem:[#allocation5 + $0x44c] sm:$0xff]
    %v209 = vld [vmem:[#allocation5 + $0x454] sm:$0xff]
    %v210 = vld [vmem:[#allocation5 + $0x45c] sm:$0xff]
    %v211 = vld [vmem:[#allocation5 + $0x464] sm:$0xff]
    %v212 = vld [vmem:[#allocation5 + $0x46c] sm:$0xff]
    %v213 = vld [vmem:[#allocation5 + $0x474] sm:$0xff]
    %v214 = vld [vmem:[#allocation5 + $0x47c] sm:$0xff]
    %v215 = vld [vmem:[#allocation5 + $0x484] sm:$0xff]
    %v216 = vld [vmem:[#allocation5 + $0x48c] sm:$0xff]
    %v217 = vld [vmem:[#allocation5 + $0x494] sm:$0xf]
    %v218 = vld [vmem:[#allocation5 + $0x498] sm:$0xff]
    %v219 = vld [vmem:[#allocation5 + $0x4a0] sm:$0xff]
    %v220 = vld [vmem:[#allocation5 + $0x4a8] sm:$0xff]
    %v221 = vld [vmem:[#allocation5 + $0x4b0] sm:$0xff]
    %v222 = vld [vmem:[#allocation5 + $0x4b8] sm:$0xff]
    %v223 = vld [vmem:[#allocation5 + $0x4c0] sm:$0xff]
    %v224 = vld [vmem:[#allocation5 + $0x4c8] sm:$0xff]
    %v225 = vld [vmem:[#allocation5 + $0x4d0] sm:$0xff]
    %v226 = vld [vmem:[#allocation5 + $0x4d8] sm:$0xff]
    %v227 = vld [vmem:[#allocation5 + $0x4e0] sm:$0xff]
    %v228 = vld [vmem:[#allocation5 + $0x4e8] sm:$0xff]
    %v229 = vld [vmem:[#allocation5 + $0x4f0] sm:$0xff]
    %v230 = vld [vmem:[#allocation5 + $0x4f8] sm:$0xff]
    %v231 = vld [vmem:[#allocation5 + $0x500] sm:$0xff]
    %v232 = vld [vmem:[#allocation5 + $0x508] sm:$0xff]
    %v233 = vld [vmem:[#allocation5 + $0x510] sm:$0xff]
    %v234 = vld [vmem:[#allocation5 + $0x518] sm:$0xff]
    %v235 = vld [vmem:[#allocation5 + $0x520] sm:$0xff]
    %v236 = vld [vmem:[#allocation5 + $0x528] sm:$0xff]
    %v237 = vld [vmem:[#allocation5 + $0x530] sm:$0xff]
    %v238 = vld [vmem:[#allocation5 + $0x538] sm:$0xff]
    %v239 = vld [vmem:[#allocation5 + $0x540] sm:$0xff]
    %v240 = vld [vmem:[#allocation5 + $0x548] sm:$0xff]
    %v241 = vld [vmem:[#allocation5 + $0x550] sm:$0xff]
    %v242 = vld [vmem:[#allocation5 + $0x558] sm:$0xf]
    %v243 = vld [vmem:[#allocation5 + $0x55c] sm:$0xff]
    %v244 = vld [vmem:[#allocation5 + $0x564] sm:$0xff]
    %v245 = vld [vmem:[#allocation5 + $0x56c] sm:$0xff]
    %v246 = vld [vmem:[#allocation5 + $0x574] sm:$0xff]
    %v247 = vld [vmem:[#allocation5 + $0x57c] sm:$0xff]
    %v248 = vld [vmem:[#allocation5 + $0x584] sm:$0xff]
    %v249 = vld [vmem:[#allocation5 + $0x58c] sm:$0xff]
    %v250 = vld [vmem:[#allocation5 + $0x594] sm:$0xff]
    %v251 = vld [vmem:[#allocation5 + $0x59c] sm:$0xff]
    %v252 = vld [vmem:[#allocation5 + $0x5a4] sm:$0xff]
    %v253 = vld [vmem:[#allocation5 + $0x5ac] sm:$0xff]
    %v254 = vld [vmem:[#allocation5 + $0x5b4] sm:$0xff]
    %v255 = vld [vmem:[#allocation5 + $0x5bc] sm:$0xff]
    %v256 = vld [vmem:[#allocation5 + $0x5c4] sm:$0xff]
    %v257 = vld [vmem:[#allocation5 + $0x5cc] sm:$0xff]
    %v258 = vld [vmem:[#allocation5 + $0x5d4] sm:$0xff]
    %v259 = vld [vmem:[#allocation5 + $0x5dc] sm:$0xff]
    %v260 = vld [vmem:[#allocation5 + $0x5e4] sm:$0xff]
    %v261 = vld [vmem:[#allocation5 + $0x5ec] sm:$0xff]
    %v262 = vld [vmem:[#allocation5 + $0x5f4] sm:$0xff]
    %v263 = vld [vmem:[#allocation5 + $0x5fc] sm:$0xff]
    %v264 = vld [vmem:[#allocation5 + $0x604] sm:$0xff]
    %v265 = vld [vmem:[#allocation5 + $0x60c] sm:$0xff]
    %v266 = vld [vmem:[#allocation5 + $0x614] sm:$0xff]
    %v267 = vld [vmem:[#allocation5 + $0x61c] sm:$0xf]
    %v268 = vld [vmem:[#allocation5 + $0x620] sm:$0xff]
    %v269 = vld [vmem:[#allocation5 + $0x628] sm:$0xff]
    %v270 = vld [vmem:[#allocation5 + $0x630] sm:$0xff]
    %v271 = vld [vmem:[#allocation5 + $0x638] sm:$0xff]
    %v272 = vld [vmem:[#allocation5 + $0x640] sm:$0xff]
    %v273 = vld [vmem:[#allocation5 + $0x648] sm:$0xff]
    %v274 = vld [vmem:[#allocation5 + $0x650] sm:$0xff]
    %v275 = vld [vmem:[#allocation5 + $0x658] sm:$0xff]
    %v276 = vld [vmem:[#allocation5 + $0x660] sm:$0xff]
    %v277 = vld [vmem:[#allocation5 + $0x668] sm:$0xff]
    %v278 = vld [vmem:[#allocation5 + $0x670] sm:$0xff]
    %v279 = vld [vmem:[#allocation5 + $0x678] sm:$0xff]
    %v280 = vld [vmem:[#allocation5 + $0x680] sm:$0xff]
    %v281 = vld [vmem:[#allocation5 + $0x688] sm:$0xff]
    %v282 = vld [vmem:[#allocation5 + $0x690] sm:$0xff]
    %v283 = vld [vmem:[#allocation5 + $0x698] sm:$0xff]
    %v284 = vld [vmem:[#allocation5 + $0x6a0] sm:$0xff]
    %v285 = vld [vmem:[#allocation5 + $0x6a8] sm:$0xff]
    %v286 = vld [vmem:[#allocation5 + $0x6b0] sm:$0xff]
    %v287 = vld [vmem:[#allocation5 + $0x6b8] sm:$0xff]
    %v288 = vld [vmem:[#allocation5 + $0x6c0] sm:$0xff]
    %v289 = vld [vmem:[#allocation5 + $0x6c8] sm:$0xff]
    %v290 = vld [vmem:[#allocation5 + $0x6d0] sm:$0xff]
    %v291 = vld [vmem:[#allocation5 + $0x6d8] sm:$0xff]
    %v292 = vld [vmem:[#allocation5 + $0x6e0] sm:$0xf]
    %v293 = vld [vmem:[#allocation5 + $0x6e4] sm:$0xff]
    %v294 = vld [vmem:[#allocation5 + $0x6ec] sm:$0xff]
    %v295 = vld [vmem:[#allocation5 + $0x6f4] sm:$0xff]
    %v296 = vld [vmem:[#allocation5 + $0x6fc] sm:$0xff]
    %v297 = vld [vmem:[#allocation5 + $0x704] sm:$0xff]
    %v298 = vld [vmem:[#allocation5 + $0x70c] sm:$0xff]
    %v299 = vld [vmem:[#allocation5 + $0x714] sm:$0xff]
    %v300 = vld [vmem:[#allocation5 + $0x71c] sm:$0xff]
    %v301 = vld [vmem:[#allocation5 + $0x724] sm:$0xff]
    %v302 = vld [vmem:[#allocation5 + $0x72c] sm:$0xff]
    %v303 = vld [vmem:[#allocation5 + $0x734] sm:$0xff]
    %v304 = vld [vmem:[#allocation5 + $0x73c] sm:$0xff]
    %v305 = vld [vmem:[#allocation5 + $0x744] sm:$0xff]
    %v306 = vld [vmem:[#allocation5 + $0x74c] sm:$0xff]
    %v307 = vld [vmem:[#allocation5 + $0x754] sm:$0xff]
    %v308 = vld [vmem:[#allocation5 + $0x75c] sm:$0xff]
    %v309 = vld [vmem:[#allocation5 + $0x764] sm:$0xff]
    %v310 = vld [vmem:[#allocation5 + $0x76c] sm:$0xff]
    %v311 = vld [vmem:[#allocation5 + $0x774] sm:$0xff]
    %v312 = vld [vmem:[#allocation5 + $0x77c] sm:$0xff]
    %v313 = vld [vmem:[#allocation5 + $0x784] sm:$0xff]
    %v314 = vld [vmem:[#allocation5 + $0x78c] sm:$0xff]
    %v315 = vld [vmem:[#allocation5 + $0x794] sm:$0xff]
    %v316 = vld [vmem:[#allocation5 + $0x79c] sm:$0xff]
    %v317 = vld [vmem:[#allocation5 + $0x7a4] sm:$0xf]
    %v318 = vld [vmem:[#allocation5 + $0x7a8] sm:$0xff]
    %v319 = vld [vmem:[#allocation5 + $0x7b0] sm:$0xff]
    %v320 = vld [vmem:[#allocation5 + $0x7b8] sm:$0xff]
    %v321 = vld [vmem:[#allocation5 + $0x7c0] sm:$0xff]
    %v322 = vld [vmem:[#allocation5 + $0x7c8] sm:$0xff]
    %v323 = vld [vmem:[#allocation5 + $0x7d0] sm:$0xff]
    %v324 = vld [vmem:[#allocation5 + $0x7d8] sm:$0xff]
    %v325 = vld [vmem:[#allocation5 + $0x7e0] sm:$0xff]
    %v326 = vld [vmem:[#allocation5 + $0x7e8] sm:$0xff]
    %v327 = vld [vmem:[#allocation5 + $0x7f0] sm:$0xff]
    %v328 = vld [vmem:[#allocation5 + $0x7f8] sm:$0xff]
    %v329 = vld [vmem:[#allocation5 + $0x800] sm:$0xff]
    %v330 = vld [vmem:[#allocation5 + $0x808] sm:$0xff]
    %v331 = vld [vmem:[#allocation5 + $0x810] sm:$0xff]
    %v332 = vld [vmem:[#allocation5 + $0x818] sm:$0xff]
    %v333 = vld [vmem:[#allocation5 + $0x820] sm:$0xff]
    %v334 = vld [vmem:[#allocation5 + $0x828] sm:$0xff]
    %v335 = vld [vmem:[#allocation5 + $0x830] sm:$0xff]
    %v336 = vld [vmem:[#allocation5 + $0x838] sm:$0xff]
    %v337 = vld [vmem:[#allocation5 + $0x840] sm:$0xff]
    %v338 = vld [vmem:[#allocation5 + $0x848] sm:$0xff]
    %v339 = vld [vmem:[#allocation5 + $0x850] sm:$0xff]
    %v340 = vld [vmem:[#allocation5 + $0x858] sm:$0xff]
    %v341 = vld [vmem:[#allocation5 + $0x860] sm:$0xff]
    %v342 = vld [vmem:[#allocation5 + $0x868] sm:$0xf]
    %v343 = vld [vmem:[#allocation5 + $0x86c] sm:$0xff]
    %v344 = vld [vmem:[#allocation5 + $0x874] sm:$0xff]
    %v345 = vld [vmem:[#allocation5 + $0x87c] sm:$0xff]
    %v346 = vld [vmem:[#allocation5 + $0x884] sm:$0xff]
    %v347 = vld [vmem:[#allocation5 + $0x88c] sm:$0xff]
    %v348 = vld [vmem:[#allocation5 + $0x894] sm:$0xff]
    %v349 = vld [vmem:[#allocation5 + $0x89c] sm:$0xff]
    %v350 = vld [vmem:[#allocation5 + $0x8a4] sm:$0xff]
    %v351 = vld [vmem:[#allocation5 + $0x8ac] sm:$0xff]
    %v352 = vld [vmem:[#allocation5 + $0x8b4] sm:$0xff]
    %v353 = vld [vmem:[#allocation5 + $0x8bc] sm:$0xff]
    %v354 = vld [vmem:[#allocation5 + $0x8c4] sm:$0xff]
    %v355 = vld [vmem:[#allocation5 + $0x8cc] sm:$0xff]
    %v356 = vld [vmem:[#allocation5 + $0x8d4] sm:$0xff]
    %v357 = vld [vmem:[#allocation5 + $0x8dc] sm:$0xff]
    %v358 = vld [vmem:[#allocation5 + $0x8e4] sm:$0xff]
    %v359 = vld [vmem:[#allocation5 + $0x8ec] sm:$0xff]
    %v360 = vld [vmem:[#allocation5 + $0x8f4] sm:$0xff]
    %v361 = vld [vmem:[#allocation5 + $0x8fc] sm:$0xff]
    %v362 = vld [vmem:[#allocation5 + $0x904] sm:$0xff]
    %v363 = vld [vmem:[#allocation5 + $0x90c] sm:$0xff]
    %v364 = vld [vmem:[#allocation5 + $0x914] sm:$0xff]
    %v365 = vld [vmem:[#allocation5 + $0x91c] sm:$0xff]
    %v366 = vld [vmem:[#allocation5 + $0x924] sm:$0xff]
    %v367 = vld [vmem:[#allocation5 + $0x92c] sm:$0xf]
    %v368 = vld [vmem:[#allocation5 + $0x930] sm:$0xff]
    %v369 = vld [vmem:[#allocation5 + $0x938] sm:$0xff]
    %v370 = vld [vmem:[#allocation5 + $0x940] sm:$0xff]
    %v371 = vld [vmem:[#allocation5 + $0x948] sm:$0xff]
    %v372 = vld [vmem:[#allocation5 + $0x950] sm:$0xff]
    %v373 = vld [vmem:[#allocation5 + $0x958] sm:$0xff]
    %v374 = vld [vmem:[#allocation5 + $0x960] sm:$0xff]
    %v375 = vld [vmem:[#allocation5 + $0x968] sm:$0xff]
    %v376 = vld [vmem:[#allocation5 + $0x970] sm:$0xff]
    %v377 = vld [vmem:[#allocation5 + $0x978] sm:$0xff]
    %v378 = vld [vmem:[#allocation5 + $0x980] sm:$0xff]
    %v379 = vld [vmem:[#allocation5 + $0x988] sm:$0xff]
    %v380 = vld [vmem:[#allocation5 + $0x990] sm:$0xff]
    %v381 = vld [vmem:[#allocation5 + $0x998] sm:$0xff]
    %v382 = vld [vmem:[#allocation5 + $0x9a0] sm:$0xff]
    %v383 = vld [vmem:[#allocation5 + $0x9a8] sm:$0xff]
    %v384 = vld [vmem:[#allocation5 + $0x9b0] sm:$0xff]
    %v385 = vld [vmem:[#allocation5 + $0x9b8] sm:$0xff]
    %v386 = vld [vmem:[#allocation5 + $0x9c0] sm:$0xff]
    %v387 = vld [vmem:[#allocation5 + $0x9c8] sm:$0xff]
    %v388 = vld [vmem:[#allocation5 + $0x9d0] sm:$0xff]
    %v389 = vld [vmem:[#allocation5 + $0x9d8] sm:$0xff]
    %v390 = vld [vmem:[#allocation5 + $0x9e0] sm:$0xff]
    %v391 = vld [vmem:[#allocation5 + $0x9e8] sm:$0xff]
    %v392 = vld [vmem:[#allocation5 + $0x9f0] sm:$0xf]
    %v393 = vld [vmem:[#allocation5 + $0x9f4] sm:$0xff]
    %v394 = vld [vmem:[#allocation5 + $0x9fc] sm:$0xff]
    %v395 = vld [vmem:[#allocation5 + $0xa04] sm:$0xff]
    %v396 = vld [vmem:[#allocation5 + $0xa0c] sm:$0xff]
    %v397 = vld [vmem:[#allocation5 + $0xa14] sm:$0xff]
    %v398 = vld [vmem:[#allocation5 + $0xa1c] sm:$0xff]
    %v399 = vld [vmem:[#allocation5 + $0xa24] sm:$0xff]
    %v400 = vld [vmem:[#allocation5 + $0xa2c] sm:$0xff]
    %v401 = vld [vmem:[#allocation5 + $0xa34] sm:$0xff]
    %v402 = vld [vmem:[#allocation5 + $0xa3c] sm:$0xff]
    %v403 = vld [vmem:[#allocation5 + $0xa44] sm:$0xff]
    %v404 = vld [vmem:[#allocation5 + $0xa4c] sm:$0xff]
    %v405 = vld [vmem:[#allocation5 + $0xa54] sm:$0xff]
    %v406 = vld [vmem:[#allocation5 + $0xa5c] sm:$0xff]
    %v407 = vld [vmem:[#allocation5 + $0xa64] sm:$0xff]
    %v408 = vld [vmem:[#allocation5 + $0xa6c] sm:$0xff]
    %v409 = vld [vmem:[#allocation5 + $0xa74] sm:$0xff]
    %v410 = vld [vmem:[#allocation5 + $0xa7c] sm:$0xff]
    %v411 = vld [vmem:[#allocation5 + $0xa84] sm:$0xff]
    %v412 = vld [vmem:[#allocation5 + $0xa8c] sm:$0xff]
    %v413 = vld [vmem:[#allocation5 + $0xa94] sm:$0xff]
    %v414 = vld [vmem:[#allocation5 + $0xa9c] sm:$0xff]
    %v415 = vld [vmem:[#allocation5 + $0xaa4] sm:$0xff]
    %v416 = vld [vmem:[#allocation5 + $0xaac] sm:$0xff]
    %v417 = vld [vmem:[#allocation5 + $0xab4] sm:$0xf]
    %v418 = vld [vmem:[#allocation5 + $0xab8] sm:$0xff]
    %v419 = vld [vmem:[#allocation5 + $0xac0] sm:$0xff]
    %v420 = vld [vmem:[#allocation5 + $0xac8] sm:$0xff]
    %v421 = vld [vmem:[#allocation5 + $0xad0] sm:$0xff]
    %v422 = vld [vmem:[#allocation5 + $0xad8] sm:$0xff]
    %v423 = vld [vmem:[#allocation5 + $0xae0] sm:$0xff]
    %v424 = vld [vmem:[#allocation5 + $0xae8] sm:$0xff]
    %v425 = vld [vmem:[#allocation5 + $0xaf0] sm:$0xff]
    %v426 = vld [vmem:[#allocation5 + $0xaf8] sm:$0xff]
    %v427 = vld [vmem:[#allocation5 + $0xb00] sm:$0xff]
    %v428 = vld [vmem:[#allocation5 + $0xb08] sm:$0xff]
    %v429 = vld [vmem:[#allocation5 + $0xb10] sm:$0xff]
    %v430 = vld [vmem:[#allocation5 + $0xb18] sm:$0xff]
    %v431 = vld [vmem:[#allocation5 + $0xb20] sm:$0xff]
    %v432 = vld [vmem:[#allocation5 + $0xb28] sm:$0xff]
    %v433 = vld [vmem:[#allocation5 + $0xb30] sm:$0xff]
    %v434 = vld [vmem:[#allocation5 + $0xb38] sm:$0xff]
    %v435 = vld [vmem:[#allocation5 + $0xb40] sm:$0xff]
    %v436 = vld [vmem:[#allocation5 + $0xb48] sm:$0xff]
    %v437 = vld [vmem:[#allocation5 + $0xb50] sm:$0xff]
    %v438 = vld [vmem:[#allocation5 + $0xb58] sm:$0xff]
    %v439 = vld [vmem:[#allocation5 + $0xb60] sm:$0xff]
    %v440 = vld [vmem:[#allocation5 + $0xb68] sm:$0xff]
    %v441 = vld [vmem:[#allocation5 + $0xb70] sm:$0xff]
    %v442 = vld [vmem:[#allocation5 + $0xb78] sm:$0xf]
    %v443 = vld [vmem:[#allocation5 + $0xb7c] sm:$0xff]
    %v444 = vld [vmem:[#allocation5 + $0xb84] sm:$0xff]
    %v445 = vld [vmem:[#allocation5 + $0xb8c] sm:$0xff]
    %v446 = vld [vmem:[#allocation5 + $0xb94] sm:$0xff]
    %v447 = vld [vmem:[#allocation5 + $0xb9c] sm:$0xff]
    %v448 = vld [vmem:[#allocation5 + $0xba4] sm:$0xff]
    %v449 = vld [vmem:[#allocation5 + $0xbac] sm:$0xff]
    %v450 = vld [vmem:[#allocation5 + $0xbb4] sm:$0xff]
    %v451 = vld [vmem:[#allocation5 + $0xbbc] sm:$0xff]
    %v452 = vld [vmem:[#allocation5 + $0xbc4] sm:$0xff]
    %v453 = vld [vmem:[#allocation5 + $0xbcc] sm:$0xff]
    %v454 = vld [vmem:[#allocation5 + $0xbd4] sm:$0xff]
    %v455 = vld [vmem:[#allocation5 + $0xbdc] sm:$0xff]
    %v456 = vld [vmem:[#allocation5 + $0xbe4] sm:$0xff]
    %v457 = vld [vmem:[#allocation5 + $0xbec] sm:$0xff]
    %v458 = vld [vmem:[#allocation5 + $0xbf4] sm:$0xff]
    %v459 = vld [vmem:[#allocation5 + $0xbfc] sm:$0xff]
    %v460 = vld [vmem:[#allocation5 + $0xc04] sm:$0xff]
    %v461 = vld [vmem:[#allocation5 + $0xc0c] sm:$0xff]
    %v462 = vld [vmem:[#allocation5 + $0xc14] sm:$0xff]
    %v463 = vld [vmem:[#allocation5 + $0xc1c] sm:$0xff]
    %v464 = vld [vmem:[#allocation5 + $0xc24] sm:$0xff]
    %v465 = vld [vmem:[#allocation5 + $0xc2c] sm:$0xff]
    %v466 = vld [vmem:[#allocation5 + $0xc34] sm:$0xff]
    %v467 = vld [vmem:[#allocation5 + $0xc3c] sm:$0xf]
    %v468 = vld [vmem:[#allocation5 + $0xc40] sm:$0xff]
    %v469 = vld [vmem:[#allocation5 + $0xc48] sm:$0xff]
    %v470 = vld [vmem:[#allocation5 + $0xc50] sm:$0xff]
    %v471 = vld [vmem:[#allocation5 + $0xc58] sm:$0xff]
    %v472 = vld [vmem:[#allocation5 + $0xc60] sm:$0xff]
    %v473 = vld [vmem:[#allocation5 + $0xc68] sm:$0xff]
    %v474 = vld [vmem:[#allocation5 + $0xc70] sm:$0xff]
    %v475 = vld [vmem:[#allocation5 + $0xc78] sm:$0xff]
    %v476 = vld [vmem:[#allocation5 + $0xc80] sm:$0xff]
    %v477 = vld [vmem:[#allocation5 + $0xc88] sm:$0xff]
    %v478 = vld [vmem:[#allocation5 + $0xc90] sm:$0xff]
    %v479 = vld [vmem:[#allocation5 + $0xc98] sm:$0xff]
    %v480 = vld [vmem:[#allocation5 + $0xca0] sm:$0xff]
    %v481 = vld [vmem:[#allocation5 + $0xca8] sm:$0xff]
    %v482 = vld [vmem:[#allocation5 + $0xcb0] sm:$0xff]
    %v483 = vld [vmem:[#allocation5 + $0xcb8] sm:$0xff]
    %v484 = vld [vmem:[#allocation5 + $0xcc0] sm:$0xff]
    %v485 = vld [vmem:[#allocation5 + $0xcc8] sm:$0xff]
    %v486 = vld [vmem:[#allocation5 + $0xcd0] sm:$0xff]
    %v487 = vld [vmem:[#allocation5 + $0xcd8] sm:$0xff]
    %v488 = vld [vmem:[#allocation5 + $0xce0] sm:$0xff]
    %v489 = vld [vmem:[#allocation5 + $0xce8] sm:$0xff]
    %v490 = vld [vmem:[#allocation5 + $0xcf0] sm:$0xff]
    %v491 = vld [vmem:[#allocation5 + $0xcf8] sm:$0xff]
    %v492 = vld [vmem:[#allocation5 + $0xd00] sm:$0xf]
    %v493 = vld [vmem:[#allocation5 + $0xd04] sm:$0xff]
    %v494 = vld [vmem:[#allocation5 + $0xd0c] sm:$0xff]
    %v495 = vld [vmem:[#allocation5 + $0xd14] sm:$0xff]
    %v496 = vld [vmem:[#allocation5 + $0xd1c] sm:$0xff]
    %v497 = vld [vmem:[#allocation5 + $0xd24] sm:$0xff]
    %v498 = vld [vmem:[#allocation5 + $0xd2c] sm:$0xff]
    %v499 = vld [vmem:[#allocation5 + $0xd34] sm:$0xff]
    %v500 = vld [vmem:[#allocation5 + $0xd3c] sm:$0xff]
    %v501 = vld [vmem:[#allocation5 + $0xd44] sm:$0xff]
    %v502 = vld [vmem:[#allocation5 + $0xd4c] sm:$0xff]
    %v503 = vld [vmem:[#allocation5 + $0xd54] sm:$0xff]
    %v504 = vld [vmem:[#allocation5 + $0xd5c] sm:$0xff]
    %v505 = vld [vmem:[#allocation5 + $0xd64] sm:$0xff]
    %v506 = vld [vmem:[#allocation5 + $0xd6c] sm:$0xff]
    %v507 = vld [vmem:[#allocation5 + $0xd74] sm:$0xff]
    %v508 = vld [vmem:[#allocation5 + $0xd7c] sm:$0xff]
    %v509 = vld [vmem:[#allocation5 + $0xd84] sm:$0xff]
    %v510 = vld [vmem:[#allocation5 + $0xd8c] sm:$0xff]
    %v511 = vld [vmem:[#allocation5 + $0xd94] sm:$0xff]
    %v512 = vld [vmem:[#allocation5 + $0xd9c] sm:$0xff]
    %v513 = vld [vmem:[#allocation5 + $0xda4] sm:$0xff]
    %v514 = vld [vmem:[#allocation5 + $0xdac] sm:$0xff]
    %v515 = vld [vmem:[#allocation5 + $0xdb4] sm:$0xff]
    %v516 = vld [vmem:[#allocation5 + $0xdbc] sm:$0xff]
    %v517 = vld [vmem:[#allocation5 + $0xdc4] sm:$0xf]
    %v518 = vld [vmem:[#allocation5 + $0xdc8] sm:$0xff]
    %v519 = vld [vmem:[#allocation5 + $0xdd0] sm:$0xff]
    %v520 = vld [vmem:[#allocation5 + $0xdd8] sm:$0xff]
    %v521 = vld [vmem:[#allocation5 + $0xde0] sm:$0xff]
    %v522 = vld [vmem:[#allocation5 + $0xde8] sm:$0xff]
    %v523 = vld [vmem:[#allocation5 + $0xdf0] sm:$0xff]
    %v524 = vld [vmem:[#allocation5 + $0xdf8] sm:$0xff]
    %v525 = vld [vmem:[#allocation5 + $0xe00] sm:$0xff]
    %v526 = vld [vmem:[#allocation5 + $0xe08] sm:$0xff]
    %v527 = vld [vmem:[#allocation5 + $0xe10] sm:$0xff]
    %v528 = vld [vmem:[#allocation5 + $0xe18] sm:$0xff]
    %v529 = vld [vmem:[#allocation5 + $0xe20] sm:$0xff]
    %v530 = vld [vmem:[#allocation5 + $0xe28] sm:$0xff]
    %v531 = vld [vmem:[#allocation5 + $0xe30] sm:$0xff]
    %v532 = vld [vmem:[#allocation5 + $0xe38] sm:$0xff]
    %v533 = vld [vmem:[#allocation5 + $0xe40] sm:$0xff]
    %v534 = vld [vmem:[#allocation5 + $0xe48] sm:$0xff]
    %v535 = vld [vmem:[#allocation5 + $0xe50] sm:$0xff]
    %v536 = vld [vmem:[#allocation5 + $0xe58] sm:$0xff]
    %v537 = vld [vmem:[#allocation5 + $0xe60] sm:$0xff]
    %v538 = vld [vmem:[#allocation5 + $0xe68] sm:$0xff]
    %v539 = vld [vmem:[#allocation5 + $0xe70] sm:$0xff]
    %v540 = vld [vmem:[#allocation5 + $0xe78] sm:$0xff]
    %v541 = vld [vmem:[#allocation5 + $0xe80] sm:$0xff]
    %v542 = vld [vmem:[#allocation5 + $0xe88] sm:$0xf]
    %v543 = vld [vmem:[#allocation5 + $0xe8c] sm:$0xff]
    %v544 = vld [vmem:[#allocation5 + $0xe94] sm:$0xff]
    %v545 = vld [vmem:[#allocation5 + $0xe9c] sm:$0xff]
    %v546 = vld [vmem:[#allocation5 + $0xea4] sm:$0xff]
    %v547 = vld [vmem:[#allocation5 + $0xeac] sm:$0xff]
    %v548 = vld [vmem:[#allocation5 + $0xeb4] sm:$0xff]
    %v549 = vld [vmem:[#allocation5 + $0xebc] sm:$0xff]
    %v550 = vld [vmem:[#allocation5 + $0xec4] sm:$0xff]
    %v551 = vld [vmem:[#allocation5 + $0xecc] sm:$0xff]
    %v552 = vld [vmem:[#allocation5 + $0xed4] sm:$0xff]
    %v553 = vld [vmem:[#allocation5 + $0xedc] sm:$0xff]
    %v554 = vld [vmem:[#allocation5 + $0xee4] sm:$0xff]
    %v555 = vld [vmem:[#allocation5 + $0xeec] sm:$0xff]
    %v556 = vld [vmem:[#allocation5 + $0xef4] sm:$0xff]
    %v557 = vld [vmem:[#allocation5 + $0xefc] sm:$0xff]
    %v558 = vld [vmem:[#allocation5 + $0xf04] sm:$0xff]
    %v559 = vld [vmem:[#allocation5 + $0xf0c] sm:$0xff]
    %v560 = vld [vmem:[#allocation5 + $0xf14] sm:$0xff]
    %v561 = vld [vmem:[#allocation5 + $0xf1c] sm:$0xff]
    %v562 = vld [vmem:[#allocation5 + $0xf24] sm:$0xff]
    %v563 = vld [vmem:[#allocation5 + $0xf2c] sm:$0xff]
    %v564 = vld [vmem:[#allocation5 + $0xf34] sm:$0xff]
    %v565 = vld [vmem:[#allocation5 + $0xf3c] sm:$0xff]
    %v566 = vld [vmem:[#allocation5 + $0xf44] sm:$0xff]
    %v567 = vld [vmem:[#allocation5 + $0xf4c] sm:$0xf]
    %v568 = vld [vmem:[#allocation5 + $0xf50] sm:$0xff]
    %v569 = vld [vmem:[#allocation5 + $0xf58] sm:$0xff]
    %v570 = vld [vmem:[#allocation5 + $0xf60] sm:$0xff]
    %v571 = vld [vmem:[#allocation5 + $0xf68] sm:$0xff]
    %v572 = vld [vmem:[#allocation5 + $0xf70] sm:$0xff]
    %v573 = vld [vmem:[#allocation5 + $0xf78] sm:$0xff]
    %v574 = vld [vmem:[#allocation5 + $0xf80] sm:$0xff]
    %v575 = vld [vmem:[#allocation5 + $0xf88] sm:$0xff]
    %v576 = vld [vmem:[#allocation5 + $0xf90] sm:$0xff]
    %v577 = vld [vmem:[#allocation5 + $0xf98] sm:$0xff]
    %v578 = vld [vmem:[#allocation5 + $0xfa0] sm:$0xff]
    %v579 = vld [vmem:[#allocation5 + $0xfa8] sm:$0xff]
    %v580 = vld [vmem:[#allocation5 + $0xfb0] sm:$0xff]
    %v581 = vld [vmem:[#allocation5 + $0xfb8] sm:$0xff]
    %v582 = vld [vmem:[#allocation5 + $0xfc0] sm:$0xff]
    %v583 = vld [vmem:[#allocation5 + $0xfc8] sm:$0xff]
    %v584 = vld [vmem:[#allocation5 + $0xfd0] sm:$0xff]
    %v585 = vld [vmem:[#allocation5 + $0xfd8] sm:$0xff]
    %v586 = vld [vmem:[#allocation5 + $0xfe0] sm:$0xff]
    %v587 = vld [vmem:[#allocation5 + $0xfe8] sm:$0xff]
    %v588 = vld [vmem:[#allocation5 + $0xff0] sm:$0xff]
    %v589 = vld [vmem:[#allocation5 + $0xff8] sm:$0xff]
    %v590 = vld [vmem:[#allocation5 + $0x1000] sm:$0xff]
    %v591 = vld [vmem:[#allocation5 + $0x1008] sm:$0xff]
    %v592 = vld [vmem:[#allocation5 + $0x1010] sm:$0xf]
    %v593 = vld [vmem:[#allocation5 + $0x1014] sm:$0xff]
    %v594 = vld [vmem:[#allocation5 + $0x101c] sm:$0xff]
    %v595 = vld [vmem:[#allocation5 + $0x1024] sm:$0xff]
    %v596 = vld [vmem:[#allocation5 + $0x102c] sm:$0xff]
    %v597 = vld [vmem:[#allocation5 + $0x1034] sm:$0xff]
    %v598 = vld [vmem:[#allocation5 + $0x103c] sm:$0xff]
    %v599 = vld [vmem:[#allocation5 + $0x1044] sm:$0xff]
    %v600 = vld [vmem:[#allocation5 + $0x104c] sm:$0xff]
    %v601 = vld [vmem:[#allocation5 + $0x1054] sm:$0xff]
    %v602 = vld [vmem:[#allocation5 + $0x105c] sm:$0xff]
    %v603 = vld [vmem:[#allocation5 + $0x1064] sm:$0xff]
    %v604 = vld [vmem:[#allocation5 + $0x106c] sm:$0xff]
    %v605 = vld [vmem:[#allocation5 + $0x1074] sm:$0xff]
    %v606 = vld [vmem:[#allocation5 + $0x107c] sm:$0xff]
    %v607 = vld [vmem:[#allocation5 + $0x1084] sm:$0xff]
    %v608 = vld [vmem:[#allocation5 + $0x108c] sm:$0xff]
    %v609 = vld [vmem:[#allocation5 + $0x1094] sm:$0xff]
    %v610 = vld [vmem:[#allocation5 + $0x109c] sm:$0xff]
    %v611 = vld [vmem:[#allocation5 + $0x10a4] sm:$0xff]
    %v612 = vld [vmem:[#allocation5 + $0x10ac] sm:$0xff]
    %v613 = vld [vmem:[#allocation5 + $0x10b4] sm:$0xff]
    %v614 = vld [vmem:[#allocation5 + $0x10bc] sm:$0xff]
    %v615 = vld [vmem:[#allocation5 + $0x10c4] sm:$0xff]
    %v616 = vld [vmem:[#allocation5 + $0x10cc] sm:$0xff]
    %v617 = vld [vmem:[#allocation5 + $0x10d4] sm:$0xf]
    %v618 = vld [vmem:[#allocation5 + $0x10d8] sm:$0xff]
    %v619 = vld [vmem:[#allocation5 + $0x10e0] sm:$0xff]
    %v620 = vld [vmem:[#allocation5 + $0x10e8] sm:$0xff]
    %v621 = vld [vmem:[#allocation5 + $0x10f0] sm:$0xff]
    %v622 = vld [vmem:[#allocation5 + $0x10f8] sm:$0xff]
    %v623 = vld [vmem:[#allocation5 + $0x1100] sm:$0xff]
    %v624 = vld [vmem:[#allocation5 + $0x1108] sm:$0xff]
    %v625 = vld [vmem:[#allocation5 + $0x1110] sm:$0xff]
    %v626 = vld [vmem:[#allocation5 + $0x1118] sm:$0xff]
    %v627 = vld [vmem:[#allocation5 + $0x1120] sm:$0xff]
    %v628 = vld [vmem:[#allocation5 + $0x1128] sm:$0xff]
    %v629 = vld [vmem:[#allocation5 + $0x1130] sm:$0xff]
    %v630 = vld [vmem:[#allocation5 + $0x1138] sm:$0xff]
    %v631 = vld [vmem:[#allocation5 + $0x1140] sm:$0xff]
    %v632 = vld [vmem:[#allocation5 + $0x1148] sm:$0xff]
    %v633 = vld [vmem:[#allocation5 + $0x1150] sm:$0xff]
    %v634 = vld [vmem:[#allocation5 + $0x1158] sm:$0xff]
    %v635 = vld [vmem:[#allocation5 + $0x1160] sm:$0xff]
    %v636 = vld [vmem:[#allocation5 + $0x1168] sm:$0xff]
    %v637 = vld [vmem:[#allocation5 + $0x1170] sm:$0xff]
    %v638 = vld [vmem:[#allocation5 + $0x1178] sm:$0xff]
    %v639 = vld [vmem:[#allocation5 + $0x1180] sm:$0xff]
    %v640 = vld [vmem:[#allocation5 + $0x1188] sm:$0xff]
    %v641 = vld [vmem:[#allocation5 + $0x1190] sm:$0xff]
    %v642 = vld [vmem:[#allocation5 + $0x1198] sm:$0xf]
    %v643 = vld [vmem:[#allocation5 + $0x119c] sm:$0xff]
    %v644 = vld [vmem:[#allocation5 + $0x11a4] sm:$0xff]
    %v645 = vld [vmem:[#allocation5 + $0x11ac] sm:$0xff]
    %v646 = vld [vmem:[#allocation5 + $0x11b4] sm:$0xff]
    %v647 = vld [vmem:[#allocation5 + $0x11bc] sm:$0xff]
    %v648 = vld [vmem:[#allocation5 + $0x11c4] sm:$0xff]
    %v649 = vld [vmem:[#allocation5 + $0x11cc] sm:$0xff]
    %v650 = vld [vmem:[#allocation5 + $0x11d4] sm:$0xff]
    %v651 = vld [vmem:[#allocation5 + $0x11dc] sm:$0xff]
    %v652 = vld [vmem:[#allocation5 + $0x11e4] sm:$0xff]
    %v653 = vld [vmem:[#allocation5 + $0x11ec] sm:$0xff]
    %v654 = vld [vmem:[#allocation5 + $0x11f4] sm:$0xff]
    %v655 = vld [vmem:[#allocation5 + $0x11fc] sm:$0xff]
    %v656 = vld [vmem:[#allocation5 + $0x1204] sm:$0xff]
    %v657 = vld [vmem:[#allocation5 + $0x120c] sm:$0xff]
    %v658 = vld [vmem:[#allocation5 + $0x1214] sm:$0xff]
    %v659 = vld [vmem:[#allocation5 + $0x121c] sm:$0xff]
    %v660 = vld [vmem:[#allocation5 + $0x1224] sm:$0xff]
    %v661 = vld [vmem:[#allocation5 + $0x122c] sm:$0xff]
    %v662 = vld [vmem:[#allocation5 + $0x1234] sm:$0xff]
    %v663 = vld [vmem:[#allocation5 + $0x123c] sm:$0xff]
    %v664 = vld [vmem:[#allocation5 + $0x1244] sm:$0xff]
    %v665 = vld [vmem:[#allocation5 + $0x124c] sm:$0xff]
    %v666 = vld [vmem:[#allocation5 + $0x1254] sm:$0xff]
    %v667 = vld [vmem:[#allocation5 + $0x125c] sm:$0xf]
    %v668 = vld [vmem:[#allocation5 + $0x1260] sm:$0xff]
    %v669 = vld [vmem:[#allocation5 + $0x1268] sm:$0xff]
    %v670 = vld [vmem:[#allocation5 + $0x1270] sm:$0xff]
    %v671 = vld [vmem:[#allocation5 + $0x1278] sm:$0xff]
    %v672 = vld [vmem:[#allocation5 + $0x1280] sm:$0xff]
    %v673 = vld [vmem:[#allocation5 + $0x1288] sm:$0xff]
    %v674 = vld [vmem:[#allocation5 + $0x1290] sm:$0xff]
    %v675 = vld [vmem:[#allocation5 + $0x1298] sm:$0xff]
    %v676 = vld [vmem:[#allocation5 + $0x12a0] sm:$0xff]
    %v677 = vld [vmem:[#allocation5 + $0x12a8] sm:$0xff]
    %v678 = vld [vmem:[#allocation5 + $0x12b0] sm:$0xff]
    %v679 = vld [vmem:[#allocation5 + $0x12b8] sm:$0xff]
    %v680 = vld [vmem:[#allocation5 + $0x12c0] sm:$0xff]
    %v681 = vld [vmem:[#allocation5 + $0x12c8] sm:$0xff]
    %v682 = vld [vmem:[#allocation5 + $0x12d0] sm:$0xff]
    %v683 = vld [vmem:[#allocation5 + $0x12d8] sm:$0xff]
    %v684 = vld [vmem:[#allocation5 + $0x12e0] sm:$0xff]
    %v685 = vld [vmem:[#allocation5 + $0x12e8] sm:$0xff]
    %v686 = vld [vmem:[#allocation5 + $0x12f0] sm:$0xff]
    %v687 = vld [vmem:[#allocation5 + $0x12f8] sm:$0xff]
    %v688 = vld [vmem:[#allocation5 + $0x1300] sm:$0xff]
    %v689 = vld [vmem:[#allocation5 + $0x1308] sm:$0xff]
    %v690 = vld [vmem:[#allocation5 + $0x1310] sm:$0xff]
    %v691 = vld [vmem:[#allocation5 + $0x1318] sm:$0xff]
    %v692 = vld [vmem:[#allocation5 + $0x1320] sm:$0xf]
    %v693 = vld [vmem:[#allocation5 + $0x1324] sm:$0xff]
    %v694 = vld [vmem:[#allocation5 + $0x132c] sm:$0xff]
    %v695 = vld [vmem:[#allocation5 + $0x1334] sm:$0xff]
    %v696 = vld [vmem:[#allocation5 + $0x133c] sm:$0xff]
    %v697 = vld [vmem:[#allocation5 + $0x1344] sm:$0xff]
    %v698 = vld [vmem:[#allocation5 + $0x134c] sm:$0xff]
    %v699 = vld [vmem:[#allocation5 + $0x1354] sm:$0xff]
    %v700 = vld [vmem:[#allocation5 + $0x135c] sm:$0xff]
    %v701 = vld [vmem:[#allocation5 + $0x1364] sm:$0xff]
    %v702 = vld [vmem:[#allocation5 + $0x136c] sm:$0xff]
    %v703 = vld [vmem:[#allocation5 + $0x1374] sm:$0xff]
    %v704 = vld [vmem:[#allocation5 + $0x137c] sm:$0xff]
    %v705 = vld [vmem:[#allocation5 + $0x1384] sm:$0xff]
    %v706 = vld [vmem:[#allocation5 + $0x138c] sm:$0xff]
    %v707 = vld [vmem:[#allocation5 + $0x1394] sm:$0xff]
    %v708 = vld [vmem:[#allocation5 + $0x139c] sm:$0xff]
    %v709 = vld [vmem:[#allocation5 + $0x13a4] sm:$0xff]
    %v710 = vld [vmem:[#allocation5 + $0x13ac] sm:$0xff]
    %v711 = vld [vmem:[#allocation5 + $0x13b4] sm:$0xff]
    %v712 = vld [vmem:[#allocation5 + $0x13bc] sm:$0xff]
    %v713 = vld [vmem:[#allocation5 + $0x13c4] sm:$0xff]
    %v714 = vld [vmem:[#allocation5 + $0x13cc] sm:$0xff]
    %v715 = vld [vmem:[#allocation5 + $0x13d4] sm:$0xff]
    %v716 = vld [vmem:[#allocation5 + $0x13dc] sm:$0xff]
    %v717 = vld [vmem:[#allocation5 + $0x13e4] sm:$0xf]
    %v718 = vld [vmem:[#allocation5 + $0x13e8] sm:$0xff]
    %v719 = vld [vmem:[#allocation5 + $0x13f0] sm:$0xff]
    %v720 = vld [vmem:[#allocation5 + $0x13f8] sm:$0xff]
    %v721 = vld [vmem:[#allocation5 + $0x1400] sm:$0xff]
    %v722 = vld [vmem:[#allocation5 + $0x1408] sm:$0xff]
    %v723 = vld [vmem:[#allocation5 + $0x1410] sm:$0xff]
    %v724 = vld [vmem:[#allocation5 + $0x1418] sm:$0xff]
    %v725 = vld [vmem:[#allocation5 + $0x1420] sm:$0xff]
    %v726 = vld [vmem:[#allocation5 + $0x1428] sm:$0xff]
    %v727 = vld [vmem:[#allocation5 + $0x1430] sm:$0xff]
    %v728 = vld [vmem:[#allocation5 + $0x1438] sm:$0xff]
    %v729 = vld [vmem:[#allocation5 + $0x1440] sm:$0xff]
    %v730 = vld [vmem:[#allocation5 + $0x1448] sm:$0xff]
    %v731 = vld [vmem:[#allocation5 + $0x1450] sm:$0xff]
    %v732 = vld [vmem:[#allocation5 + $0x1458] sm:$0xff]
    %v733 = vld [vmem:[#allocation5 + $0x1460] sm:$0xff]
    %v734 = vld [vmem:[#allocation5 + $0x1468] sm:$0xff]
    %v735 = vld [vmem:[#allocation5 + $0x1470] sm:$0xff]
    %v736 = vld [vmem:[#allocation5 + $0x1478] sm:$0xff]
    %v737 = vld [vmem:[#allocation5 + $0x1480] sm:$0xff]
    %v738 = vld [vmem:[#allocation5 + $0x1488] sm:$0xff]
    %v739 = vld [vmem:[#allocation5 + $0x1490] sm:$0xff]
    %v740 = vld [vmem:[#allocation5 + $0x1498] sm:$0xff]
    %v741 = vld [vmem:[#allocation5 + $0x14a0] sm:$0xff]
    %v742 = vld [vmem:[#allocation5 + $0x14a8] sm:$0xf]
    %v743 = vld [vmem:[#allocation5 + $0x14ac] sm:$0xff]
    %v744 = vld [vmem:[#allocation5 + $0x14b4] sm:$0xff]
    %v745 = vld [vmem:[#allocation5 + $0x14bc] sm:$0xff]
    %v746 = vld [vmem:[#allocation5 + $0x14c4] sm:$0xff]
    %v747 = vld [vmem:[#allocation5 + $0x14cc] sm:$0xff]
    %v748 = vld [vmem:[#allocation5 + $0x14d4] sm:$0xff]
    %v749 = vld [vmem:[#allocation5 + $0x14dc] sm:$0xff]
    %v750 = vld [vmem:[#allocation5 + $0x14e4] sm:$0xff]
    %v751 = vld [vmem:[#allocation5 + $0x14ec] sm:$0xff]
    %v752 = vld [vmem:[#allocation5 + $0x14f4] sm:$0xff]
    %v753 = vld [vmem:[#allocation5 + $0x14fc] sm:$0xff]
    %v754 = vld [vmem:[#allocation5 + $0x1504] sm:$0xff]
    %v755 = vld [vmem:[#allocation5 + $0x150c] sm:$0xff]
    %v756 = vld [vmem:[#allocation5 + $0x1514] sm:$0xff]
    %v757 = vld [vmem:[#allocation5 + $0x151c] sm:$0xff]
    %v758 = vld [vmem:[#allocation5 + $0x1524] sm:$0xff]
    %v759 = vld [vmem:[#allocation5 + $0x152c] sm:$0xff]
    %v760 = vld [vmem:[#allocation5 + $0x1534] sm:$0xff]
    %v761 = vld [vmem:[#allocation5 + $0x153c] sm:$0xff]
    %v762 = vld [vmem:[#allocation5 + $0x1544] sm:$0xff]
    %v763 = vld [vmem:[#allocation5 + $0x154c] sm:$0xff]
    %v764 = vld [vmem:[#allocation5 + $0x1554] sm:$0xff]
    %v765 = vld [vmem:[#allocation5 + $0x155c] sm:$0xff]
    %v766 = vld [vmem:[#allocation5 + $0x1564] sm:$0xff]
    %v767 = vld [vmem:[#allocation5 + $0x156c] sm:$0xf]
    %v768 = vld [vmem:[#allocation5 + $0x1570] sm:$0xff]
    %v769 = vld [vmem:[#allocation5 + $0x1578] sm:$0xff]
    %v770 = vld [vmem:[#allocation5 + $0x1580] sm:$0xff]
    %v771 = vld [vmem:[#allocation5 + $0x1588] sm:$0xff]
    %v772 = vld [vmem:[#allocation5 + $0x1590] sm:$0xff]
    %v773 = vld [vmem:[#allocation5 + $0x1598] sm:$0xff]
    %v774 = vld [vmem:[#allocation5 + $0x15a0] sm:$0xff]
    %v775 = vld [vmem:[#allocation5 + $0x15a8] sm:$0xff]
    %v776 = vld [vmem:[#allocation5 + $0x15b0] sm:$0xff]
    %v777 = vld [vmem:[#allocation5 + $0x15b8] sm:$0xff]
    %v778 = vld [vmem:[#allocation5 + $0x15c0] sm:$0xff]
    %v779 = vld [vmem:[#allocation5 + $0x15c8] sm:$0xff]
    %v780 = vld [vmem:[#allocation5 + $0x15d0] sm:$0xff]
    %v781 = vld [vmem:[#allocation5 + $0x15d8] sm:$0xff]
    %v782 = vld [vmem:[#allocation5 + $0x15e0] sm:$0xff]
    %v783 = vld [vmem:[#allocation5 + $0x15e8] sm:$0xff]
    %v784 = vld [vmem:[#allocation5 + $0x15f0] sm:$0xff]
    %v785 = vld [vmem:[#allocation5 + $0x15f8] sm:$0xff]
    %v786 = vld [vmem:[#allocation5 + $0x1600] sm:$0xff]
    %v787 = vld [vmem:[#allocation5 + $0x1608] sm:$0xff]
    %v788 = vld [vmem:[#allocation5 + $0x1610] sm:$0xff]
    %v789 = vld [vmem:[#allocation5 + $0x1618] sm:$0xff]
    %v790 = vld [vmem:[#allocation5 + $0x1620] sm:$0xff]
    %v791 = vld [vmem:[#allocation5 + $0x1628] sm:$0xff]
    %v792 = vld [vmem:[#allocation5 + $0x1630] sm:$0xf]
    %v793 = vld [vmem:[#allocation5 + $0x1634] sm:$0xff]
    %v794 = vld [vmem:[#allocation5 + $0x163c] sm:$0xff]
    %v795 = vld [vmem:[#allocation5 + $0x1644] sm:$0xff]
    %v796 = vld [vmem:[#allocation5 + $0x164c] sm:$0xff]
    %v797 = vld [vmem:[#allocation5 + $0x1654] sm:$0xff]
    %v798 = vld [vmem:[#allocation5 + $0x165c] sm:$0xff]
    %v799 = vld [vmem:[#allocation5 + $0x1664] sm:$0xff]
    %v800 = vld [vmem:[#allocation5 + $0x166c] sm:$0xff]
    %v801 = vld [vmem:[#allocation5 + $0x1674] sm:$0xff]
    %v802 = vld [vmem:[#allocation5 + $0x167c] sm:$0xff]
    %v803 = vld [vmem:[#allocation5 + $0x1684] sm:$0xff]
    %v804 = vld [vmem:[#allocation5 + $0x168c] sm:$0xff]
    %v805 = vld [vmem:[#allocation5 + $0x1694] sm:$0xff]
    %v806 = vld [vmem:[#allocation5 + $0x169c] sm:$0xff]
    %v807 = vld [vmem:[#allocation5 + $0x16a4] sm:$0xff]
    %v808 = vld [vmem:[#allocation5 + $0x16ac] sm:$0xff]
    %v809 = vld [vmem:[#allocation5 + $0x16b4] sm:$0xff]
    %v810 = vld [vmem:[#allocation5 + $0x16bc] sm:$0xff]
    %v811 = vld [vmem:[#allocation5 + $0x16c4] sm:$0xff]
    %v812 = vld [vmem:[#allocation5 + $0x16cc] sm:$0xff]
    %v813 = vld [vmem:[#allocation5 + $0x16d4] sm:$0xff]
    %v814 = vld [vmem:[#allocation5 + $0x16dc] sm:$0xff]
    %v815 = vld [vmem:[#allocation5 + $0x16e4] sm:$0xff]
    %v816 = vld [vmem:[#allocation5 + $0x16ec] sm:$0xff]
    %v817 = vld [vmem:[#allocation5 + $0x16f4] sm:$0xf]
    %v818 = vld [vmem:[#allocation5 + $0x16f8] sm:$0xff]
    %v819 = vld [vmem:[#allocation5 + $0x1700] sm:$0xff]
    %v820 = vld [vmem:[#allocation5 + $0x1708] sm:$0xff]
    %v821 = vld [vmem:[#allocation5 + $0x1710] sm:$0xff]
    %v822 = vld [vmem:[#allocation5 + $0x1718] sm:$0xff]
    %v823 = vld [vmem:[#allocation5 + $0x1720] sm:$0xff]
    %v824 = vld [vmem:[#allocation5 + $0x1728] sm:$0xff]
    %v825 = vld [vmem:[#allocation5 + $0x1730] sm:$0xff]
    %v826 = vld [vmem:[#allocation5 + $0x1738] sm:$0xff]
    %v827 = vld [vmem:[#allocation5 + $0x1740] sm:$0xff]
    %v828 = vld [vmem:[#allocation5 + $0x1748] sm:$0xff]
    %v829 = vld [vmem:[#allocation5 + $0x1750] sm:$0xff]
    %v830 = vld [vmem:[#allocation5 + $0x1758] sm:$0xff]
    %v831 = vld [vmem:[#allocation5 + $0x1760] sm:$0xff]
    %v832 = vld [vmem:[#allocation5 + $0x1768] sm:$0xff]
    %v833 = vld [vmem:[#allocation5 + $0x1770] sm:$0xff]
    %v834 = vld [vmem:[#allocation5 + $0x1778] sm:$0xff]
    %v835 = vld [vmem:[#allocation5 + $0x1780] sm:$0xff]
    %v836 = vld [vmem:[#allocation5 + $0x1788] sm:$0xff]
    %v837 = vld [vmem:[#allocation5 + $0x1790] sm:$0xff]
    %v838 = vld [vmem:[#allocation5 + $0x1798] sm:$0xff]
    %v839 = vld [vmem:[#allocation5 + $0x17a0] sm:$0xff]
    %v840 = vld [vmem:[#allocation5 + $0x17a8] sm:$0xff]
    %v841 = vld [vmem:[#allocation5 + $0x17b0] sm:$0xff]
    %v842 = vld [vmem:[#allocation5 + $0x17b8] sm:$0xf]
    %v843 = vld [vmem:[#allocation5 + $0x17bc] sm:$0xff]
    %v844 = vld [vmem:[#allocation5 + $0x17c4] sm:$0xff]
    %v845 = vld [vmem:[#allocation5 + $0x17cc] sm:$0xff]
    %v846 = vld [vmem:[#allocation5 + $0x17d4] sm:$0xff]
    %v847 = vld [vmem:[#allocation5 + $0x17dc] sm:$0xff]
    %v848 = vld [vmem:[#allocation5 + $0x17e4] sm:$0xff]
    %v849 = vld [vmem:[#allocation5 + $0x17ec] sm:$0xff]
    %v850 = vld [vmem:[#allocation5 + $0x17f4] sm:$0xff]
    %v851 = vld [vmem:[#allocation5 + $0x17fc] sm:$0xff]
    %v852 = vld [vmem:[#allocation5 + $0x1804] sm:$0xff]
    %v853 = vld [vmem:[#allocation5 + $0x180c] sm:$0xff]
    %v854 = vld [vmem:[#allocation5 + $0x1814] sm:$0xff]
    %v855 = vld [vmem:[#allocation5 + $0x181c] sm:$0xff]
    %v856 = vld [vmem:[#allocation5 + $0x1824] sm:$0xff]
    %v857 = vld [vmem:[#allocation5 + $0x182c] sm:$0xff]
    %v858 = vld [vmem:[#allocation5 + $0x1834] sm:$0xff]
    %v859 = vld [vmem:[#allocation5 + $0x183c] sm:$0xff]
    %v860 = vld [vmem:[#allocation5 + $0x1844] sm:$0xff]
    %v861 = vld [vmem:[#allocation5 + $0x184c] sm:$0xff]
    %v862 = vld [vmem:[#allocation5 + $0x1854] sm:$0xff]
    %v863 = vld [vmem:[#allocation5 + $0x185c] sm:$0xff]
    %v864 = vld [vmem:[#allocation5 + $0x1864] sm:$0xff]
    %v865 = vld [vmem:[#allocation5 + $0x186c] sm:$0xff]
    %v866 = vld [vmem:[#allocation5 + $0x1874] sm:$0xff]
    %v867 = vld [vmem:[#allocation5 + $0x187c] sm:$0xf]
    %v870 = vunpack.c.l.b16 %v66
    %v871 = vunpack.c.h.b16 %v66
    %v872 = vunpack.c.l.b16 %v67
    %v873 = vunpack.c.h.b16 %v67
    %v874 = vpack.c.b16 %v872, %v870
    %v875 = vpack.c.b16 %v873, %v871
    %v1678 = vunpack.c.l.b16 %v68
    %v1679 = vunpack.c.h.b16 %v68
    %v1680 = vunpack.c.l.b16 %v69
    %v1681 = vunpack.c.h.b16 %v69
    %v1682 = vunpack.c.l.b16 %v70
    %v1683 = vunpack.c.h.b16 %v70
    %v1684 = vunpack.c.l.b16 %v71
    %v1685 = vunpack.c.h.b16 %v71
    %v1686 = vunpack.c.l.b16 %v72
    %v1687 = vunpack.c.h.b16 %v72
    %v1688 = vunpack.c.l.b16 %v73
    %v1689 = vunpack.c.h.b16 %v73
    %v1690 = vunpack.c.l.b16 %v74
    %v1691 = vunpack.c.h.b16 %v74
    %v1692 = vunpack.c.l.b16 %v75
    %v1693 = vunpack.c.h.b16 %v75
    %v1694 = vunpack.c.l.b16 %v76
    %v1695 = vunpack.c.h.b16 %v76
    %v1696 = vunpack.c.l.b16 %v77
    %v1697 = vunpack.c.h.b16 %v77
    %v1698 = vunpack.c.l.b16 %v78
    %v1699 = vunpack.c.h.b16 %v78
    %v1700 = vunpack.c.l.b16 %v79
    %v1701 = vunpack.c.h.b16 %v79
    %v1702 = vunpack.c.l.b16 %v80
    %v1703 = vunpack.c.h.b16 %v80
    %v1704 = vunpack.c.l.b16 %v81
    %v1705 = vunpack.c.h.b16 %v81
    %v1706 = vunpack.c.l.b16 %v82
    %v1707 = vunpack.c.h.b16 %v82
    %v1708 = vunpack.c.l.b16 %v83
    %v1709 = vunpack.c.h.b16 %v83
    %v1710 = vunpack.c.l.b16 %v84
    %v1711 = vunpack.c.h.b16 %v84
    %v1712 = vunpack.c.l.b16 %v85
    %v1713 = vunpack.c.h.b16 %v85
    %v1714 = vunpack.c.l.b16 %v86
    %v1715 = vunpack.c.h.b16 %v86
    %v1716 = vunpack.c.l.b16 %v87
    %v1717 = vunpack.c.h.b16 %v87
    %v1718 = vunpack.c.l.b16 %v88
    %v1719 = vunpack.c.h.b16 %v88
    %v1720 = vunpack.c.l.b16 %v89
    %v1721 = vunpack.c.h.b16 %v89
    %v1722 = vunpack.c.l.b16 %v90
    %v1723 = vunpack.c.h.b16 %v90
    %v1724 = vunpack.c.l.b16 %v91
    %v1725 = vunpack.c.h.b16 %v91
    %v1726 = vunpack.c.l.b16 %v92
    %v1727 = vunpack.c.l.b16 %v93
    %v1728 = vunpack.c.h.b16 %v93
    %v1729 = vunpack.c.l.b16 %v94
    %v1730 = vunpack.c.h.b16 %v94
    %v1731 = vunpack.c.l.b16 %v95
    %v1732 = vunpack.c.h.b16 %v95
    %v1733 = vunpack.c.l.b16 %v96
    %v1734 = vunpack.c.h.b16 %v96
    %v1735 = vunpack.c.l.b16 %v97
    %v1736 = vunpack.c.h.b16 %v97
    %v1737 = vunpack.c.l.b16 %v98
    %v1738 = vunpack.c.h.b16 %v98
    %v1739 = vunpack.c.l.b16 %v99
    %v1740 = vunpack.c.h.b16 %v99
    %v1741 = vunpack.c.l.b16 %v100
    %v1742 = vunpack.c.h.b16 %v100
    %v1743 = vunpack.c.l.b16 %v101
    %v1744 = vunpack.c.h.b16 %v101
    %v1745 = vunpack.c.l.b16 %v102
    %v1746 = vunpack.c.h.b16 %v102
    %v1747 = vunpack.c.l.b16 %v103
    %v1748 = vunpack.c.h.b16 %v103
    %v1749 = vunpack.c.l.b16 %v104
    %v1750 = vunpack.c.h.b16 %v104
    %v1751 = vunpack.c.l.b16 %v105
    %v1752 = vunpack.c.h.b16 %v105
    %v1753 = vunpack.c.l.b16 %v106
    %v1754 = vunpack.c.h.b16 %v106
    %v1755 = vunpack.c.l.b16 %v107
    %v1756 = vunpack.c.h.b16 %v107
    %v1757 = vunpack.c.l.b16 %v108
    %v1758 = vunpack.c.h.b16 %v108
    %v1759 = vunpack.c.l.b16 %v109
    %v1760 = vunpack.c.h.b16 %v109
    %v1761 = vunpack.c.l.b16 %v110
    %v1762 = vunpack.c.h.b16 %v110
    %v1763 = vunpack.c.l.b16 %v111
    %v1764 = vunpack.c.h.b16 %v111
    %v1765 = vunpack.c.l.b16 %v112
    %v1766 = vunpack.c.h.b16 %v112
    %v1767 = vunpack.c.l.b16 %v113
    %v1768 = vunpack.c.h.b16 %v113
    %v1769 = vunpack.c.l.b16 %v114
    %v1770 = vunpack.c.h.b16 %v114
    %v1771 = vunpack.c.l.b16 %v115
    %v1772 = vunpack.c.h.b16 %v115
    %v1773 = vunpack.c.l.b16 %v116
    %v1774 = vunpack.c.h.b16 %v116
    %v1775 = vunpack.c.l.b16 %v117
    %v1776 = vunpack.c.l.b16 %v118
    %v1777 = vunpack.c.h.b16 %v118
    %v1778 = vunpack.c.l.b16 %v119
    %v1779 = vunpack.c.h.b16 %v119
    %v1780 = vunpack.c.l.b16 %v120
    %v1781 = vunpack.c.h.b16 %v120
    %v1782 = vunpack.c.l.b16 %v121
    %v1783 = vunpack.c.h.b16 %v121
    %v1784 = vunpack.c.l.b16 %v122
    %v1785 = vunpack.c.h.b16 %v122
    %v1786 = vunpack.c.l.b16 %v123
    %v1787 = vunpack.c.h.b16 %v123
    %v1788 = vunpack.c.l.b16 %v124
    %v1789 = vunpack.c.h.b16 %v124
    %v1790 = vunpack.c.l.b16 %v125
    %v1791 = vunpack.c.h.b16 %v125
    %v1792 = vunpack.c.l.b16 %v126
    %v1793 = vunpack.c.h.b16 %v126
    %v1794 = vunpack.c.l.b16 %v127
    %v1795 = vunpack.c.h.b16 %v127
    %v1796 = vunpack.c.l.b16 %v128
    %v1797 = vunpack.c.h.b16 %v128
    %v1798 = vunpack.c.l.b16 %v129
    %v1799 = vunpack.c.h.b16 %v129
    %v1800 = vunpack.c.l.b16 %v130
    %v1801 = vunpack.c.h.b16 %v130
    %v1802 = vunpack.c.l.b16 %v131
    %v1803 = vunpack.c.h.b16 %v131
    %v1804 = vunpack.c.l.b16 %v132
    %v1805 = vunpack.c.h.b16 %v132
    %v1806 = vunpack.c.l.b16 %v133
    %v1807 = vunpack.c.h.b16 %v133
    %v1808 = vunpack.c.l.b16 %v134
    %v1809 = vunpack.c.h.b16 %v134
    %v1810 = vunpack.c.l.b16 %v135
    %v1811 = vunpack.c.h.b16 %v135
    %v1812 = vunpack.c.l.b16 %v136
    %v1813 = vunpack.c.h.b16 %v136
    %v1814 = vunpack.c.l.b16 %v137
    %v1815 = vunpack.c.h.b16 %v137
    %v1816 = vunpack.c.l.b16 %v138
    %v1817 = vunpack.c.h.b16 %v138
    %v1818 = vunpack.c.l.b16 %v139
    %v1819 = vunpack.c.h.b16 %v139
    %v1820 = vunpack.c.l.b16 %v140
    %v1821 = vunpack.c.h.b16 %v140
    %v1822 = vunpack.c.l.b16 %v141
    %v1823 = vunpack.c.h.b16 %v141
    %v1824 = vunpack.c.l.b16 %v142
    %v1825 = vunpack.c.l.b16 %v143
    %v1826 = vunpack.c.h.b16 %v143
    %v1827 = vunpack.c.l.b16 %v144
    %v1828 = vunpack.c.h.b16 %v144
    %v1829 = vunpack.c.l.b16 %v145
    %v1830 = vunpack.c.h.b16 %v145
    %v1831 = vunpack.c.l.b16 %v146
    %v1832 = vunpack.c.h.b16 %v146
    %v1833 = vunpack.c.l.b16 %v147
    %v1834 = vunpack.c.h.b16 %v147
    %v1835 = vunpack.c.l.b16 %v148
    %v1836 = vunpack.c.h.b16 %v148
    %v1837 = vunpack.c.l.b16 %v149
    %v1838 = vunpack.c.h.b16 %v149
    %v1839 = vunpack.c.l.b16 %v150
    %v1840 = vunpack.c.h.b16 %v150
    %v1841 = vunpack.c.l.b16 %v151
    %v1842 = vunpack.c.h.b16 %v151
    %v1843 = vunpack.c.l.b16 %v152
    %v1844 = vunpack.c.h.b16 %v152
    %v1845 = vunpack.c.l.b16 %v153
    %v1846 = vunpack.c.h.b16 %v153
    %v1847 = vunpack.c.l.b16 %v154
    %v1848 = vunpack.c.h.b16 %v154
    %v1849 = vunpack.c.l.b16 %v155
    %v1850 = vunpack.c.h.b16 %v155
    %v1851 = vunpack.c.l.b16 %v156
    %v1852 = vunpack.c.h.b16 %v156
    %v1853 = vunpack.c.l.b16 %v157
    %v1854 = vunpack.c.h.b16 %v157
    %v1855 = vunpack.c.l.b16 %v158
    %v1856 = vunpack.c.h.b16 %v158
    %v1857 = vunpack.c.l.b16 %v159
    %v1858 = vunpack.c.h.b16 %v159
    %v1859 = vunpack.c.l.b16 %v160
    %v1860 = vunpack.c.h.b16 %v160
    %v1861 = vunpack.c.l.b16 %v161
    %v1862 = vunpack.c.h.b16 %v161
    %v1863 = vunpack.c.l.b16 %v162
    %v1864 = vunpack.c.h.b16 %v162
    %v1865 = vunpack.c.l.b16 %v163
    %v1866 = vunpack.c.h.b16 %v163
    %v1867 = vunpack.c.l.b16 %v164
    %v1868 = vunpack.c.h.b16 %v164
    %v1869 = vunpack.c.l.b16 %v165
    %v1870 = vunpack.c.h.b16 %v165
    %v1871 = vunpack.c.l.b16 %v166
    %v1872 = vunpack.c.h.b16 %v166
    %v1873 = vunpack.c.l.b16 %v167
    %v1874 = vunpack.c.l.b16 %v168
    %v1875 = vunpack.c.h.b16 %v168
    %v1876 = vunpack.c.l.b16 %v169
    %v1877 = vunpack.c.h.b16 %v169
    %v1878 = vunpack.c.l.b16 %v170
    %v1879 = vunpack.c.h.b16 %v170
    %v1880 = vunpack.c.l.b16 %v171
    %v1881 = vunpack.c.h.b16 %v171
    %v1882 = vunpack.c.l.b16 %v172
    %v1883 = vunpack.c.h.b16 %v172
    %v1884 = vunpack.c.l.b16 %v173
    %v1885 = vunpack.c.h.b16 %v173
    %v1886 = vunpack.c.l.b16 %v174
    %v1887 = vunpack.c.h.b16 %v174
    %v1888 = vunpack.c.l.b16 %v175
    %v1889 = vunpack.c.h.b16 %v175
    %v1890 = vunpack.c.l.b16 %v176
    %v1891 = vunpack.c.h.b16 %v176
    %v1892 = vunpack.c.l.b16 %v177
    %v1893 = vunpack.c.h.b16 %v177
    %v1894 = vunpack.c.l.b16 %v178
    %v1895 = vunpack.c.h.b16 %v178
    %v1896 = vunpack.c.l.b16 %v179
    %v1897 = vunpack.c.h.b16 %v179
    %v1898 = vunpack.c.l.b16 %v180
    %v1899 = vunpack.c.h.b16 %v180
    %v1900 = vunpack.c.l.b16 %v181
    %v1901 = vunpack.c.h.b16 %v181
    %v1902 = vunpack.c.l.b16 %v182
    %v1903 = vunpack.c.h.b16 %v182
    %v1904 = vunpack.c.l.b16 %v183
    %v1905 = vunpack.c.h.b16 %v183
    %v1906 = vunpack.c.l.b16 %v184
    %v1907 = vunpack.c.h.b16 %v184
    %v1908 = vunpack.c.l.b16 %v185
    %v1909 = vunpack.c.h.b16 %v185
    %v1910 = vunpack.c.l.b16 %v186
    %v1911 = vunpack.c.h.b16 %v186
    %v1912 = vunpack.c.l.b16 %v187
    %v1913 = vunpack.c.h.b16 %v187
    %v1914 = vunpack.c.l.b16 %v188
    %v1915 = vunpack.c.h.b16 %v188
    %v1916 = vunpack.c.l.b16 %v189
    %v1917 = vunpack.c.h.b16 %v189
    %v1918 = vunpack.c.l.b16 %v190
    %v1919 = vunpack.c.h.b16 %v190
    %v1920 = vunpack.c.l.b16 %v191
    %v1921 = vunpack.c.h.b16 %v191
    %v1922 = vunpack.c.l.b16 %v192
    %v1923 = vunpack.c.l.b16 %v193
    %v1924 = vunpack.c.h.b16 %v193
    %v1925 = vunpack.c.l.b16 %v194
    %v1926 = vunpack.c.h.b16 %v194
    %v1927 = vunpack.c.l.b16 %v195
    %v1928 = vunpack.c.h.b16 %v195
    %v1929 = vunpack.c.l.b16 %v196
    %v1930 = vunpack.c.h.b16 %v196
    %v1931 = vunpack.c.l.b16 %v197
    %v1932 = vunpack.c.h.b16 %v197
    %v1933 = vunpack.c.l.b16 %v198
    %v1934 = vunpack.c.h.b16 %v198
    %v1935 = vunpack.c.l.b16 %v199
    %v1936 = vunpack.c.h.b16 %v199
    %v1937 = vunpack.c.l.b16 %v200
    %v1938 = vunpack.c.h.b16 %v200
    %v1939 = vunpack.c.l.b16 %v201
    %v1940 = vunpack.c.h.b16 %v201
    %v1941 = vunpack.c.l.b16 %v202
    %v1942 = vunpack.c.h.b16 %v202
    %v1943 = vunpack.c.l.b16 %v203
    %v1944 = vunpack.c.h.b16 %v203
    %v1945 = vunpack.c.l.b16 %v204
    %v1946 = vunpack.c.h.b16 %v204
    %v1947 = vunpack.c.l.b16 %v205
    %v1948 = vunpack.c.h.b16 %v205
    %v1949 = vunpack.c.l.b16 %v206
    %v1950 = vunpack.c.h.b16 %v206
    %v1951 = vunpack.c.l.b16 %v207
    %v1952 = vunpack.c.h.b16 %v207
    %v1953 = vunpack.c.l.b16 %v208
    %v1954 = vunpack.c.h.b16 %v208
    %v1955 = vunpack.c.l.b16 %v209
    %v1956 = vunpack.c.h.b16 %v209
    %v1957 = vunpack.c.l.b16 %v210
    %v1958 = vunpack.c.h.b16 %v210
    %v1959 = vunpack.c.l.b16 %v211
    %v1960 = vunpack.c.h.b16 %v211
    %v1961 = vunpack.c.l.b16 %v212
    %v1962 = vunpack.c.h.b16 %v212
    %v1963 = vunpack.c.l.b16 %v213
    %v1964 = vunpack.c.h.b16 %v213
    %v1965 = vunpack.c.l.b16 %v214
    %v1966 = vunpack.c.h.b16 %v214
    %v1967 = vunpack.c.l.b16 %v215
    %v1968 = vunpack.c.h.b16 %v215
    %v1969 = vunpack.c.l.b16 %v216
    %v1970 = vunpack.c.h.b16 %v216
    %v1971 = vunpack.c.l.b16 %v217
    %v1972 = vunpack.c.l.b16 %v218
    %v1973 = vunpack.c.h.b16 %v218
    %v1974 = vunpack.c.l.b16 %v219
    %v1975 = vunpack.c.h.b16 %v219
    %v1976 = vunpack.c.l.b16 %v220
    %v1977 = vunpack.c.h.b16 %v220
    %v1978 = vunpack.c.l.b16 %v221
    %v1979 = vunpack.c.h.b16 %v221
    %v1980 = vunpack.c.l.b16 %v222
    %v1981 = vunpack.c.h.b16 %v222
    %v1982 = vunpack.c.l.b16 %v223
    %v1983 = vunpack.c.h.b16 %v223
    %v1984 = vunpack.c.l.b16 %v224
    %v1985 = vunpack.c.h.b16 %v224
    %v1986 = vunpack.c.l.b16 %v225
    %v1987 = vunpack.c.h.b16 %v225
    %v1988 = vunpack.c.l.b16 %v226
    %v1989 = vunpack.c.h.b16 %v226
    %v1990 = vunpack.c.l.b16 %v227
    %v1991 = vunpack.c.h.b16 %v227
    %v1992 = vunpack.c.l.b16 %v228
    %v1993 = vunpack.c.h.b16 %v228
    %v1994 = vunpack.c.l.b16 %v229
    %v1995 = vunpack.c.h.b16 %v229
    %v1996 = vunpack.c.l.b16 %v230
    %v1997 = vunpack.c.h.b16 %v230
    %v1998 = vunpack.c.l.b16 %v231
    %v1999 = vunpack.c.h.b16 %v231
    %v2000 = vunpack.c.l.b16 %v232
    %v2001 = vunpack.c.h.b16 %v232
    %v2002 = vunpack.c.l.b16 %v233
    %v2003 = vunpack.c.h.b16 %v233
    %v2004 = vunpack.c.l.b16 %v234
    %v2005 = vunpack.c.h.b16 %v234
    %v2006 = vunpack.c.l.b16 %v235
    %v2007 = vunpack.c.h.b16 %v235
    %v2008 = vunpack.c.l.b16 %v236
    %v2009 = vunpack.c.h.b16 %v236
    %v2010 = vunpack.c.l.b16 %v237
    %v2011 = vunpack.c.h.b16 %v237
    %v2012 = vunpack.c.l.b16 %v238
    %v2013 = vunpack.c.h.b16 %v238
    %v2014 = vunpack.c.l.b16 %v239
    %v2015 = vunpack.c.h.b16 %v239
    %v2016 = vunpack.c.l.b16 %v240
    %v2017 = vunpack.c.h.b16 %v240
    %v2018 = vunpack.c.l.b16 %v241
    %v2019 = vunpack.c.h.b16 %v241
    %v2020 = vunpack.c.l.b16 %v242
    %v2021 = vunpack.c.l.b16 %v243
    %v2022 = vunpack.c.h.b16 %v243
    %v2023 = vunpack.c.l.b16 %v244
    %v2024 = vunpack.c.h.b16 %v244
    %v2025 = vunpack.c.l.b16 %v245
    %v2026 = vunpack.c.h.b16 %v245
    %v2027 = vunpack.c.l.b16 %v246
    %v2028 = vunpack.c.h.b16 %v246
    %v2029 = vunpack.c.l.b16 %v247
    %v2030 = vunpack.c.h.b16 %v247
    %v2031 = vunpack.c.l.b16 %v248
    %v2032 = vunpack.c.h.b16 %v248
    %v2033 = vunpack.c.l.b16 %v249
    %v2034 = vunpack.c.h.b16 %v249
    %v2035 = vunpack.c.l.b16 %v250
    %v2036 = vunpack.c.h.b16 %v250
    %v2037 = vunpack.c.l.b16 %v251
    %v2038 = vunpack.c.h.b16 %v251
    %v2039 = vunpack.c.l.b16 %v252
    %v2040 = vunpack.c.h.b16 %v252
    %v2041 = vunpack.c.l.b16 %v253
    %v2042 = vunpack.c.h.b16 %v253
    %v2043 = vunpack.c.l.b16 %v254
    %v2044 = vunpack.c.h.b16 %v254
    %v2045 = vunpack.c.l.b16 %v255
    %v2046 = vunpack.c.h.b16 %v255
    %v2047 = vunpack.c.l.b16 %v256
    %v2048 = vunpack.c.h.b16 %v256
    %v2049 = vunpack.c.l.b16 %v257
    %v2050 = vunpack.c.h.b16 %v257
    %v2051 = vunpack.c.l.b16 %v258
    %v2052 = vunpack.c.h.b16 %v258
    %v2053 = vunpack.c.l.b16 %v259
    %v2054 = vunpack.c.h.b16 %v259
    %v2055 = vunpack.c.l.b16 %v260
    %v2056 = vunpack.c.h.b16 %v260
    %v2057 = vunpack.c.l.b16 %v261
    %v2058 = vunpack.c.h.b16 %v261
    %v2059 = vunpack.c.l.b16 %v262
    %v2060 = vunpack.c.h.b16 %v262
    %v2061 = vunpack.c.l.b16 %v263
    %v2062 = vunpack.c.h.b16 %v263
    %v2063 = vunpack.c.l.b16 %v264
    %v2064 = vunpack.c.h.b16 %v264
    %v2065 = vunpack.c.l.b16 %v265
    %v2066 = vunpack.c.h.b16 %v265
    %v2067 = vunpack.c.l.b16 %v266
    %v2068 = vunpack.c.h.b16 %v266
    %v2069 = vunpack.c.l.b16 %v267
    %v2070 = vunpack.c.l.b16 %v268
    %v2071 = vunpack.c.h.b16 %v268
    %v2072 = vunpack.c.l.b16 %v269
    %v2073 = vunpack.c.h.b16 %v269
    %v2074 = vunpack.c.l.b16 %v270
    %v2075 = vunpack.c.h.b16 %v270
    %v2076 = vunpack.c.l.b16 %v271
    %v2077 = vunpack.c.h.b16 %v271
    %v2078 = vunpack.c.l.b16 %v272
    %v2079 = vunpack.c.h.b16 %v272
    %v2080 = vunpack.c.l.b16 %v273
    %v2081 = vunpack.c.h.b16 %v273
    %v2082 = vunpack.c.l.b16 %v274
    %v2083 = vunpack.c.h.b16 %v274
    %v2084 = vunpack.c.l.b16 %v275
    %v2085 = vunpack.c.h.b16 %v275
    %v2086 = vunpack.c.l.b16 %v276
    %v2087 = vunpack.c.h.b16 %v276
    %v2088 = vunpack.c.l.b16 %v277
    %v2089 = vunpack.c.h.b16 %v277
    %v2090 = vunpack.c.l.b16 %v278
    %v2091 = vunpack.c.h.b16 %v278
    %v2092 = vunpack.c.l.b16 %v279
    %v2093 = vunpack.c.h.b16 %v279
    %v2094 = vunpack.c.l.b16 %v280
    %v2095 = vunpack.c.h.b16 %v280
    %v2096 = vunpack.c.l.b16 %v281
    %v2097 = vunpack.c.h.b16 %v281
    %v2098 = vunpack.c.l.b16 %v282
    %v2099 = vunpack.c.h.b16 %v282
    %v2100 = vunpack.c.l.b16 %v283
    %v2101 = vunpack.c.h.b16 %v283
    %v2102 = vunpack.c.l.b16 %v284
    %v2103 = vunpack.c.h.b16 %v284
    %v2104 = vunpack.c.l.b16 %v285
    %v2105 = vunpack.c.h.b16 %v285
    %v2106 = vunpack.c.l.b16 %v286
    %v2107 = vunpack.c.h.b16 %v286
    %v2108 = vunpack.c.l.b16 %v287
    %v2109 = vunpack.c.h.b16 %v287
    %v2110 = vunpack.c.l.b16 %v288
    %v2111 = vunpack.c.h.b16 %v288
    %v2112 = vunpack.c.l.b16 %v289
    %v2113 = vunpack.c.h.b16 %v289
    %v2114 = vunpack.c.l.b16 %v290
    %v2115 = vunpack.c.h.b16 %v290
    %v2116 = vunpack.c.l.b16 %v291
    %v2117 = vunpack.c.h.b16 %v291
    %v2118 = vunpack.c.l.b16 %v292
    %v2119 = vunpack.c.l.b16 %v293
    %v2120 = vunpack.c.h.b16 %v293
    %v2121 = vunpack.c.l.b16 %v294
    %v2122 = vunpack.c.h.b16 %v294
    %v2123 = vunpack.c.l.b16 %v295
    %v2124 = vunpack.c.h.b16 %v295
    %v2125 = vunpack.c.l.b16 %v296
    %v2126 = vunpack.c.h.b16 %v296
    %v2127 = vunpack.c.l.b16 %v297
    %v2128 = vunpack.c.h.b16 %v297
    %v2129 = vunpack.c.l.b16 %v298
    %v2130 = vunpack.c.h.b16 %v298
    %v2131 = vunpack.c.l.b16 %v299
    %v2132 = vunpack.c.h.b16 %v299
    %v2133 = vunpack.c.l.b16 %v300
    %v2134 = vunpack.c.h.b16 %v300
    %v2135 = vunpack.c.l.b16 %v301
    %v2136 = vunpack.c.h.b16 %v301
    %v2137 = vunpack.c.l.b16 %v302
    %v2138 = vunpack.c.h.b16 %v302
    %v2139 = vunpack.c.l.b16 %v303
    %v2140 = vunpack.c.h.b16 %v303
    %v2141 = vunpack.c.l.b16 %v304
    %v2142 = vunpack.c.h.b16 %v304
    %v2143 = vunpack.c.l.b16 %v305
    %v2144 = vunpack.c.h.b16 %v305
    %v2145 = vunpack.c.l.b16 %v306
    %v2146 = vunpack.c.h.b16 %v306
    %v2147 = vunpack.c.l.b16 %v307
    %v2148 = vunpack.c.h.b16 %v307
    %v2149 = vunpack.c.l.b16 %v308
    %v2150 = vunpack.c.h.b16 %v308
    %v2151 = vunpack.c.l.b16 %v309
    %v2152 = vunpack.c.h.b16 %v309
    %v2153 = vunpack.c.l.b16 %v310
    %v2154 = vunpack.c.h.b16 %v310
    %v2155 = vunpack.c.l.b16 %v311
    %v2156 = vunpack.c.h.b16 %v311
    %v2157 = vunpack.c.l.b16 %v312
    %v2158 = vunpack.c.h.b16 %v312
    %v2159 = vunpack.c.l.b16 %v313
    %v2160 = vunpack.c.h.b16 %v313
    %v2161 = vunpack.c.l.b16 %v314
    %v2162 = vunpack.c.h.b16 %v314
    %v2163 = vunpack.c.l.b16 %v315
    %v2164 = vunpack.c.h.b16 %v315
    %v2165 = vunpack.c.l.b16 %v316
    %v2166 = vunpack.c.h.b16 %v316
    %v2167 = vunpack.c.l.b16 %v317
    %v2168 = vunpack.c.l.b16 %v318
    %v2169 = vunpack.c.h.b16 %v318
    %v2170 = vunpack.c.l.b16 %v319
    %v2171 = vunpack.c.h.b16 %v319
    %v2172 = vunpack.c.l.b16 %v320
    %v2173 = vunpack.c.h.b16 %v320
    %v2174 = vunpack.c.l.b16 %v321
    %v2175 = vunpack.c.h.b16 %v321
    %v2176 = vunpack.c.l.b16 %v322
    %v2177 = vunpack.c.h.b16 %v322
    %v2178 = vunpack.c.l.b16 %v323
    %v2179 = vunpack.c.h.b16 %v323
    %v2180 = vunpack.c.l.b16 %v324
    %v2181 = vunpack.c.h.b16 %v324
    %v2182 = vunpack.c.l.b16 %v325
    %v2183 = vunpack.c.h.b16 %v325
    %v2184 = vunpack.c.l.b16 %v326
    %v2185 = vunpack.c.h.b16 %v326
    %v2186 = vunpack.c.l.b16 %v327
    %v2187 = vunpack.c.h.b16 %v327
    %v2188 = vunpack.c.l.b16 %v328
    %v2189 = vunpack.c.h.b16 %v328
    %v2190 = vunpack.c.l.b16 %v329
    %v2191 = vunpack.c.h.b16 %v329
    %v2192 = vunpack.c.l.b16 %v330
    %v2193 = vunpack.c.h.b16 %v330
    %v2194 = vunpack.c.l.b16 %v331
    %v2195 = vunpack.c.h.b16 %v331
    %v2196 = vunpack.c.l.b16 %v332
    %v2197 = vunpack.c.h.b16 %v332
    %v2198 = vunpack.c.l.b16 %v333
    %v2199 = vunpack.c.h.b16 %v333
    %v2200 = vunpack.c.l.b16 %v334
    %v2201 = vunpack.c.h.b16 %v334
    %v2202 = vunpack.c.l.b16 %v335
    %v2203 = vunpack.c.h.b16 %v335
    %v2204 = vunpack.c.l.b16 %v336
    %v2205 = vunpack.c.h.b16 %v336
    %v2206 = vunpack.c.l.b16 %v337
    %v2207 = vunpack.c.h.b16 %v337
    %v2208 = vunpack.c.l.b16 %v338
    %v2209 = vunpack.c.h.b16 %v338
    %v2210 = vunpack.c.l.b16 %v339
    %v2211 = vunpack.c.h.b16 %v339
    %v2212 = vunpack.c.l.b16 %v340
    %v2213 = vunpack.c.h.b16 %v340
    %v2214 = vunpack.c.l.b16 %v341
    %v2215 = vunpack.c.h.b16 %v341
    %v2216 = vunpack.c.l.b16 %v342
    %v2217 = vunpack.c.l.b16 %v343
    %v2218 = vunpack.c.h.b16 %v343
    %v2219 = vunpack.c.l.b16 %v344
    %v2220 = vunpack.c.h.b16 %v344
    %v2221 = vunpack.c.l.b16 %v345
    %v2222 = vunpack.c.h.b16 %v345
    %v2223 = vunpack.c.l.b16 %v346
    %v2224 = vunpack.c.h.b16 %v346
    %v2225 = vunpack.c.l.b16 %v347
    %v2226 = vunpack.c.h.b16 %v347
    %v2227 = vunpack.c.l.b16 %v348
    %v2228 = vunpack.c.h.b16 %v348
    %v2229 = vunpack.c.l.b16 %v349
    %v2230 = vunpack.c.h.b16 %v349
    %v2231 = vunpack.c.l.b16 %v350
    %v2232 = vunpack.c.h.b16 %v350
    %v2233 = vunpack.c.l.b16 %v351
    %v2234 = vunpack.c.h.b16 %v351
    %v2235 = vunpack.c.l.b16 %v352
    %v2236 = vunpack.c.h.b16 %v352
    %v2237 = vunpack.c.l.b16 %v353
    %v2238 = vunpack.c.h.b16 %v353
    %v2239 = vunpack.c.l.b16 %v354
    %v2240 = vunpack.c.h.b16 %v354
    %v2241 = vunpack.c.l.b16 %v355
    %v2242 = vunpack.c.h.b16 %v355
    %v2243 = vunpack.c.l.b16 %v356
    %v2244 = vunpack.c.h.b16 %v356
    %v2245 = vunpack.c.l.b16 %v357
    %v2246 = vunpack.c.h.b16 %v357
    %v2247 = vunpack.c.l.b16 %v358
    %v2248 = vunpack.c.h.b16 %v358
    %v2249 = vunpack.c.l.b16 %v359
    %v2250 = vunpack.c.h.b16 %v359
    %v2251 = vunpack.c.l.b16 %v360
    %v2252 = vunpack.c.h.b16 %v360
    %v2253 = vunpack.c.l.b16 %v361
    %v2254 = vunpack.c.h.b16 %v361
    %v2255 = vunpack.c.l.b16 %v362
    %v2256 = vunpack.c.h.b16 %v362
    %v2257 = vunpack.c.l.b16 %v363
    %v2258 = vunpack.c.h.b16 %v363
    %v2259 = vunpack.c.l.b16 %v364
    %v2260 = vunpack.c.h.b16 %v364
    %v2261 = vunpack.c.l.b16 %v365
    %v2262 = vunpack.c.h.b16 %v365
    %v2263 = vunpack.c.l.b16 %v366
    %v2264 = vunpack.c.h.b16 %v366
    %v2265 = vunpack.c.l.b16 %v367
    %v2266 = vunpack.c.l.b16 %v368
    %v2267 = vunpack.c.h.b16 %v368
    %v2268 = vunpack.c.l.b16 %v369
    %v2269 = vunpack.c.h.b16 %v369
    %v2270 = vunpack.c.l.b16 %v370
    %v2271 = vunpack.c.h.b16 %v370
    %v2272 = vunpack.c.l.b16 %v371
    %v2273 = vunpack.c.h.b16 %v371
    %v2274 = vunpack.c.l.b16 %v372
    %v2275 = vunpack.c.h.b16 %v372
    %v2276 = vunpack.c.l.b16 %v373
    %v2277 = vunpack.c.h.b16 %v373
    %v2278 = vunpack.c.l.b16 %v374
    %v2279 = vunpack.c.h.b16 %v374
    %v2280 = vunpack.c.l.b16 %v375
    %v2281 = vunpack.c.h.b16 %v375
    %v2282 = vunpack.c.l.b16 %v376
    %v2283 = vunpack.c.h.b16 %v376
    %v2284 = vunpack.c.l.b16 %v377
    %v2285 = vunpack.c.h.b16 %v377
    %v2286 = vunpack.c.l.b16 %v378
    %v2287 = vunpack.c.h.b16 %v378
    %v2288 = vunpack.c.l.b16 %v379
    %v2289 = vunpack.c.h.b16 %v379
    %v2290 = vunpack.c.l.b16 %v380
    %v2291 = vunpack.c.h.b16 %v380
    %v2292 = vunpack.c.l.b16 %v381
    %v2293 = vunpack.c.h.b16 %v381
    %v2294 = vunpack.c.l.b16 %v382
    %v2295 = vunpack.c.h.b16 %v382
    %v2296 = vunpack.c.l.b16 %v383
    %v2297 = vunpack.c.h.b16 %v383
    %v2298 = vunpack.c.l.b16 %v384
    %v2299 = vunpack.c.h.b16 %v384
    %v2300 = vunpack.c.l.b16 %v385
    %v2301 = vunpack.c.h.b16 %v385
    %v2302 = vunpack.c.l.b16 %v386
    %v2303 = vunpack.c.h.b16 %v386
    %v2304 = vunpack.c.l.b16 %v387
    %v2305 = vunpack.c.h.b16 %v387
    %v2306 = vunpack.c.l.b16 %v388
    %v2307 = vunpack.c.h.b16 %v388
    %v2308 = vunpack.c.l.b16 %v389
    %v2309 = vunpack.c.h.b16 %v389
    %v2310 = vunpack.c.l.b16 %v390
    %v2311 = vunpack.c.h.b16 %v390
    %v2312 = vunpack.c.l.b16 %v391
    %v2313 = vunpack.c.h.b16 %v391
    %v2314 = vunpack.c.l.b16 %v392
    %v2315 = vunpack.c.l.b16 %v393
    %v2316 = vunpack.c.h.b16 %v393
    %v2317 = vunpack.c.l.b16 %v394
    %v2318 = vunpack.c.h.b16 %v394
    %v2319 = vunpack.c.l.b16 %v395
    %v2320 = vunpack.c.h.b16 %v395
    %v2321 = vunpack.c.l.b16 %v396
    %v2322 = vunpack.c.h.b16 %v396
    %v2323 = vunpack.c.l.b16 %v397
    %v2324 = vunpack.c.h.b16 %v397
    %v2325 = vunpack.c.l.b16 %v398
    %v2326 = vunpack.c.h.b16 %v398
    %v2327 = vunpack.c.l.b16 %v399
    %v2328 = vunpack.c.h.b16 %v399
    %v2329 = vunpack.c.l.b16 %v400
    %v2330 = vunpack.c.h.b16 %v400
    %v2331 = vunpack.c.l.b16 %v401
    %v2332 = vunpack.c.h.b16 %v401
    %v2333 = vunpack.c.l.b16 %v402
    %v2334 = vunpack.c.h.b16 %v402
    %v2335 = vunpack.c.l.b16 %v403
    %v2336 = vunpack.c.h.b16 %v403
    %v2337 = vunpack.c.l.b16 %v404
    %v2338 = vunpack.c.h.b16 %v404
    %v2339 = vunpack.c.l.b16 %v405
    %v2340 = vunpack.c.h.b16 %v405
    %v2341 = vunpack.c.l.b16 %v406
    %v2342 = vunpack.c.h.b16 %v406
    %v2343 = vunpack.c.l.b16 %v407
    %v2344 = vunpack.c.h.b16 %v407
    %v2345 = vunpack.c.l.b16 %v408
    %v2346 = vunpack.c.h.b16 %v408
    %v2347 = vunpack.c.l.b16 %v409
    %v2348 = vunpack.c.h.b16 %v409
    %v2349 = vunpack.c.l.b16 %v410
    %v2350 = vunpack.c.h.b16 %v410
    %v2351 = vunpack.c.l.b16 %v411
    %v2352 = vunpack.c.h.b16 %v411
    %v2353 = vunpack.c.l.b16 %v412
    %v2354 = vunpack.c.h.b16 %v412
    %v2355 = vunpack.c.l.b16 %v413
    %v2356 = vunpack.c.h.b16 %v413
    %v2357 = vunpack.c.l.b16 %v414
    %v2358 = vunpack.c.h.b16 %v414
    %v2359 = vunpack.c.l.b16 %v415
    %v2360 = vunpack.c.h.b16 %v415
    %v2361 = vunpack.c.l.b16 %v416
    %v2362 = vunpack.c.h.b16 %v416
    %v2363 = vunpack.c.l.b16 %v417
    %v2364 = vunpack.c.l.b16 %v418
    %v2365 = vunpack.c.h.b16 %v418
    %v2366 = vunpack.c.l.b16 %v419
    %v2367 = vunpack.c.h.b16 %v419
    %v2368 = vunpack.c.l.b16 %v420
    %v2369 = vunpack.c.h.b16 %v420
    %v2370 = vunpack.c.l.b16 %v421
    %v2371 = vunpack.c.h.b16 %v421
    %v2372 = vunpack.c.l.b16 %v422
    %v2373 = vunpack.c.h.b16 %v422
    %v2374 = vunpack.c.l.b16 %v423
    %v2375 = vunpack.c.h.b16 %v423
    %v2376 = vunpack.c.l.b16 %v424
    %v2377 = vunpack.c.h.b16 %v424
    %v2378 = vunpack.c.l.b16 %v425
    %v2379 = vunpack.c.h.b16 %v425
    %v2380 = vunpack.c.l.b16 %v426
    %v2381 = vunpack.c.h.b16 %v426
    %v2382 = vunpack.c.l.b16 %v427
    %v2383 = vunpack.c.h.b16 %v427
    %v2384 = vunpack.c.l.b16 %v428
    %v2385 = vunpack.c.h.b16 %v428
    %v2386 = vunpack.c.l.b16 %v429
    %v2387 = vunpack.c.h.b16 %v429
    %v2388 = vunpack.c.l.b16 %v430
    %v2389 = vunpack.c.h.b16 %v430
    %v2390 = vunpack.c.l.b16 %v431
    %v2391 = vunpack.c.h.b16 %v431
    %v2392 = vunpack.c.l.b16 %v432
    %v2393 = vunpack.c.h.b16 %v432
    %v2394 = vunpack.c.l.b16 %v433
    %v2395 = vunpack.c.h.b16 %v433
    %v2396 = vunpack.c.l.b16 %v434
    %v2397 = vunpack.c.h.b16 %v434
    %v2398 = vunpack.c.l.b16 %v435
    %v2399 = vunpack.c.h.b16 %v435
    %v2400 = vunpack.c.l.b16 %v436
    %v2401 = vunpack.c.h.b16 %v436
    %v2402 = vunpack.c.l.b16 %v437
    %v2403 = vunpack.c.h.b16 %v437
    %v2404 = vunpack.c.l.b16 %v438
    %v2405 = vunpack.c.h.b16 %v438
    %v2406 = vunpack.c.l.b16 %v439
    %v2407 = vunpack.c.h.b16 %v439
    %v2408 = vunpack.c.l.b16 %v440
    %v2409 = vunpack.c.h.b16 %v440
    %v2410 = vunpack.c.l.b16 %v441
    %v2411 = vunpack.c.h.b16 %v441
    %v2412 = vunpack.c.l.b16 %v442
    %v2413 = vunpack.c.l.b16 %v443
    %v2414 = vunpack.c.h.b16 %v443
    %v2415 = vunpack.c.l.b16 %v444
    %v2416 = vunpack.c.h.b16 %v444
    %v2417 = vunpack.c.l.b16 %v445
    %v2418 = vunpack.c.h.b16 %v445
    %v2419 = vunpack.c.l.b16 %v446
    %v2420 = vunpack.c.h.b16 %v446
    %v2421 = vunpack.c.l.b16 %v447
    %v2422 = vunpack.c.h.b16 %v447
    %v2423 = vunpack.c.l.b16 %v448
    %v2424 = vunpack.c.h.b16 %v448
    %v2425 = vunpack.c.l.b16 %v449
    %v2426 = vunpack.c.h.b16 %v449
    %v2427 = vunpack.c.l.b16 %v450
    %v2428 = vunpack.c.h.b16 %v450
    %v2429 = vunpack.c.l.b16 %v451
    %v2430 = vunpack.c.h.b16 %v451
    %v2431 = vunpack.c.l.b16 %v452
    %v2432 = vunpack.c.h.b16 %v452
    %v2433 = vunpack.c.l.b16 %v453
    %v2434 = vunpack.c.h.b16 %v453
    %v2435 = vunpack.c.l.b16 %v454
    %v2436 = vunpack.c.h.b16 %v454
    %v2437 = vunpack.c.l.b16 %v455
    %v2438 = vunpack.c.h.b16 %v455
    %v2439 = vunpack.c.l.b16 %v456
    %v2440 = vunpack.c.h.b16 %v456
    %v2441 = vunpack.c.l.b16 %v457
    %v2442 = vunpack.c.h.b16 %v457
    %v2443 = vunpack.c.l.b16 %v458
    %v2444 = vunpack.c.h.b16 %v458
    %v2445 = vunpack.c.l.b16 %v459
    %v2446 = vunpack.c.h.b16 %v459
    %v2447 = vunpack.c.l.b16 %v460
    %v2448 = vunpack.c.h.b16 %v460
    %v2449 = vunpack.c.l.b16 %v461
    %v2450 = vunpack.c.h.b16 %v461
    %v2451 = vunpack.c.l.b16 %v462
    %v2452 = vunpack.c.h.b16 %v462
    %v2453 = vunpack.c.l.b16 %v463
    %v2454 = vunpack.c.h.b16 %v463
    %v2455 = vunpack.c.l.b16 %v464
    %v2456 = vunpack.c.h.b16 %v464
    %v2457 = vunpack.c.l.b16 %v465
    %v2458 = vunpack.c.h.b16 %v465
    %v2459 = vunpack.c.l.b16 %v466
    %v2460 = vunpack.c.h.b16 %v466
    %v2461 = vunpack.c.l.b16 %v467
    %v2462 = vunpack.c.l.b16 %v468
    %v2463 = vunpack.c.h.b16 %v468
    %v2464 = vunpack.c.l.b16 %v469
    %v2465 = vunpack.c.h.b16 %v469
    %v2466 = vunpack.c.l.b16 %v470
    %v2467 = vunpack.c.h.b16 %v470
    %v2468 = vunpack.c.l.b16 %v471
    %v2469 = vunpack.c.h.b16 %v471
    %v2470 = vunpack.c.l.b16 %v472
    %v2471 = vunpack.c.h.b16 %v472
    %v2472 = vunpack.c.l.b16 %v473
    %v2473 = vunpack.c.h.b16 %v473
    %v2474 = vunpack.c.l.b16 %v474
    %v2475 = vunpack.c.h.b16 %v474
    %v2476 = vunpack.c.l.b16 %v475
    %v2477 = vunpack.c.h.b16 %v475
    %v2478 = vunpack.c.l.b16 %v476
    %v2479 = vunpack.c.h.b16 %v476
    %v2480 = vunpack.c.l.b16 %v477
    %v2481 = vunpack.c.h.b16 %v477
    %v2482 = vunpack.c.l.b16 %v478
    %v2483 = vunpack.c.h.b16 %v478
    %v2484 = vunpack.c.l.b16 %v479
    %v2485 = vunpack.c.h.b16 %v479
    %v2486 = vunpack.c.l.b16 %v480
    %v2487 = vunpack.c.h.b16 %v480
    %v2488 = vunpack.c.l.b16 %v481
    %v2489 = vunpack.c.h.b16 %v481
    %v2490 = vunpack.c.l.b16 %v482
    %v2491 = vunpack.c.h.b16 %v482
    %v2492 = vunpack.c.l.b16 %v483
    %v2493 = vunpack.c.h.b16 %v483
    %v2494 = vunpack.c.l.b16 %v484
    %v2495 = vunpack.c.h.b16 %v484
    %v2496 = vunpack.c.l.b16 %v485
    %v2497 = vunpack.c.h.b16 %v485
    %v2498 = vunpack.c.l.b16 %v486
    %v2499 = vunpack.c.h.b16 %v486
    %v2500 = vunpack.c.l.b16 %v487
    %v2501 = vunpack.c.h.b16 %v487
    %v2502 = vunpack.c.l.b16 %v488
    %v2503 = vunpack.c.h.b16 %v488
    %v2504 = vunpack.c.l.b16 %v489
    %v2505 = vunpack.c.h.b16 %v489
    %v2506 = vunpack.c.l.b16 %v490
    %v2507 = vunpack.c.h.b16 %v490
    %v2508 = vunpack.c.l.b16 %v491
    %v2509 = vunpack.c.h.b16 %v491
    %v2510 = vunpack.c.l.b16 %v492
    %v2511 = vunpack.c.l.b16 %v493
    %v2512 = vunpack.c.h.b16 %v493
    %v2513 = vunpack.c.l.b16 %v494
    %v2514 = vunpack.c.h.b16 %v494
    %v2515 = vunpack.c.l.b16 %v495
    %v2516 = vunpack.c.h.b16 %v495
    %v2517 = vunpack.c.l.b16 %v496
    %v2518 = vunpack.c.h.b16 %v496
    %v2519 = vunpack.c.l.b16 %v497
    %v2520 = vunpack.c.h.b16 %v497
    %v2521 = vunpack.c.l.b16 %v498
    %v2522 = vunpack.c.h.b16 %v498
    %v2523 = vunpack.c.l.b16 %v499
    %v2524 = vunpack.c.h.b16 %v499
    %v2525 = vunpack.c.l.b16 %v500
    %v2526 = vunpack.c.h.b16 %v500
    %v2527 = vunpack.c.l.b16 %v501
    %v2528 = vunpack.c.h.b16 %v501
    %v2529 = vunpack.c.l.b16 %v502
    %v2530 = vunpack.c.h.b16 %v502
    %v2531 = vunpack.c.l.b16 %v503
    %v2532 = vunpack.c.h.b16 %v503
    %v2533 = vunpack.c.l.b16 %v504
    %v2534 = vunpack.c.h.b16 %v504
    %v2535 = vunpack.c.l.b16 %v505
    %v2536 = vunpack.c.h.b16 %v505
    %v2537 = vunpack.c.l.b16 %v506
    %v2538 = vunpack.c.h.b16 %v506
    %v2539 = vunpack.c.l.b16 %v507
    %v2540 = vunpack.c.h.b16 %v507
    %v2541 = vunpack.c.l.b16 %v508
    %v2542 = vunpack.c.h.b16 %v508
    %v2543 = vunpack.c.l.b16 %v509
    %v2544 = vunpack.c.h.b16 %v509
    %v2545 = vunpack.c.l.b16 %v510
    %v2546 = vunpack.c.h.b16 %v510
    %v2547 = vunpack.c.l.b16 %v511
    %v2548 = vunpack.c.h.b16 %v511
    %v2549 = vunpack.c.l.b16 %v512
    %v2550 = vunpack.c.h.b16 %v512
    %v2551 = vunpack.c.l.b16 %v513
    %v2552 = vunpack.c.h.b16 %v513
    %v2553 = vunpack.c.l.b16 %v514
    %v2554 = vunpack.c.h.b16 %v514
    %v2555 = vunpack.c.l.b16 %v515
    %v2556 = vunpack.c.h.b16 %v515
    %v2557 = vunpack.c.l.b16 %v516
    %v2558 = vunpack.c.h.b16 %v516
    %v2559 = vunpack.c.l.b16 %v517
    %v2560 = vunpack.c.l.b16 %v518
    %v2561 = vunpack.c.h.b16 %v518
    %v2562 = vunpack.c.l.b16 %v519
    %v2563 = vunpack.c.h.b16 %v519
    %v2564 = vunpack.c.l.b16 %v520
    %v2565 = vunpack.c.h.b16 %v520
    %v2566 = vunpack.c.l.b16 %v521
    %v2567 = vunpack.c.h.b16 %v521
    %v2568 = vunpack.c.l.b16 %v522
    %v2569 = vunpack.c.h.b16 %v522
    %v2570 = vunpack.c.l.b16 %v523
    %v2571 = vunpack.c.h.b16 %v523
    %v2572 = vunpack.c.l.b16 %v524
    %v2573 = vunpack.c.h.b16 %v524
    %v2574 = vunpack.c.l.b16 %v525
    %v2575 = vunpack.c.h.b16 %v525
    %v2576 = vunpack.c.l.b16 %v526
    %v2577 = vunpack.c.h.b16 %v526
    %v2578 = vunpack.c.l.b16 %v527
    %v2579 = vunpack.c.h.b16 %v527
    %v2580 = vunpack.c.l.b16 %v528
    %v2581 = vunpack.c.h.b16 %v528
    %v2582 = vunpack.c.l.b16 %v529
    %v2583 = vunpack.c.h.b16 %v529
    %v2584 = vunpack.c.l.b16 %v530
    %v2585 = vunpack.c.h.b16 %v530
    %v2586 = vunpack.c.l.b16 %v531
    %v2587 = vunpack.c.h.b16 %v531
    %v2588 = vunpack.c.l.b16 %v532
    %v2589 = vunpack.c.h.b16 %v532
    %v2590 = vunpack.c.l.b16 %v533
    %v2591 = vunpack.c.h.b16 %v533
    %v2592 = vunpack.c.l.b16 %v534
    %v2593 = vunpack.c.h.b16 %v534
    %v2594 = vunpack.c.l.b16 %v535
    %v2595 = vunpack.c.h.b16 %v535
    %v2596 = vunpack.c.l.b16 %v536
    %v2597 = vunpack.c.h.b16 %v536
    %v2598 = vunpack.c.l.b16 %v537
    %v2599 = vunpack.c.h.b16 %v537
    %v2600 = vunpack.c.l.b16 %v538
    %v2601 = vunpack.c.h.b16 %v538
    %v2602 = vunpack.c.l.b16 %v539
    %v2603 = vunpack.c.h.b16 %v539
    %v2604 = vunpack.c.l.b16 %v540
    %v2605 = vunpack.c.h.b16 %v540
    %v2606 = vunpack.c.l.b16 %v541
    %v2607 = vunpack.c.h.b16 %v541
    %v2608 = vunpack.c.l.b16 %v542
    %v2609 = vunpack.c.l.b16 %v543
    %v2610 = vunpack.c.h.b16 %v543
    %v2611 = vunpack.c.l.b16 %v544
    %v2612 = vunpack.c.h.b16 %v544
    %v2613 = vunpack.c.l.b16 %v545
    %v2614 = vunpack.c.h.b16 %v545
    %v2615 = vunpack.c.l.b16 %v546
    %v2616 = vunpack.c.h.b16 %v546
    %v2617 = vunpack.c.l.b16 %v547
    %v2618 = vunpack.c.h.b16 %v547
    %v2619 = vunpack.c.l.b16 %v548
    %v2620 = vunpack.c.h.b16 %v548
    %v2621 = vunpack.c.l.b16 %v549
    %v2622 = vunpack.c.h.b16 %v549
    %v2623 = vunpack.c.l.b16 %v550
    %v2624 = vunpack.c.h.b16 %v550
    %v2625 = vunpack.c.l.b16 %v551
    %v2626 = vunpack.c.h.b16 %v551
    %v2627 = vunpack.c.l.b16 %v552
    %v2628 = vunpack.c.h.b16 %v552
    %v2629 = vunpack.c.l.b16 %v553
    %v2630 = vunpack.c.h.b16 %v553
    %v2631 = vunpack.c.l.b16 %v554
    %v2632 = vunpack.c.h.b16 %v554
    %v2633 = vunpack.c.l.b16 %v555
    %v2634 = vunpack.c.h.b16 %v555
    %v2635 = vunpack.c.l.b16 %v556
    %v2636 = vunpack.c.h.b16 %v556
    %v2637 = vunpack.c.l.b16 %v557
    %v2638 = vunpack.c.h.b16 %v557
    %v2639 = vunpack.c.l.b16 %v558
    %v2640 = vunpack.c.h.b16 %v558
    %v2641 = vunpack.c.l.b16 %v559
    %v2642 = vunpack.c.h.b16 %v559
    %v2643 = vunpack.c.l.b16 %v560
    %v2644 = vunpack.c.h.b16 %v560
    %v2645 = vunpack.c.l.b16 %v561
    %v2646 = vunpack.c.h.b16 %v561
    %v2647 = vunpack.c.l.b16 %v562
    %v2648 = vunpack.c.h.b16 %v562
    %v2649 = vunpack.c.l.b16 %v563
    %v2650 = vunpack.c.h.b16 %v563
    %v2651 = vunpack.c.l.b16 %v564
    %v2652 = vunpack.c.h.b16 %v564
    %v2653 = vunpack.c.l.b16 %v565
    %v2654 = vunpack.c.h.b16 %v565
    %v2655 = vunpack.c.l.b16 %v566
    %v2656 = vunpack.c.h.b16 %v566
    %v2657 = vunpack.c.l.b16 %v567
    %v2658 = vunpack.c.l.b16 %v568
    %v2659 = vunpack.c.h.b16 %v568
    %v2660 = vunpack.c.l.b16 %v569
    %v2661 = vunpack.c.h.b16 %v569
    %v2662 = vunpack.c.l.b16 %v570
    %v2663 = vunpack.c.h.b16 %v570
    %v2664 = vunpack.c.l.b16 %v571
    %v2665 = vunpack.c.h.b16 %v571
    %v2666 = vunpack.c.l.b16 %v572
    %v2667 = vunpack.c.h.b16 %v572
    %v2668 = vunpack.c.l.b16 %v573
    %v2669 = vunpack.c.h.b16 %v573
    %v2670 = vunpack.c.l.b16 %v574
    %v2671 = vunpack.c.h.b16 %v574
    %v2672 = vunpack.c.l.b16 %v575
    %v2673 = vunpack.c.h.b16 %v575
    %v2674 = vunpack.c.l.b16 %v576
    %v2675 = vunpack.c.h.b16 %v576
    %v2676 = vunpack.c.l.b16 %v577
    %v2677 = vunpack.c.h.b16 %v577
    %v2678 = vunpack.c.l.b16 %v578
    %v2679 = vunpack.c.h.b16 %v578
    %v2680 = vunpack.c.l.b16 %v579
    %v2681 = vunpack.c.h.b16 %v579
    %v2682 = vunpack.c.l.b16 %v580
    %v2683 = vunpack.c.h.b16 %v580
    %v2684 = vunpack.c.l.b16 %v581
    %v2685 = vunpack.c.h.b16 %v581
    %v2686 = vunpack.c.l.b16 %v582
    %v2687 = vunpack.c.h.b16 %v582
    %v2688 = vunpack.c.l.b16 %v583
    %v2689 = vunpack.c.h.b16 %v583
    %v2690 = vunpack.c.l.b16 %v584
    %v2691 = vunpack.c.h.b16 %v584
    %v2692 = vunpack.c.l.b16 %v585
    %v2693 = vunpack.c.h.b16 %v585
    %v2694 = vunpack.c.l.b16 %v586
    %v2695 = vunpack.c.h.b16 %v586
    %v2696 = vunpack.c.l.b16 %v587
    %v2697 = vunpack.c.h.b16 %v587
    %v2698 = vunpack.c.l.b16 %v588
    %v2699 = vunpack.c.h.b16 %v588
    %v2700 = vunpack.c.l.b16 %v589
    %v2701 = vunpack.c.h.b16 %v589
    %v2702 = vunpack.c.l.b16 %v590
    %v2703 = vunpack.c.h.b16 %v590
    %v2704 = vunpack.c.l.b16 %v591
    %v2705 = vunpack.c.h.b16 %v591
    %v2706 = vunpack.c.l.b16 %v592
    %v2707 = vunpack.c.l.b16 %v593
    %v2708 = vunpack.c.h.b16 %v593
    %v2709 = vunpack.c.l.b16 %v594
    %v2710 = vunpack.c.h.b16 %v594
    %v2711 = vunpack.c.l.b16 %v595
    %v2712 = vunpack.c.h.b16 %v595
    %v2713 = vunpack.c.l.b16 %v596
    %v2714 = vunpack.c.h.b16 %v596
    %v2715 = vunpack.c.l.b16 %v597
    %v2716 = vunpack.c.h.b16 %v597
    %v2717 = vunpack.c.l.b16 %v598
    %v2718 = vunpack.c.h.b16 %v598
    %v2719 = vunpack.c.l.b16 %v599
    %v2720 = vunpack.c.h.b16 %v599
    %v2721 = vunpack.c.l.b16 %v600
    %v2722 = vunpack.c.h.b16 %v600
    %v2723 = vunpack.c.l.b16 %v601
    %v2724 = vunpack.c.h.b16 %v601
    %v2725 = vunpack.c.l.b16 %v602
    %v2726 = vunpack.c.h.b16 %v602
    %v2727 = vunpack.c.l.b16 %v603
    %v2728 = vunpack.c.h.b16 %v603
    %v2729 = vunpack.c.l.b16 %v604
    %v2730 = vunpack.c.h.b16 %v604
    %v2731 = vunpack.c.l.b16 %v605
    %v2732 = vunpack.c.h.b16 %v605
    %v2733 = vunpack.c.l.b16 %v606
    %v2734 = vunpack.c.h.b16 %v606
    %v2735 = vunpack.c.l.b16 %v607
    %v2736 = vunpack.c.h.b16 %v607
    %v2737 = vunpack.c.l.b16 %v608
    %v2738 = vunpack.c.h.b16 %v608
    %v2739 = vunpack.c.l.b16 %v609
    %v2740 = vunpack.c.h.b16 %v609
    %v2741 = vunpack.c.l.b16 %v610
    %v2742 = vunpack.c.h.b16 %v610
    %v2743 = vunpack.c.l.b16 %v611
    %v2744 = vunpack.c.h.b16 %v611
    %v2745 = vunpack.c.l.b16 %v612
    %v2746 = vunpack.c.h.b16 %v612
    %v2747 = vunpack.c.l.b16 %v613
    %v2748 = vunpack.c.h.b16 %v613
    %v2749 = vunpack.c.l.b16 %v614
    %v2750 = vunpack.c.h.b16 %v614
    %v2751 = vunpack.c.l.b16 %v615
    %v2752 = vunpack.c.h.b16 %v615
    %v2753 = vunpack.c.l.b16 %v616
    %v2754 = vunpack.c.h.b16 %v616
    %v2755 = vunpack.c.l.b16 %v617
    %v2756 = vunpack.c.l.b16 %v618
    %v2757 = vunpack.c.h.b16 %v618
    %v2758 = vunpack.c.l.b16 %v619
    %v2759 = vunpack.c.h.b16 %v619
    %v2760 = vunpack.c.l.b16 %v620
    %v2761 = vunpack.c.h.b16 %v620
    %v2762 = vunpack.c.l.b16 %v621
    %v2763 = vunpack.c.h.b16 %v621
    %v2764 = vunpack.c.l.b16 %v622
    %v2765 = vunpack.c.h.b16 %v622
    %v2766 = vunpack.c.l.b16 %v623
    %v2767 = vunpack.c.h.b16 %v623
    %v2768 = vunpack.c.l.b16 %v624
    %v2769 = vunpack.c.h.b16 %v624
    %v2770 = vunpack.c.l.b16 %v625
    %v2771 = vunpack.c.h.b16 %v625
    %v2772 = vunpack.c.l.b16 %v626
    %v2773 = vunpack.c.h.b16 %v626
    %v2774 = vunpack.c.l.b16 %v627
    %v2775 = vunpack.c.h.b16 %v627
    %v2776 = vunpack.c.l.b16 %v628
    %v2777 = vunpack.c.h.b16 %v628
    %v2778 = vunpack.c.l.b16 %v629
    %v2779 = vunpack.c.h.b16 %v629
    %v2780 = vunpack.c.l.b16 %v630
    %v2781 = vunpack.c.h.b16 %v630
    %v2782 = vunpack.c.l.b16 %v631
    %v2783 = vunpack.c.h.b16 %v631
    %v2784 = vunpack.c.l.b16 %v632
    %v2785 = vunpack.c.h.b16 %v632
    %v2786 = vunpack.c.l.b16 %v633
    %v2787 = vunpack.c.h.b16 %v633
    %v2788 = vunpack.c.l.b16 %v634
    %v2789 = vunpack.c.h.b16 %v634
    %v2790 = vunpack.c.l.b16 %v635
    %v2791 = vunpack.c.h.b16 %v635
    %v2792 = vunpack.c.l.b16 %v636
    %v2793 = vunpack.c.h.b16 %v636
    %v2794 = vunpack.c.l.b16 %v637
    %v2795 = vunpack.c.h.b16 %v637
    %v2796 = vunpack.c.l.b16 %v638
    %v2797 = vunpack.c.h.b16 %v638
    %v2798 = vunpack.c.l.b16 %v639
    %v2799 = vunpack.c.h.b16 %v639
    %v2800 = vunpack.c.l.b16 %v640
    %v2801 = vunpack.c.h.b16 %v640
    %v2802 = vunpack.c.l.b16 %v641
    %v2803 = vunpack.c.h.b16 %v641
    %v2804 = vunpack.c.l.b16 %v642
    %v2805 = vunpack.c.l.b16 %v643
    %v2806 = vunpack.c.h.b16 %v643
    %v2807 = vunpack.c.l.b16 %v644
    %v2808 = vunpack.c.h.b16 %v644
    %v2809 = vunpack.c.l.b16 %v645
    %v2810 = vunpack.c.h.b16 %v645
    %v2811 = vunpack.c.l.b16 %v646
    %v2812 = vunpack.c.h.b16 %v646
    %v2813 = vunpack.c.l.b16 %v647
    %v2814 = vunpack.c.h.b16 %v647
    %v2815 = vunpack.c.l.b16 %v648
    %v2816 = vunpack.c.h.b16 %v648
    %v2817 = vunpack.c.l.b16 %v649
    %v2818 = vunpack.c.h.b16 %v649
    %v2819 = vunpack.c.l.b16 %v650
    %v2820 = vunpack.c.h.b16 %v650
    %v2821 = vunpack.c.l.b16 %v651
    %v2822 = vunpack.c.h.b16 %v651
    %v2823 = vunpack.c.l.b16 %v652
    %v2824 = vunpack.c.h.b16 %v652
    %v2825 = vunpack.c.l.b16 %v653
    %v2826 = vunpack.c.h.b16 %v653
    %v2827 = vunpack.c.l.b16 %v654
    %v2828 = vunpack.c.h.b16 %v654
    %v2829 = vunpack.c.l.b16 %v655
    %v2830 = vunpack.c.h.b16 %v655
    %v2831 = vunpack.c.l.b16 %v656
    %v2832 = vunpack.c.h.b16 %v656
    %v2833 = vunpack.c.l.b16 %v657
    %v2834 = vunpack.c.h.b16 %v657
    %v2835 = vunpack.c.l.b16 %v658
    %v2836 = vunpack.c.h.b16 %v658
    %v2837 = vunpack.c.l.b16 %v659
    %v2838 = vunpack.c.h.b16 %v659
    %v2839 = vunpack.c.l.b16 %v660
    %v2840 = vunpack.c.h.b16 %v660
    %v2841 = vunpack.c.l.b16 %v661
    %v2842 = vunpack.c.h.b16 %v661
    %v2843 = vunpack.c.l.b16 %v662
    %v2844 = vunpack.c.h.b16 %v662
    %v2845 = vunpack.c.l.b16 %v663
    %v2846 = vunpack.c.h.b16 %v663
    %v2847 = vunpack.c.l.b16 %v664
    %v2848 = vunpack.c.h.b16 %v664
    %v2849 = vunpack.c.l.b16 %v665
    %v2850 = vunpack.c.h.b16 %v665
    %v2851 = vunpack.c.l.b16 %v666
    %v2852 = vunpack.c.h.b16 %v666
    %v2853 = vunpack.c.l.b16 %v667
    %v2854 = vunpack.c.l.b16 %v668
    %v2855 = vunpack.c.h.b16 %v668
    %v2856 = vunpack.c.l.b16 %v669
    %v2857 = vunpack.c.h.b16 %v669
    %v2858 = vunpack.c.l.b16 %v670
    %v2859 = vunpack.c.h.b16 %v670
    %v2860 = vunpack.c.l.b16 %v671
    %v2861 = vunpack.c.h.b16 %v671
    %v2862 = vunpack.c.l.b16 %v672
    %v2863 = vunpack.c.h.b16 %v672
    %v2864 = vunpack.c.l.b16 %v673
    %v2865 = vunpack.c.h.b16 %v673
    %v2866 = vunpack.c.l.b16 %v674
    %v2867 = vunpack.c.h.b16 %v674
    %v2868 = vunpack.c.l.b16 %v675
    %v2869 = vunpack.c.h.b16 %v675
    %v2870 = vunpack.c.l.b16 %v676
    %v2871 = vunpack.c.h.b16 %v676
    %v2872 = vunpack.c.l.b16 %v677
    %v2873 = vunpack.c.h.b16 %v677
    %v2874 = vunpack.c.l.b16 %v678
    %v2875 = vunpack.c.h.b16 %v678
    %v2876 = vunpack.c.l.b16 %v679
    %v2877 = vunpack.c.h.b16 %v679
    %v2878 = vunpack.c.l.b16 %v680
    %v2879 = vunpack.c.h.b16 %v680
    %v2880 = vunpack.c.l.b16 %v681
    %v2881 = vunpack.c.h.b16 %v681
    %v2882 = vunpack.c.l.b16 %v682
    %v2883 = vunpack.c.h.b16 %v682
    %v2884 = vunpack.c.l.b16 %v683
    %v2885 = vunpack.c.h.b16 %v683
    %v2886 = vunpack.c.l.b16 %v684
    %v2887 = vunpack.c.h.b16 %v684
    %v2888 = vunpack.c.l.b16 %v685
    %v2889 = vunpack.c.h.b16 %v685
    %v2890 = vunpack.c.l.b16 %v686
    %v2891 = vunpack.c.h.b16 %v686
    %v2892 = vunpack.c.l.b16 %v687
    %v2893 = vunpack.c.h.b16 %v687
    %v2894 = vunpack.c.l.b16 %v688
    %v2895 = vunpack.c.h.b16 %v688
    %v2896 = vunpack.c.l.b16 %v689
    %v2897 = vunpack.c.h.b16 %v689
    %v2898 = vunpack.c.l.b16 %v690
    %v2899 = vunpack.c.h.b16 %v690
    %v2900 = vunpack.c.l.b16 %v691
    %v2901 = vunpack.c.h.b16 %v691
    %v2902 = vunpack.c.l.b16 %v692
    %v2903 = vunpack.c.l.b16 %v693
    %v2904 = vunpack.c.h.b16 %v693
    %v2905 = vunpack.c.l.b16 %v694
    %v2906 = vunpack.c.h.b16 %v694
    %v2907 = vunpack.c.l.b16 %v695
    %v2908 = vunpack.c.h.b16 %v695
    %v2909 = vunpack.c.l.b16 %v696
    %v2910 = vunpack.c.h.b16 %v696
    %v2911 = vunpack.c.l.b16 %v697
    %v2912 = vunpack.c.h.b16 %v697
    %v2913 = vunpack.c.l.b16 %v698
    %v2914 = vunpack.c.h.b16 %v698
    %v2915 = vunpack.c.l.b16 %v699
    %v2916 = vunpack.c.h.b16 %v699
    %v2917 = vunpack.c.l.b16 %v700
    %v2918 = vunpack.c.h.b16 %v700
    %v2919 = vunpack.c.l.b16 %v701
    %v2920 = vunpack.c.h.b16 %v701
    %v2921 = vunpack.c.l.b16 %v702
    %v2922 = vunpack.c.h.b16 %v702
    %v2923 = vunpack.c.l.b16 %v703
    %v2924 = vunpack.c.h.b16 %v703
    %v2925 = vunpack.c.l.b16 %v704
    %v2926 = vunpack.c.h.b16 %v704
    %v2927 = vunpack.c.l.b16 %v705
    %v2928 = vunpack.c.h.b16 %v705
    %v2929 = vunpack.c.l.b16 %v706
    %v2930 = vunpack.c.h.b16 %v706
    %v2931 = vunpack.c.l.b16 %v707
    %v2932 = vunpack.c.h.b16 %v707
    %v2933 = vunpack.c.l.b16 %v708
    %v2934 = vunpack.c.h.b16 %v708
    %v2935 = vunpack.c.l.b16 %v709
    %v2936 = vunpack.c.h.b16 %v709
    %v2937 = vunpack.c.l.b16 %v710
    %v2938 = vunpack.c.h.b16 %v710
    %v2939 = vunpack.c.l.b16 %v711
    %v2940 = vunpack.c.h.b16 %v711
    %v2941 = vunpack.c.l.b16 %v712
    %v2942 = vunpack.c.h.b16 %v712
    %v2943 = vunpack.c.l.b16 %v713
    %v2944 = vunpack.c.h.b16 %v713
    %v2945 = vunpack.c.l.b16 %v714
    %v2946 = vunpack.c.h.b16 %v714
    %v2947 = vunpack.c.l.b16 %v715
    %v2948 = vunpack.c.h.b16 %v715
    %v2949 = vunpack.c.l.b16 %v716
    %v2950 = vunpack.c.h.b16 %v716
    %v2951 = vunpack.c.l.b16 %v717
    %v2952 = vunpack.c.l.b16 %v718
    %v2953 = vunpack.c.h.b16 %v718
    %v2954 = vunpack.c.l.b16 %v719
    %v2955 = vunpack.c.h.b16 %v719
    %v2956 = vunpack.c.l.b16 %v720
    %v2957 = vunpack.c.h.b16 %v720
    %v2958 = vunpack.c.l.b16 %v721
    %v2959 = vunpack.c.h.b16 %v721
    %v2960 = vunpack.c.l.b16 %v722
    %v2961 = vunpack.c.h.b16 %v722
    %v2962 = vunpack.c.l.b16 %v723
    %v2963 = vunpack.c.h.b16 %v723
    %v2964 = vunpack.c.l.b16 %v724
    %v2965 = vunpack.c.h.b16 %v724
    %v2966 = vunpack.c.l.b16 %v725
    %v2967 = vunpack.c.h.b16 %v725
    %v2968 = vunpack.c.l.b16 %v726
    %v2969 = vunpack.c.h.b16 %v726
    %v2970 = vunpack.c.l.b16 %v727
    %v2971 = vunpack.c.h.b16 %v727
    %v2972 = vunpack.c.l.b16 %v728
    %v2973 = vunpack.c.h.b16 %v728
    %v2974 = vunpack.c.l.b16 %v729
    %v2975 = vunpack.c.h.b16 %v729
    %v2976 = vunpack.c.l.b16 %v730
    %v2977 = vunpack.c.h.b16 %v730
    %v2978 = vunpack.c.l.b16 %v731
    %v2979 = vunpack.c.h.b16 %v731
    %v2980 = vunpack.c.l.b16 %v732
    %v2981 = vunpack.c.h.b16 %v732
    %v2982 = vunpack.c.l.b16 %v733
    %v2983 = vunpack.c.h.b16 %v733
    %v2984 = vunpack.c.l.b16 %v734
    %v2985 = vunpack.c.h.b16 %v734
    %v2986 = vunpack.c.l.b16 %v735
    %v2987 = vunpack.c.h.b16 %v735
    %v2988 = vunpack.c.l.b16 %v736
    %v2989 = vunpack.c.h.b16 %v736
    %v2990 = vunpack.c.l.b16 %v737
    %v2991 = vunpack.c.h.b16 %v737
    %v2992 = vunpack.c.l.b16 %v738
    %v2993 = vunpack.c.h.b16 %v738
    %v2994 = vunpack.c.l.b16 %v739
    %v2995 = vunpack.c.h.b16 %v739
    %v2996 = vunpack.c.l.b16 %v740
    %v2997 = vunpack.c.h.b16 %v740
    %v2998 = vunpack.c.l.b16 %v741
    %v2999 = vunpack.c.h.b16 %v741
    %v3000 = vunpack.c.l.b16 %v742
    %v3001 = vunpack.c.l.b16 %v743
    %v3002 = vunpack.c.h.b16 %v743
    %v3003 = vunpack.c.l.b16 %v744
    %v3004 = vunpack.c.h.b16 %v744
    %v3005 = vunpack.c.l.b16 %v745
    %v3006 = vunpack.c.h.b16 %v745
    %v3007 = vunpack.c.l.b16 %v746
    %v3008 = vunpack.c.h.b16 %v746
    %v3009 = vunpack.c.l.b16 %v747
    %v3010 = vunpack.c.h.b16 %v747
    %v3011 = vunpack.c.l.b16 %v748
    %v3012 = vunpack.c.h.b16 %v748
    %v3013 = vunpack.c.l.b16 %v749
    %v3014 = vunpack.c.h.b16 %v749
    %v3015 = vunpack.c.l.b16 %v750
    %v3016 = vunpack.c.h.b16 %v750
    %v3017 = vunpack.c.l.b16 %v751
    %v3018 = vunpack.c.h.b16 %v751
    %v3019 = vunpack.c.l.b16 %v752
    %v3020 = vunpack.c.h.b16 %v752
    %v3021 = vunpack.c.l.b16 %v753
    %v3022 = vunpack.c.h.b16 %v753
    %v3023 = vunpack.c.l.b16 %v754
    %v3024 = vunpack.c.h.b16 %v754
    %v3025 = vunpack.c.l.b16 %v755
    %v3026 = vunpack.c.h.b16 %v755
    %v3027 = vunpack.c.l.b16 %v756
    %v3028 = vunpack.c.h.b16 %v756
    %v3029 = vunpack.c.l.b16 %v757
    %v3030 = vunpack.c.h.b16 %v757
    %v3031 = vunpack.c.l.b16 %v758
    %v3032 = vunpack.c.h.b16 %v758
    %v3033 = vunpack.c.l.b16 %v759
    %v3034 = vunpack.c.h.b16 %v759
    %v3035 = vunpack.c.l.b16 %v760
    %v3036 = vunpack.c.h.b16 %v760
    %v3037 = vunpack.c.l.b16 %v761
    %v3038 = vunpack.c.h.b16 %v761
    %v3039 = vunpack.c.l.b16 %v762
    %v3040 = vunpack.c.h.b16 %v762
    %v3041 = vunpack.c.l.b16 %v763
    %v3042 = vunpack.c.h.b16 %v763
    %v3043 = vunpack.c.l.b16 %v764
    %v3044 = vunpack.c.h.b16 %v764
    %v3045 = vunpack.c.l.b16 %v765
    %v3046 = vunpack.c.h.b16 %v765
    %v3047 = vunpack.c.l.b16 %v766
    %v3048 = vunpack.c.h.b16 %v766
    %v3049 = vunpack.c.l.b16 %v767
    %v3050 = vunpack.c.l.b16 %v768
    %v3051 = vunpack.c.h.b16 %v768
    %v3052 = vunpack.c.l.b16 %v769
    %v3053 = vunpack.c.h.b16 %v769
    %v3054 = vunpack.c.l.b16 %v770
    %v3055 = vunpack.c.h.b16 %v770
    %v3056 = vunpack.c.l.b16 %v771
    %v3057 = vunpack.c.h.b16 %v771
    %v3058 = vunpack.c.l.b16 %v772
    %v3059 = vunpack.c.h.b16 %v772
    %v3060 = vunpack.c.l.b16 %v773
    %v3061 = vunpack.c.h.b16 %v773
    %v3062 = vunpack.c.l.b16 %v774
    %v3063 = vunpack.c.h.b16 %v774
    %v3064 = vunpack.c.l.b16 %v775
    %v3065 = vunpack.c.h.b16 %v775
    %v3066 = vunpack.c.l.b16 %v776
    %v3067 = vunpack.c.h.b16 %v776
    %v3068 = vunpack.c.l.b16 %v777
    %v3069 = vunpack.c.h.b16 %v777
    %v3070 = vunpack.c.l.b16 %v778
    %v3071 = vunpack.c.h.b16 %v778
    %v3072 = vunpack.c.l.b16 %v779
    %v3073 = vunpack.c.h.b16 %v779
    %v3074 = vunpack.c.l.b16 %v780
    %v3075 = vunpack.c.h.b16 %v780
    %v3076 = vunpack.c.l.b16 %v781
    %v3077 = vunpack.c.h.b16 %v781
    %v3078 = vunpack.c.l.b16 %v782
    %v3079 = vunpack.c.h.b16 %v782
    %v3080 = vunpack.c.l.b16 %v783
    %v3081 = vunpack.c.h.b16 %v783
    %v3082 = vunpack.c.l.b16 %v784
    %v3083 = vunpack.c.h.b16 %v784
    %v3084 = vunpack.c.l.b16 %v785
    %v3085 = vunpack.c.h.b16 %v785
    %v3086 = vunpack.c.l.b16 %v786
    %v3087 = vunpack.c.h.b16 %v786
    %v3088 = vunpack.c.l.b16 %v787
    %v3089 = vunpack.c.h.b16 %v787
    %v3090 = vunpack.c.l.b16 %v788
    %v3091 = vunpack.c.h.b16 %v788
    %v3092 = vunpack.c.l.b16 %v789
    %v3093 = vunpack.c.h.b16 %v789
    %v3094 = vunpack.c.l.b16 %v790
    %v3095 = vunpack.c.h.b16 %v790
    %v3096 = vunpack.c.l.b16 %v791
    %v3097 = vunpack.c.h.b16 %v791
    %v3098 = vunpack.c.l.b16 %v792
    %v3099 = vunpack.c.l.b16 %v793
    %v3100 = vunpack.c.h.b16 %v793
    %v3101 = vunpack.c.l.b16 %v794
    %v3102 = vunpack.c.h.b16 %v794
    %v3103 = vunpack.c.l.b16 %v795
    %v3104 = vunpack.c.h.b16 %v795
    %v3105 = vunpack.c.l.b16 %v796
    %v3106 = vunpack.c.h.b16 %v796
    %v3107 = vunpack.c.l.b16 %v797
    %v3108 = vunpack.c.h.b16 %v797
    %v3109 = vunpack.c.l.b16 %v798
    %v3110 = vunpack.c.h.b16 %v798
    %v3111 = vunpack.c.l.b16 %v799
    %v3112 = vunpack.c.h.b16 %v799
    %v3113 = vunpack.c.l.b16 %v800
    %v3114 = vunpack.c.h.b16 %v800
    %v3115 = vunpack.c.l.b16 %v801
    %v3116 = vunpack.c.h.b16 %v801
    %v3117 = vunpack.c.l.b16 %v802
    %v3118 = vunpack.c.h.b16 %v802
    %v3119 = vunpack.c.l.b16 %v803
    %v3120 = vunpack.c.h.b16 %v803
    %v3121 = vunpack.c.l.b16 %v804
    %v3122 = vunpack.c.h.b16 %v804
    %v3123 = vunpack.c.l.b16 %v805
    %v3124 = vunpack.c.h.b16 %v805
    %v3125 = vunpack.c.l.b16 %v806
    %v3126 = vunpack.c.h.b16 %v806
    %v3127 = vunpack.c.l.b16 %v807
    %v3128 = vunpack.c.h.b16 %v807
    %v3129 = vunpack.c.l.b16 %v808
    %v3130 = vunpack.c.h.b16 %v808
    %v3131 = vunpack.c.l.b16 %v809
    %v3132 = vunpack.c.h.b16 %v809
    %v3133 = vunpack.c.l.b16 %v810
    %v3134 = vunpack.c.h.b16 %v810
    %v3135 = vunpack.c.l.b16 %v811
    %v3136 = vunpack.c.h.b16 %v811
    %v3137 = vunpack.c.l.b16 %v812
    %v3138 = vunpack.c.h.b16 %v812
    %v3139 = vunpack.c.l.b16 %v813
    %v3140 = vunpack.c.h.b16 %v813
    %v3141 = vunpack.c.l.b16 %v814
    %v3142 = vunpack.c.h.b16 %v814
    %v3143 = vunpack.c.l.b16 %v815
    %v3144 = vunpack.c.h.b16 %v815
    %v3145 = vunpack.c.l.b16 %v816
    %v3146 = vunpack.c.h.b16 %v816
    %v3147 = vunpack.c.l.b16 %v817
    %v3148 = vunpack.c.l.b16 %v818
    %v3149 = vunpack.c.h.b16 %v818
    %v3150 = vunpack.c.l.b16 %v819
    %v3151 = vunpack.c.h.b16 %v819
    %v3152 = vunpack.c.l.b16 %v820
    %v3153 = vunpack.c.h.b16 %v820
    %v3154 = vunpack.c.l.b16 %v821
    %v3155 = vunpack.c.h.b16 %v821
    %v3156 = vunpack.c.l.b16 %v822
    %v3157 = vunpack.c.h.b16 %v822
    %v3158 = vunpack.c.l.b16 %v823
    %v3159 = vunpack.c.h.b16 %v823
    %v3160 = vunpack.c.l.b16 %v824
    %v3161 = vunpack.c.h.b16 %v824
    %v3162 = vunpack.c.l.b16 %v825
    %v3163 = vunpack.c.h.b16 %v825
    %v3164 = vunpack.c.l.b16 %v826
    %v3165 = vunpack.c.h.b16 %v826
    %v3166 = vunpack.c.l.b16 %v827
    %v3167 = vunpack.c.h.b16 %v827
    %v3168 = vunpack.c.l.b16 %v828
    %v3169 = vunpack.c.h.b16 %v828
    %v3170 = vunpack.c.l.b16 %v829
    %v3171 = vunpack.c.h.b16 %v829
    %v3172 = vunpack.c.l.b16 %v830
    %v3173 = vunpack.c.h.b16 %v830
    %v3174 = vunpack.c.l.b16 %v831
    %v3175 = vunpack.c.h.b16 %v831
    %v3176 = vunpack.c.l.b16 %v832
    %v3177 = vunpack.c.h.b16 %v832
    %v3178 = vunpack.c.l.b16 %v833
    %v3179 = vunpack.c.h.b16 %v833
    %v3180 = vunpack.c.l.b16 %v834
    %v3181 = vunpack.c.h.b16 %v834
    %v3182 = vunpack.c.l.b16 %v835
    %v3183 = vunpack.c.h.b16 %v835
    %v3184 = vunpack.c.l.b16 %v836
    %v3185 = vunpack.c.h.b16 %v836
    %v3186 = vunpack.c.l.b16 %v837
    %v3187 = vunpack.c.h.b16 %v837
    %v3188 = vunpack.c.l.b16 %v838
    %v3189 = vunpack.c.h.b16 %v838
    %v3190 = vunpack.c.l.b16 %v839
    %v3191 = vunpack.c.h.b16 %v839
    %v3192 = vunpack.c.l.b16 %v840
    %v3193 = vunpack.c.h.b16 %v840
    %v3194 = vunpack.c.l.b16 %v841
    %v3195 = vunpack.c.h.b16 %v841
    %v3196 = vunpack.c.l.b16 %v842
    %v3197 = vunpack.c.l.b16 %v843
    %v3198 = vunpack.c.h.b16 %v843
    %v3199 = vunpack.c.l.b16 %v844
    %v3200 = vunpack.c.h.b16 %v844
    %v3201 = vunpack.c.l.b16 %v845
    %v3202 = vunpack.c.h.b16 %v845
    %v3203 = vunpack.c.l.b16 %v846
    %v3204 = vunpack.c.h.b16 %v846
    %v3205 = vunpack.c.l.b16 %v847
    %v3206 = vunpack.c.h.b16 %v847
    %v3207 = vunpack.c.l.b16 %v848
    %v3208 = vunpack.c.h.b16 %v848
    %v3209 = vunpack.c.l.b16 %v849
    %v3210 = vunpack.c.h.b16 %v849
    %v3211 = vunpack.c.l.b16 %v850
    %v3212 = vunpack.c.h.b16 %v850
    %v3213 = vunpack.c.l.b16 %v851
    %v3214 = vunpack.c.h.b16 %v851
    %v3215 = vunpack.c.l.b16 %v852
    %v3216 = vunpack.c.h.b16 %v852
    %v3217 = vunpack.c.l.b16 %v853
    %v3218 = vunpack.c.h.b16 %v853
    %v3219 = vunpack.c.l.b16 %v854
    %v3220 = vunpack.c.h.b16 %v854
    %v3221 = vunpack.c.l.b16 %v855
    %v3222 = vunpack.c.h.b16 %v855
    %v3223 = vunpack.c.l.b16 %v856
    %v3224 = vunpack.c.h.b16 %v856
    %v3225 = vunpack.c.l.b16 %v857
    %v3226 = vunpack.c.h.b16 %v857
    %v3227 = vunpack.c.l.b16 %v858
    %v3228 = vunpack.c.h.b16 %v858
    %v3229 = vunpack.c.l.b16 %v859
    %v3230 = vunpack.c.h.b16 %v859
    %v3231 = vunpack.c.l.b16 %v860
    %v3232 = vunpack.c.h.b16 %v860
    %v3233 = vunpack.c.l.b16 %v861
    %v3234 = vunpack.c.h.b16 %v861
    %v3235 = vunpack.c.l.b16 %v862
    %v3236 = vunpack.c.h.b16 %v862
    %v3237 = vunpack.c.l.b16 %v863
    %v3238 = vunpack.c.h.b16 %v863
    %v3239 = vunpack.c.l.b16 %v864
    %v3240 = vunpack.c.h.b16 %v864
    %v3241 = vunpack.c.l.b16 %v865
    %v3242 = vunpack.c.h.b16 %v865
    %v3243 = vunpack.c.l.b16 %v866
    %v3244 = vunpack.c.h.b16 %v866
    %v3245 = vunpack.c.l.b16 %v867
    %v3246 = vpack.c.b16 %v1727, %v1678
    %v3247 = vpack.c.b16 %v1728, %v1679
    %v3248 = vpack.c.b16 %v1729, %v1680
    %v3249 = vpack.c.b16 %v1730, %v1681
    %v3250 = vpack.c.b16 %v1731, %v1682
    %v3251 = vpack.c.b16 %v1732, %v1683
    %v3252 = vpack.c.b16 %v1733, %v1684
    %v3253 = vpack.c.b16 %v1734, %v1685
    %v3254 = vpack.c.b16 %v1735, %v1686
    %v3255 = vpack.c.b16 %v1736, %v1687
    %v3256 = vpack.c.b16 %v1737, %v1688
    %v3257 = vpack.c.b16 %v1738, %v1689
    %v3258 = vpack.c.b16 %v1739, %v1690
    %v3259 = vpack.c.b16 %v1740, %v1691
    %v3260 = vpack.c.b16 %v1741, %v1692
    %v3261 = vpack.c.b16 %v1742, %v1693
    %v3262 = vpack.c.b16 %v1743, %v1694
    %v3263 = vpack.c.b16 %v1744, %v1695
    %v3264 = vpack.c.b16 %v1745, %v1696
    %v3265 = vpack.c.b16 %v1746, %v1697
    %v3266 = vpack.c.b16 %v1747, %v1698
    %v3267 = vpack.c.b16 %v1748, %v1699
    %v3268 = vpack.c.b16 %v1749, %v1700
    %v3269 = vpack.c.b16 %v1750, %v1701
    %v3270 = vpack.c.b16 %v1751, %v1702
    %v3271 = vpack.c.b16 %v1752, %v1703
    %v3272 = vpack.c.b16 %v1753, %v1704
    %v3273 = vpack.c.b16 %v1754, %v1705
    %v3274 = vpack.c.b16 %v1755, %v1706
    %v3275 = vpack.c.b16 %v1756, %v1707
    %v3276 = vpack.c.b16 %v1757, %v1708
    %v3277 = vpack.c.b16 %v1758, %v1709
    %v3278 = vpack.c.b16 %v1759, %v1710
    %v3279 = vpack.c.b16 %v1760, %v1711
    %v3280 = vpack.c.b16 %v1761, %v1712
    %v3281 = vpack.c.b16 %v1762, %v1713
    %v3282 = vpack.c.b16 %v1763, %v1714
    %v3283 = vpack.c.b16 %v1764, %v1715
    %v3284 = vpack.c.b16 %v1765, %v1716
    %v3285 = vpack.c.b16 %v1766, %v1717
    %v3286 = vpack.c.b16 %v1767, %v1718
    %v3287 = vpack.c.b16 %v1768, %v1719
    %v3288 = vpack.c.b16 %v1769, %v1720
    %v3289 = vpack.c.b16 %v1770, %v1721
    %v3290 = vpack.c.b16 %v1771, %v1722
    %v3291 = vpack.c.b16 %v1772, %v1723
    %v3292 = vpack.c.b16 %v1773, %v1724
    %v3293 = vpack.c.b16 %v1774, %v1725
    %v3294 = vpack.c.b16 %v1775, %v1726
    %v3295 = vpack.c.b16 %v1825, %v1776
    %v3296 = vpack.c.b16 %v1826, %v1777
    %v3297 = vpack.c.b16 %v1827, %v1778
    %v3298 = vpack.c.b16 %v1828, %v1779
    %v3299 = vpack.c.b16 %v1829, %v1780
    %v3300 = vpack.c.b16 %v1830, %v1781
    %v3301 = vpack.c.b16 %v1831, %v1782
    %v3302 = vpack.c.b16 %v1832, %v1783
    %v3303 = vpack.c.b16 %v1833, %v1784
    %v3304 = vpack.c.b16 %v1834, %v1785
    %v3305 = vpack.c.b16 %v1835, %v1786
    %v3306 = vpack.c.b16 %v1836, %v1787
    %v3307 = vpack.c.b16 %v1837, %v1788
    %v3308 = vpack.c.b16 %v1838, %v1789
    %v3309 = vpack.c.b16 %v1839, %v1790
    %v3310 = vpack.c.b16 %v1840, %v1791
    %v3311 = vpack.c.b16 %v1841, %v1792
    %v3312 = vpack.c.b16 %v1842, %v1793
    %v3313 = vpack.c.b16 %v1843, %v1794
    %v3314 = vpack.c.b16 %v1844, %v1795
    %v3315 = vpack.c.b16 %v1845, %v1796
    %v3316 = vpack.c.b16 %v1846, %v1797
    %v3317 = vpack.c.b16 %v1847, %v1798
    %v3318 = vpack.c.b16 %v1848, %v1799
    %v3319 = vpack.c.b16 %v1849, %v1800
    %v3320 = vpack.c.b16 %v1850, %v1801
    %v3321 = vpack.c.b16 %v1851, %v1802
    %v3322 = vpack.c.b16 %v1852, %v1803
    %v3323 = vpack.c.b16 %v1853, %v1804
    %v3324 = vpack.c.b16 %v1854, %v1805
    %v3325 = vpack.c.b16 %v1855, %v1806
    %v3326 = vpack.c.b16 %v1856, %v1807
    %v3327 = vpack.c.b16 %v1857, %v1808
    %v3328 = vpack.c.b16 %v1858, %v1809
    %v3329 = vpack.c.b16 %v1859, %v1810
    %v3330 = vpack.c.b16 %v1860, %v1811
    %v3331 = vpack.c.b16 %v1861, %v1812
    %v3332 = vpack.c.b16 %v1862, %v1813
    %v3333 = vpack.c.b16 %v1863, %v1814
    %v3334 = vpack.c.b16 %v1864, %v1815
    %v3335 = vpack.c.b16 %v1865, %v1816
    %v3336 = vpack.c.b16 %v1866, %v1817
    %v3337 = vpack.c.b16 %v1867, %v1818
    %v3338 = vpack.c.b16 %v1868, %v1819
    %v3339 = vpack.c.b16 %v1869, %v1820
    %v3340 = vpack.c.b16 %v1870, %v1821
    %v3341 = vpack.c.b16 %v1871, %v1822
    %v3342 = vpack.c.b16 %v1872, %v1823
    %v3343 = vpack.c.b16 %v1873, %v1824
    %v3344 = vpack.c.b16 %v1923, %v1874
    %v3345 = vpack.c.b16 %v1924, %v1875
    %v3346 = vpack.c.b16 %v1925, %v1876
    %v3347 = vpack.c.b16 %v1926, %v1877
    %v3348 = vpack.c.b16 %v1927, %v1878
    %v3349 = vpack.c.b16 %v1928, %v1879
    %v3350 = vpack.c.b16 %v1929, %v1880
    %v3351 = vpack.c.b16 %v1930, %v1881
    %v3352 = vpack.c.b16 %v1931, %v1882
    %v3353 = vpack.c.b16 %v1932, %v1883
    %v3354 = vpack.c.b16 %v1933, %v1884
    %v3355 = vpack.c.b16 %v1934, %v1885
    %v3356 = vpack.c.b16 %v1935, %v1886
    %v3357 = vpack.c.b16 %v1936, %v1887
    %v3358 = vpack.c.b16 %v1937, %v1888
    %v3359 = vpack.c.b16 %v1938, %v1889
    %v3360 = vpack.c.b16 %v1939, %v1890
    %v3361 = vpack.c.b16 %v1940, %v1891
    %v3362 = vpack.c.b16 %v1941, %v1892
    %v3363 = vpack.c.b16 %v1942, %v1893
    %v3364 = vpack.c.b16 %v1943, %v1894
    %v3365 = vpack.c.b16 %v1944, %v1895
    %v3366 = vpack.c.b16 %v1945, %v1896
    %v3367 = vpack.c.b16 %v1946, %v1897
    %v3368 = vpack.c.b16 %v1947, %v1898
    %v3369 = vpack.c.b16 %v1948, %v1899
    %v3370 = vpack.c.b16 %v1949, %v1900
    %v3371 = vpack.c.b16 %v1950, %v1901
    %v3372 = vpack.c.b16 %v1951, %v1902
    %v3373 = vpack.c.b16 %v1952, %v1903
    %v3374 = vpack.c.b16 %v1953, %v1904
    %v3375 = vpack.c.b16 %v1954, %v1905
    %v3376 = vpack.c.b16 %v1955, %v1906
    %v3377 = vpack.c.b16 %v1956, %v1907
    %v3378 = vpack.c.b16 %v1957, %v1908
    %v3379 = vpack.c.b16 %v1958, %v1909
    %v3380 = vpack.c.b16 %v1959, %v1910
    %v3381 = vpack.c.b16 %v1960, %v1911
    %v3382 = vpack.c.b16 %v1961, %v1912
    %v3383 = vpack.c.b16 %v1962, %v1913
    %v3384 = vpack.c.b16 %v1963, %v1914
    %v3385 = vpack.c.b16 %v1964, %v1915
    %v3386 = vpack.c.b16 %v1965, %v1916
    %v3387 = vpack.c.b16 %v1966, %v1917
    %v3388 = vpack.c.b16 %v1967, %v1918
    %v3389 = vpack.c.b16 %v1968, %v1919
    %v3390 = vpack.c.b16 %v1969, %v1920
    %v3391 = vpack.c.b16 %v1970, %v1921
    %v3392 = vpack.c.b16 %v1971, %v1922
    %v3393 = vpack.c.b16 %v2021, %v1972
    %v3394 = vpack.c.b16 %v2022, %v1973
    %v3395 = vpack.c.b16 %v2023, %v1974
    %v3396 = vpack.c.b16 %v2024, %v1975
    %v3397 = vpack.c.b16 %v2025, %v1976
    %v3398 = vpack.c.b16 %v2026, %v1977
    %v3399 = vpack.c.b16 %v2027, %v1978
    %v3400 = vpack.c.b16 %v2028, %v1979
    %v3401 = vpack.c.b16 %v2029, %v1980
    %v3402 = vpack.c.b16 %v2030, %v1981
    %v3403 = vpack.c.b16 %v2031, %v1982
    %v3404 = vpack.c.b16 %v2032, %v1983
    %v3405 = vpack.c.b16 %v2033, %v1984
    %v3406 = vpack.c.b16 %v2034, %v1985
    %v3407 = vpack.c.b16 %v2035, %v1986
    %v3408 = vpack.c.b16 %v2036, %v1987
    %v3409 = vpack.c.b16 %v2037, %v1988
    %v3410 = vpack.c.b16 %v2038, %v1989
    %v3411 = vpack.c.b16 %v2039, %v1990
    %v3412 = vpack.c.b16 %v2040, %v1991
    %v3413 = vpack.c.b16 %v2041, %v1992
    %v3414 = vpack.c.b16 %v2042, %v1993
    %v3415 = vpack.c.b16 %v2043, %v1994
    %v3416 = vpack.c.b16 %v2044, %v1995
    %v3417 = vpack.c.b16 %v2045, %v1996
    %v3418 = vpack.c.b16 %v2046, %v1997
    %v3419 = vpack.c.b16 %v2047, %v1998
    %v3420 = vpack.c.b16 %v2048, %v1999
    %v3421 = vpack.c.b16 %v2049, %v2000
    %v3422 = vpack.c.b16 %v2050, %v2001
    %v3423 = vpack.c.b16 %v2051, %v2002
    %v3424 = vpack.c.b16 %v2052, %v2003
    %v3425 = vpack.c.b16 %v2053, %v2004
    %v3426 = vpack.c.b16 %v2054, %v2005
    %v3427 = vpack.c.b16 %v2055, %v2006
    %v3428 = vpack.c.b16 %v2056, %v2007
    %v3429 = vpack.c.b16 %v2057, %v2008
    %v3430 = vpack.c.b16 %v2058, %v2009
    %v3431 = vpack.c.b16 %v2059, %v2010
    %v3432 = vpack.c.b16 %v2060, %v2011
    %v3433 = vpack.c.b16 %v2061, %v2012
    %v3434 = vpack.c.b16 %v2062, %v2013
    %v3435 = vpack.c.b16 %v2063, %v2014
    %v3436 = vpack.c.b16 %v2064, %v2015
    %v3437 = vpack.c.b16 %v2065, %v2016
    %v3438 = vpack.c.b16 %v2066, %v2017
    %v3439 = vpack.c.b16 %v2067, %v2018
    %v3440 = vpack.c.b16 %v2068, %v2019
    %v3441 = vpack.c.b16 %v2069, %v2020
    %v3442 = vpack.c.b16 %v2119, %v2070
    %v3443 = vpack.c.b16 %v2120, %v2071
    %v3444 = vpack.c.b16 %v2121, %v2072
    %v3445 = vpack.c.b16 %v2122, %v2073
    %v3446 = vpack.c.b16 %v2123, %v2074
    %v3447 = vpack.c.b16 %v2124, %v2075
    %v3448 = vpack.c.b16 %v2125, %v2076
    %v3449 = vpack.c.b16 %v2126, %v2077
    %v3450 = vpack.c.b16 %v2127, %v2078
    %v3451 = vpack.c.b16 %v2128, %v2079
    %v3452 = vpack.c.b16 %v2129, %v2080
    %v3453 = vpack.c.b16 %v2130, %v2081
    %v3454 = vpack.c.b16 %v2131, %v2082
    %v3455 = vpack.c.b16 %v2132, %v2083
    %v3456 = vpack.c.b16 %v2133, %v2084
    %v3457 = vpack.c.b16 %v2134, %v2085
    %v3458 = vpack.c.b16 %v2135, %v2086
    %v3459 = vpack.c.b16 %v2136, %v2087
    %v3460 = vpack.c.b16 %v2137, %v2088
    %v3461 = vpack.c.b16 %v2138, %v2089
    %v3462 = vpack.c.b16 %v2139, %v2090
    %v3463 = vpack.c.b16 %v2140, %v2091
    %v3464 = vpack.c.b16 %v2141, %v2092
    %v3465 = vpack.c.b16 %v2142, %v2093
    %v3466 = vpack.c.b16 %v2143, %v2094
    %v3467 = vpack.c.b16 %v2144, %v2095
    %v3468 = vpack.c.b16 %v2145, %v2096
    %v3469 = vpack.c.b16 %v2146, %v2097
    %v3470 = vpack.c.b16 %v2147, %v2098
    %v3471 = vpack.c.b16 %v2148, %v2099
    %v3472 = vpack.c.b16 %v2149, %v2100
    %v3473 = vpack.c.b16 %v2150, %v2101
    %v3474 = vpack.c.b16 %v2151, %v2102
    %v3475 = vpack.c.b16 %v2152, %v2103
    %v3476 = vpack.c.b16 %v2153, %v2104
    %v3477 = vpack.c.b16 %v2154, %v2105
    %v3478 = vpack.c.b16 %v2155, %v2106
    %v3479 = vpack.c.b16 %v2156, %v2107
    %v3480 = vpack.c.b16 %v2157, %v2108
    %v3481 = vpack.c.b16 %v2158, %v2109
    %v3482 = vpack.c.b16 %v2159, %v2110
    %v3483 = vpack.c.b16 %v2160, %v2111
    %v3484 = vpack.c.b16 %v2161, %v2112
    %v3485 = vpack.c.b16 %v2162, %v2113
    %v3486 = vpack.c.b16 %v2163, %v2114
    %v3487 = vpack.c.b16 %v2164, %v2115
    %v3488 = vpack.c.b16 %v2165, %v2116
    %v3489 = vpack.c.b16 %v2166, %v2117
    %v3490 = vpack.c.b16 %v2167, %v2118
    %v3491 = vpack.c.b16 %v2217, %v2168
    %v3492 = vpack.c.b16 %v2218, %v2169
    %v3493 = vpack.c.b16 %v2219, %v2170
    %v3494 = vpack.c.b16 %v2220, %v2171
    %v3495 = vpack.c.b16 %v2221, %v2172
    %v3496 = vpack.c.b16 %v2222, %v2173
    %v3497 = vpack.c.b16 %v2223, %v2174
    %v3498 = vpack.c.b16 %v2224, %v2175
    %v3499 = vpack.c.b16 %v2225, %v2176
    %v3500 = vpack.c.b16 %v2226, %v2177
    %v3501 = vpack.c.b16 %v2227, %v2178
    %v3502 = vpack.c.b16 %v2228, %v2179
    %v3503 = vpack.c.b16 %v2229, %v2180
    %v3504 = vpack.c.b16 %v2230, %v2181
    %v3505 = vpack.c.b16 %v2231, %v2182
    %v3506 = vpack.c.b16 %v2232, %v2183
    %v3507 = vpack.c.b16 %v2233, %v2184
    %v3508 = vpack.c.b16 %v2234, %v2185
    %v3509 = vpack.c.b16 %v2235, %v2186
    %v3510 = vpack.c.b16 %v2236, %v2187
    %v3511 = vpack.c.b16 %v2237, %v2188
    %v3512 = vpack.c.b16 %v2238, %v2189
    %v3513 = vpack.c.b16 %v2239, %v2190
    %v3514 = vpack.c.b16 %v2240, %v2191
    %v3515 = vpack.c.b16 %v2241, %v2192
    %v3516 = vpack.c.b16 %v2242, %v2193
    %v3517 = vpack.c.b16 %v2243, %v2194
    %v3518 = vpack.c.b16 %v2244, %v2195
    %v3519 = vpack.c.b16 %v2245, %v2196
    %v3520 = vpack.c.b16 %v2246, %v2197
    %v3521 = vpack.c.b16 %v2247, %v2198
    %v3522 = vpack.c.b16 %v2248, %v2199
    %v3523 = vpack.c.b16 %v2249, %v2200
    %v3524 = vpack.c.b16 %v2250, %v2201
    %v3525 = vpack.c.b16 %v2251, %v2202
    %v3526 = vpack.c.b16 %v2252, %v2203
    %v3527 = vpack.c.b16 %v2253, %v2204
    %v3528 = vpack.c.b16 %v2254, %v2205
    %v3529 = vpack.c.b16 %v2255, %v2206
    %v3530 = vpack.c.b16 %v2256, %v2207
    %v3531 = vpack.c.b16 %v2257, %v2208
    %v3532 = vpack.c.b16 %v2258, %v2209
    %v3533 = vpack.c.b16 %v2259, %v2210
    %v3534 = vpack.c.b16 %v2260, %v2211
    %v3535 = vpack.c.b16 %v2261, %v2212
    %v3536 = vpack.c.b16 %v2262, %v2213
    %v3537 = vpack.c.b16 %v2263, %v2214
    %v3538 = vpack.c.b16 %v2264, %v2215
    %v3539 = vpack.c.b16 %v2265, %v2216
    %v3540 = vpack.c.b16 %v2315, %v2266
    %v3541 = vpack.c.b16 %v2316, %v2267
    %v3542 = vpack.c.b16 %v2317, %v2268
    %v3543 = vpack.c.b16 %v2318, %v2269
    %v3544 = vpack.c.b16 %v2319, %v2270
    %v3545 = vpack.c.b16 %v2320, %v2271
    %v3546 = vpack.c.b16 %v2321, %v2272
    %v3547 = vpack.c.b16 %v2322, %v2273
    %v3548 = vpack.c.b16 %v2323, %v2274
    %v3549 = vpack.c.b16 %v2324, %v2275
    %v3550 = vpack.c.b16 %v2325, %v2276
    %v3551 = vpack.c.b16 %v2326, %v2277
    %v3552 = vpack.c.b16 %v2327, %v2278
    %v3553 = vpack.c.b16 %v2328, %v2279
    %v3554 = vpack.c.b16 %v2329, %v2280
    %v3555 = vpack.c.b16 %v2330, %v2281
    %v3556 = vpack.c.b16 %v2331, %v2282
    %v3557 = vpack.c.b16 %v2332, %v2283
    %v3558 = vpack.c.b16 %v2333, %v2284
    %v3559 = vpack.c.b16 %v2334, %v2285
    %v3560 = vpack.c.b16 %v2335, %v2286
    %v3561 = vpack.c.b16 %v2336, %v2287
    %v3562 = vpack.c.b16 %v2337, %v2288
    %v3563 = vpack.c.b16 %v2338, %v2289
    %v3564 = vpack.c.b16 %v2339, %v2290
    %v3565 = vpack.c.b16 %v2340, %v2291
    %v3566 = vpack.c.b16 %v2341, %v2292
    %v3567 = vpack.c.b16 %v2342, %v2293
    %v3568 = vpack.c.b16 %v2343, %v2294
    %v3569 = vpack.c.b16 %v2344, %v2295
    %v3570 = vpack.c.b16 %v2345, %v2296
    %v3571 = vpack.c.b16 %v2346, %v2297
    %v3572 = vpack.c.b16 %v2347, %v2298
    %v3573 = vpack.c.b16 %v2348, %v2299
    %v3574 = vpack.c.b16 %v2349, %v2300
    %v3575 = vpack.c.b16 %v2350, %v2301
    %v3576 = vpack.c.b16 %v2351, %v2302
    %v3577 = vpack.c.b16 %v2352, %v2303
    %v3578 = vpack.c.b16 %v2353, %v2304
    %v3579 = vpack.c.b16 %v2354, %v2305
    %v3580 = vpack.c.b16 %v2355, %v2306
    %v3581 = vpack.c.b16 %v2356, %v2307
    %v3582 = vpack.c.b16 %v2357, %v2308
    %v3583 = vpack.c.b16 %v2358, %v2309
    %v3584 = vpack.c.b16 %v2359, %v2310
    %v3585 = vpack.c.b16 %v2360, %v2311
    %v3586 = vpack.c.b16 %v2361, %v2312
    %v3587 = vpack.c.b16 %v2362, %v2313
    %v3588 = vpack.c.b16 %v2363, %v2314
    %v3589 = vpack.c.b16 %v2413, %v2364
    %v3590 = vpack.c.b16 %v2414, %v2365
    %v3591 = vpack.c.b16 %v2415, %v2366
    %v3592 = vpack.c.b16 %v2416, %v2367
    %v3593 = vpack.c.b16 %v2417, %v2368
    %v3594 = vpack.c.b16 %v2418, %v2369
    %v3595 = vpack.c.b16 %v2419, %v2370
    %v3596 = vpack.c.b16 %v2420, %v2371
    %v3597 = vpack.c.b16 %v2421, %v2372
    %v3598 = vpack.c.b16 %v2422, %v2373
    %v3599 = vpack.c.b16 %v2423, %v2374
    %v3600 = vpack.c.b16 %v2424, %v2375
    %v3601 = vpack.c.b16 %v2425, %v2376
    %v3602 = vpack.c.b16 %v2426, %v2377
    %v3603 = vpack.c.b16 %v2427, %v2378
    %v3604 = vpack.c.b16 %v2428, %v2379
    %v3605 = vpack.c.b16 %v2429, %v2380
    %v3606 = vpack.c.b16 %v2430, %v2381
    %v3607 = vpack.c.b16 %v2431, %v2382
    %v3608 = vpack.c.b16 %v2432, %v2383
    %v3609 = vpack.c.b16 %v2433, %v2384
    %v3610 = vpack.c.b16 %v2434, %v2385
    %v3611 = vpack.c.b16 %v2435, %v2386
    %v3612 = vpack.c.b16 %v2436, %v2387
    %v3613 = vpack.c.b16 %v2437, %v2388
    %v3614 = vpack.c.b16 %v2438, %v2389
    %v3615 = vpack.c.b16 %v2439, %v2390
    %v3616 = vpack.c.b16 %v2440, %v2391
    %v3617 = vpack.c.b16 %v2441, %v2392
    %v3618 = vpack.c.b16 %v2442, %v2393
    %v3619 = vpack.c.b16 %v2443, %v2394
    %v3620 = vpack.c.b16 %v2444, %v2395
    %v3621 = vpack.c.b16 %v2445, %v2396
    %v3622 = vpack.c.b16 %v2446, %v2397
    %v3623 = vpack.c.b16 %v2447, %v2398
    %v3624 = vpack.c.b16 %v2448, %v2399
    %v3625 = vpack.c.b16 %v2449, %v2400
    %v3626 = vpack.c.b16 %v2450, %v2401
    %v3627 = vpack.c.b16 %v2451, %v2402
    %v3628 = vpack.c.b16 %v2452, %v2403
    %v3629 = vpack.c.b16 %v2453, %v2404
    %v3630 = vpack.c.b16 %v2454, %v2405
    %v3631 = vpack.c.b16 %v2455, %v2406
    %v3632 = vpack.c.b16 %v2456, %v2407
    %v3633 = vpack.c.b16 %v2457, %v2408
    %v3634 = vpack.c.b16 %v2458, %v2409
    %v3635 = vpack.c.b16 %v2459, %v2410
    %v3636 = vpack.c.b16 %v2460, %v2411
    %v3637 = vpack.c.b16 %v2461, %v2412
    %v3638 = vpack.c.b16 %v2511, %v2462
    %v3639 = vpack.c.b16 %v2512, %v2463
    %v3640 = vpack.c.b16 %v2513, %v2464
    %v3641 = vpack.c.b16 %v2514, %v2465
    %v3642 = vpack.c.b16 %v2515, %v2466
    %v3643 = vpack.c.b16 %v2516, %v2467
    %v3644 = vpack.c.b16 %v2517, %v2468
    %v3645 = vpack.c.b16 %v2518, %v2469
    %v3646 = vpack.c.b16 %v2519, %v2470
    %v3647 = vpack.c.b16 %v2520, %v2471
    %v3648 = vpack.c.b16 %v2521, %v2472
    %v3649 = vpack.c.b16 %v2522, %v2473
    %v3650 = vpack.c.b16 %v2523, %v2474
    %v3651 = vpack.c.b16 %v2524, %v2475
    %v3652 = vpack.c.b16 %v2525, %v2476
    %v3653 = vpack.c.b16 %v2526, %v2477
    %v3654 = vpack.c.b16 %v2527, %v2478
    %v3655 = vpack.c.b16 %v2528, %v2479
    %v3656 = vpack.c.b16 %v2529, %v2480
    %v3657 = vpack.c.b16 %v2530, %v2481
    %v3658 = vpack.c.b16 %v2531, %v2482
    %v3659 = vpack.c.b16 %v2532, %v2483
    %v3660 = vpack.c.b16 %v2533, %v2484
    %v3661 = vpack.c.b16 %v2534, %v2485
    %v3662 = vpack.c.b16 %v2535, %v2486
    %v3663 = vpack.c.b16 %v2536, %v2487
    %v3664 = vpack.c.b16 %v2537, %v2488
    %v3665 = vpack.c.b16 %v2538, %v2489
    %v3666 = vpack.c.b16 %v2539, %v2490
    %v3667 = vpack.c.b16 %v2540, %v2491
    %v3668 = vpack.c.b16 %v2541, %v2492
    %v3669 = vpack.c.b16 %v2542, %v2493
    %v3670 = vpack.c.b16 %v2543, %v2494
    %v3671 = vpack.c.b16 %v2544, %v2495
    %v3672 = vpack.c.b16 %v2545, %v2496
    %v3673 = vpack.c.b16 %v2546, %v2497
    %v3674 = vpack.c.b16 %v2547, %v2498
    %v3675 = vpack.c.b16 %v2548, %v2499
    %v3676 = vpack.c.b16 %v2549, %v2500
    %v3677 = vpack.c.b16 %v2550, %v2501
    %v3678 = vpack.c.b16 %v2551, %v2502
    %v3679 = vpack.c.b16 %v2552, %v2503
    %v3680 = vpack.c.b16 %v2553, %v2504
    %v3681 = vpack.c.b16 %v2554, %v2505
    %v3682 = vpack.c.b16 %v2555, %v2506
    %v3683 = vpack.c.b16 %v2556, %v2507
    %v3684 = vpack.c.b16 %v2557, %v2508
    %v3685 = vpack.c.b16 %v2558, %v2509
    %v3686 = vpack.c.b16 %v2559, %v2510
    %v3687 = vpack.c.b16 %v2609, %v2560
    %v3688 = vpack.c.b16 %v2610, %v2561
    %v3689 = vpack.c.b16 %v2611, %v2562
    %v3690 = vpack.c.b16 %v2612, %v2563
    %v3691 = vpack.c.b16 %v2613, %v2564
    %v3692 = vpack.c.b16 %v2614, %v2565
    %v3693 = vpack.c.b16 %v2615, %v2566
    %v3694 = vpack.c.b16 %v2616, %v2567
    %v3695 = vpack.c.b16 %v2617, %v2568
    %v3696 = vpack.c.b16 %v2618, %v2569
    %v3697 = vpack.c.b16 %v2619, %v2570
    %v3698 = vpack.c.b16 %v2620, %v2571
    %v3699 = vpack.c.b16 %v2621, %v2572
    %v3700 = vpack.c.b16 %v2622, %v2573
    %v3701 = vpack.c.b16 %v2623, %v2574
    %v3702 = vpack.c.b16 %v2624, %v2575
    %v3703 = vpack.c.b16 %v2625, %v2576
    %v3704 = vpack.c.b16 %v2626, %v2577
    %v3705 = vpack.c.b16 %v2627, %v2578
    %v3706 = vpack.c.b16 %v2628, %v2579
    %v3707 = vpack.c.b16 %v2629, %v2580
    %v3708 = vpack.c.b16 %v2630, %v2581
    %v3709 = vpack.c.b16 %v2631, %v2582
    %v3710 = vpack.c.b16 %v2632, %v2583
    %v3711 = vpack.c.b16 %v2633, %v2584
    %v3712 = vpack.c.b16 %v2634, %v2585
    %v3713 = vpack.c.b16 %v2635, %v2586
    %v3714 = vpack.c.b16 %v2636, %v2587
    %v3715 = vpack.c.b16 %v2637, %v2588
    %v3716 = vpack.c.b16 %v2638, %v2589
    %v3717 = vpack.c.b16 %v2639, %v2590
    %v3718 = vpack.c.b16 %v2640, %v2591
    %v3719 = vpack.c.b16 %v2641, %v2592
    %v3720 = vpack.c.b16 %v2642, %v2593
    %v3721 = vpack.c.b16 %v2643, %v2594
    %v3722 = vpack.c.b16 %v2644, %v2595
    %v3723 = vpack.c.b16 %v2645, %v2596
    %v3724 = vpack.c.b16 %v2646, %v2597
    %v3725 = vpack.c.b16 %v2647, %v2598
    %v3726 = vpack.c.b16 %v2648, %v2599
    %v3727 = vpack.c.b16 %v2649, %v2600
    %v3728 = vpack.c.b16 %v2650, %v2601
    %v3729 = vpack.c.b16 %v2651, %v2602
    %v3730 = vpack.c.b16 %v2652, %v2603
    %v3731 = vpack.c.b16 %v2653, %v2604
    %v3732 = vpack.c.b16 %v2654, %v2605
    %v3733 = vpack.c.b16 %v2655, %v2606
    %v3734 = vpack.c.b16 %v2656, %v2607
    %v3735 = vpack.c.b16 %v2657, %v2608
    %v3736 = vpack.c.b16 %v2707, %v2658
    %v3737 = vpack.c.b16 %v2708, %v2659
    %v3738 = vpack.c.b16 %v2709, %v2660
    %v3739 = vpack.c.b16 %v2710, %v2661
    %v3740 = vpack.c.b16 %v2711, %v2662
    %v3741 = vpack.c.b16 %v2712, %v2663
    %v3742 = vpack.c.b16 %v2713, %v2664
    %v3743 = vpack.c.b16 %v2714, %v2665
    %v3744 = vpack.c.b16 %v2715, %v2666
    %v3745 = vpack.c.b16 %v2716, %v2667
    %v3746 = vpack.c.b16 %v2717, %v2668
    %v3747 = vpack.c.b16 %v2718, %v2669
    %v3748 = vpack.c.b16 %v2719, %v2670
    %v3749 = vpack.c.b16 %v2720, %v2671
    %v3750 = vpack.c.b16 %v2721, %v2672
    %v3751 = vpack.c.b16 %v2722, %v2673
    %v3752 = vpack.c.b16 %v2723, %v2674
    %v3753 = vpack.c.b16 %v2724, %v2675
    %v3754 = vpack.c.b16 %v2725, %v2676
    %v3755 = vpack.c.b16 %v2726, %v2677
    %v3756 = vpack.c.b16 %v2727, %v2678
    %v3757 = vpack.c.b16 %v2728, %v2679
    %v3758 = vpack.c.b16 %v2729, %v2680
    %v3759 = vpack.c.b16 %v2730, %v2681
    %v3760 = vpack.c.b16 %v2731, %v2682
    %v3761 = vpack.c.b16 %v2732, %v2683
    %v3762 = vpack.c.b16 %v2733, %v2684
    %v3763 = vpack.c.b16 %v2734, %v2685
    %v3764 = vpack.c.b16 %v2735, %v2686
    %v3765 = vpack.c.b16 %v2736, %v2687
    %v3766 = vpack.c.b16 %v2737, %v2688
    %v3767 = vpack.c.b16 %v2738, %v2689
    %v3768 = vpack.c.b16 %v2739, %v2690
    %v3769 = vpack.c.b16 %v2740, %v2691
    %v3770 = vpack.c.b16 %v2741, %v2692
    %v3771 = vpack.c.b16 %v2742, %v2693
    %v3772 = vpack.c.b16 %v2743, %v2694
    %v3773 = vpack.c.b16 %v2744, %v2695
    %v3774 = vpack.c.b16 %v2745, %v2696
    %v3775 = vpack.c.b16 %v2746, %v2697
    %v3776 = vpack.c.b16 %v2747, %v2698
    %v3777 = vpack.c.b16 %v2748, %v2699
    %v3778 = vpack.c.b16 %v2749, %v2700
    %v3779 = vpack.c.b16 %v2750, %v2701
    %v3780 = vpack.c.b16 %v2751, %v2702
    %v3781 = vpack.c.b16 %v2752, %v2703
    %v3782 = vpack.c.b16 %v2753, %v2704
    %v3783 = vpack.c.b16 %v2754, %v2705
    %v3784 = vpack.c.b16 %v2755, %v2706
    %v3785 = vpack.c.b16 %v2805, %v2756
    %v3786 = vpack.c.b16 %v2806, %v2757
    %v3787 = vpack.c.b16 %v2807, %v2758
    %v3788 = vpack.c.b16 %v2808, %v2759
    %v3789 = vpack.c.b16 %v2809, %v2760
    %v3790 = vpack.c.b16 %v2810, %v2761
    %v3791 = vpack.c.b16 %v2811, %v2762
    %v3792 = vpack.c.b16 %v2812, %v2763
    %v3793 = vpack.c.b16 %v2813, %v2764
    %v3794 = vpack.c.b16 %v2814, %v2765
    %v3795 = vpack.c.b16 %v2815, %v2766
    %v3796 = vpack.c.b16 %v2816, %v2767
    %v3797 = vpack.c.b16 %v2817, %v2768
    %v3798 = vpack.c.b16 %v2818, %v2769
    %v3799 = vpack.c.b16 %v2819, %v2770
    %v3800 = vpack.c.b16 %v2820, %v2771
    %v3801 = vpack.c.b16 %v2821, %v2772
    %v3802 = vpack.c.b16 %v2822, %v2773
    %v3803 = vpack.c.b16 %v2823, %v2774
    %v3804 = vpack.c.b16 %v2824, %v2775
    %v3805 = vpack.c.b16 %v2825, %v2776
    %v3806 = vpack.c.b16 %v2826, %v2777
    %v3807 = vpack.c.b16 %v2827, %v2778
    %v3808 = vpack.c.b16 %v2828, %v2779
    %v3809 = vpack.c.b16 %v2829, %v2780
    %v3810 = vpack.c.b16 %v2830, %v2781
    %v3811 = vpack.c.b16 %v2831, %v2782
    %v3812 = vpack.c.b16 %v2832, %v2783
    %v3813 = vpack.c.b16 %v2833, %v2784
    %v3814 = vpack.c.b16 %v2834, %v2785
    %v3815 = vpack.c.b16 %v2835, %v2786
    %v3816 = vpack.c.b16 %v2836, %v2787
    %v3817 = vpack.c.b16 %v2837, %v2788
    %v3818 = vpack.c.b16 %v2838, %v2789
    %v3819 = vpack.c.b16 %v2839, %v2790
    %v3820 = vpack.c.b16 %v2840, %v2791
    %v3821 = vpack.c.b16 %v2841, %v2792
    %v3822 = vpack.c.b16 %v2842, %v2793
    %v3823 = vpack.c.b16 %v2843, %v2794
    %v3824 = vpack.c.b16 %v2844, %v2795
    %v3825 = vpack.c.b16 %v2845, %v2796
    %v3826 = vpack.c.b16 %v2846, %v2797
    %v3827 = vpack.c.b16 %v2847, %v2798
    %v3828 = vpack.c.b16 %v2848, %v2799
    %v3829 = vpack.c.b16 %v2849, %v2800
    %v3830 = vpack.c.b16 %v2850, %v2801
    %v3831 = vpack.c.b16 %v2851, %v2802
    %v3832 = vpack.c.b16 %v2852, %v2803
    %v3833 = vpack.c.b16 %v2853, %v2804
    %v3834 = vpack.c.b16 %v2903, %v2854
    %v3835 = vpack.c.b16 %v2904, %v2855
    %v3836 = vpack.c.b16 %v2905, %v2856
    %v3837 = vpack.c.b16 %v2906, %v2857
    %v3838 = vpack.c.b16 %v2907, %v2858
    %v3839 = vpack.c.b16 %v2908, %v2859
    %v3840 = vpack.c.b16 %v2909, %v2860
    %v3841 = vpack.c.b16 %v2910, %v2861
    %v3842 = vpack.c.b16 %v2911, %v2862
    %v3843 = vpack.c.b16 %v2912, %v2863
    %v3844 = vpack.c.b16 %v2913, %v2864
    %v3845 = vpack.c.b16 %v2914, %v2865
    %v3846 = vpack.c.b16 %v2915, %v2866
    %v3847 = vpack.c.b16 %v2916, %v2867
    %v3848 = vpack.c.b16 %v2917, %v2868
    %v3849 = vpack.c.b16 %v2918, %v2869
    %v3850 = vpack.c.b16 %v2919, %v2870
    %v3851 = vpack.c.b16 %v2920, %v2871
    %v3852 = vpack.c.b16 %v2921, %v2872
    %v3853 = vpack.c.b16 %v2922, %v2873
    %v3854 = vpack.c.b16 %v2923, %v2874
    %v3855 = vpack.c.b16 %v2924, %v2875
    %v3856 = vpack.c.b16 %v2925, %v2876
    %v3857 = vpack.c.b16 %v2926, %v2877
    %v3858 = vpack.c.b16 %v2927, %v2878
    %v3859 = vpack.c.b16 %v2928, %v2879
    %v3860 = vpack.c.b16 %v2929, %v2880
    %v3861 = vpack.c.b16 %v2930, %v2881
    %v3862 = vpack.c.b16 %v2931, %v2882
    %v3863 = vpack.c.b16 %v2932, %v2883
    %v3864 = vpack.c.b16 %v2933, %v2884
    %v3865 = vpack.c.b16 %v2934, %v2885
    %v3866 = vpack.c.b16 %v2935, %v2886
    %v3867 = vpack.c.b16 %v2936, %v2887
    %v3868 = vpack.c.b16 %v2937, %v2888
    %v3869 = vpack.c.b16 %v2938, %v2889
    %v3870 = vpack.c.b16 %v2939, %v2890
    %v3871 = vpack.c.b16 %v2940, %v2891
    %v3872 = vpack.c.b16 %v2941, %v2892
    %v3873 = vpack.c.b16 %v2942, %v2893
    %v3874 = vpack.c.b16 %v2943, %v2894
    %v3875 = vpack.c.b16 %v2944, %v2895
    %v3876 = vpack.c.b16 %v2945, %v2896
    %v3877 = vpack.c.b16 %v2946, %v2897
    %v3878 = vpack.c.b16 %v2947, %v2898
    %v3879 = vpack.c.b16 %v2948, %v2899
    %v3880 = vpack.c.b16 %v2949, %v2900
    %v3881 = vpack.c.b16 %v2950, %v2901
    %v3882 = vpack.c.b16 %v2951, %v2902
    %v3883 = vpack.c.b16 %v3001, %v2952
    %v3884 = vpack.c.b16 %v3002, %v2953
    %v3885 = vpack.c.b16 %v3003, %v2954
    %v3886 = vpack.c.b16 %v3004, %v2955
    %v3887 = vpack.c.b16 %v3005, %v2956
    %v3888 = vpack.c.b16 %v3006, %v2957
    %v3889 = vpack.c.b16 %v3007, %v2958
    %v3890 = vpack.c.b16 %v3008, %v2959
    %v3891 = vpack.c.b16 %v3009, %v2960
    %v3892 = vpack.c.b16 %v3010, %v2961
    %v3893 = vpack.c.b16 %v3011, %v2962
    %v3894 = vpack.c.b16 %v3012, %v2963
    %v3895 = vpack.c.b16 %v3013, %v2964
    %v3896 = vpack.c.b16 %v3014, %v2965
    %v3897 = vpack.c.b16 %v3015, %v2966
    %v3898 = vpack.c.b16 %v3016, %v2967
    %v3899 = vpack.c.b16 %v3017, %v2968
    %v3900 = vpack.c.b16 %v3018, %v2969
    %v3901 = vpack.c.b16 %v3019, %v2970
    %v3902 = vpack.c.b16 %v3020, %v2971
    %v3903 = vpack.c.b16 %v3021, %v2972
    %v3904 = vpack.c.b16 %v3022, %v2973
    %v3905 = vpack.c.b16 %v3023, %v2974
    %v3906 = vpack.c.b16 %v3024, %v2975
    %v3907 = vpack.c.b16 %v3025, %v2976
    %v3908 = vpack.c.b16 %v3026, %v2977
    %v3909 = vpack.c.b16 %v3027, %v2978
    %v3910 = vpack.c.b16 %v3028, %v2979
    %v3911 = vpack.c.b16 %v3029, %v2980
    %v3912 = vpack.c.b16 %v3030, %v2981
    %v3913 = vpack.c.b16 %v3031, %v2982
    %v3914 = vpack.c.b16 %v3032, %v2983
    %v3915 = vpack.c.b16 %v3033, %v2984
    %v3916 = vpack.c.b16 %v3034, %v2985
    %v3917 = vpack.c.b16 %v3035, %v2986
    %v3918 = vpack.c.b16 %v3036, %v2987
    %v3919 = vpack.c.b16 %v3037, %v2988
    %v3920 = vpack.c.b16 %v3038, %v2989
    %v3921 = vpack.c.b16 %v3039, %v2990
    %v3922 = vpack.c.b16 %v3040, %v2991
    %v3923 = vpack.c.b16 %v3041, %v2992
    %v3924 = vpack.c.b16 %v3042, %v2993
    %v3925 = vpack.c.b16 %v3043, %v2994
    %v3926 = vpack.c.b16 %v3044, %v2995
    %v3927 = vpack.c.b16 %v3045, %v2996
    %v3928 = vpack.c.b16 %v3046, %v2997
    %v3929 = vpack.c.b16 %v3047, %v2998
    %v3930 = vpack.c.b16 %v3048, %v2999
    %v3931 = vpack.c.b16 %v3049, %v3000
    %v3932 = vpack.c.b16 %v3099, %v3050
    %v3933 = vpack.c.b16 %v3100, %v3051
    %v3934 = vpack.c.b16 %v3101, %v3052
    %v3935 = vpack.c.b16 %v3102, %v3053
    %v3936 = vpack.c.b16 %v3103, %v3054
    %v3937 = vpack.c.b16 %v3104, %v3055
    %v3938 = vpack.c.b16 %v3105, %v3056
    %v3939 = vpack.c.b16 %v3106, %v3057
    %v3940 = vpack.c.b16 %v3107, %v3058
    %v3941 = vpack.c.b16 %v3108, %v3059
    %v3942 = vpack.c.b16 %v3109, %v3060
    %v3943 = vpack.c.b16 %v3110, %v3061
    %v3944 = vpack.c.b16 %v3111, %v3062
    %v3945 = vpack.c.b16 %v3112, %v3063
    %v3946 = vpack.c.b16 %v3113, %v3064
    %v3947 = vpack.c.b16 %v3114, %v3065
    %v3948 = vpack.c.b16 %v3115, %v3066
    %v3949 = vpack.c.b16 %v3116, %v3067
    %v3950 = vpack.c.b16 %v3117, %v3068
    %v3951 = vpack.c.b16 %v3118, %v3069
    %v3952 = vpack.c.b16 %v3119, %v3070
    %v3953 = vpack.c.b16 %v3120, %v3071
    %v3954 = vpack.c.b16 %v3121, %v3072
    %v3955 = vpack.c.b16 %v3122, %v3073
    %v3956 = vpack.c.b16 %v3123, %v3074
    %v3957 = vpack.c.b16 %v3124, %v3075
    %v3958 = vpack.c.b16 %v3125, %v3076
    %v3959 = vpack.c.b16 %v3126, %v3077
    %v3960 = vpack.c.b16 %v3127, %v3078
    %v3961 = vpack.c.b16 %v3128, %v3079
    %v3962 = vpack.c.b16 %v3129, %v3080
    %v3963 = vpack.c.b16 %v3130, %v3081
    %v3964 = vpack.c.b16 %v3131, %v3082
    %v3965 = vpack.c.b16 %v3132, %v3083
    %v3966 = vpack.c.b16 %v3133, %v3084
    %v3967 = vpack.c.b16 %v3134, %v3085
    %v3968 = vpack.c.b16 %v3135, %v3086
    %v3969 = vpack.c.b16 %v3136, %v3087
    %v3970 = vpack.c.b16 %v3137, %v3088
    %v3971 = vpack.c.b16 %v3138, %v3089
    %v3972 = vpack.c.b16 %v3139, %v3090
    %v3973 = vpack.c.b16 %v3140, %v3091
    %v3974 = vpack.c.b16 %v3141, %v3092
    %v3975 = vpack.c.b16 %v3142, %v3093
    %v3976 = vpack.c.b16 %v3143, %v3094
    %v3977 = vpack.c.b16 %v3144, %v3095
    %v3978 = vpack.c.b16 %v3145, %v3096
    %v3979 = vpack.c.b16 %v3146, %v3097
    %v3980 = vpack.c.b16 %v3147, %v3098
    %v3981 = vpack.c.b16 %v3197, %v3148
    %v3982 = vpack.c.b16 %v3198, %v3149
    %v3983 = vpack.c.b16 %v3199, %v3150
    %v3984 = vpack.c.b16 %v3200, %v3151
    %v3985 = vpack.c.b16 %v3201, %v3152
    %v3986 = vpack.c.b16 %v3202, %v3153
    %v3987 = vpack.c.b16 %v3203, %v3154
    %v3988 = vpack.c.b16 %v3204, %v3155
    %v3989 = vpack.c.b16 %v3205, %v3156
    %v3990 = vpack.c.b16 %v3206, %v3157
    %v3991 = vpack.c.b16 %v3207, %v3158
    %v3992 = vpack.c.b16 %v3208, %v3159
    %v3993 = vpack.c.b16 %v3209, %v3160
    %v3994 = vpack.c.b16 %v3210, %v3161
    %v3995 = vpack.c.b16 %v3211, %v3162
    %v3996 = vpack.c.b16 %v3212, %v3163
    %v3997 = vpack.c.b16 %v3213, %v3164
    %v3998 = vpack.c.b16 %v3214, %v3165
    %v3999 = vpack.c.b16 %v3215, %v3166
    %v4000 = vpack.c.b16 %v3216, %v3167
    %v4001 = vpack.c.b16 %v3217, %v3168
    %v4002 = vpack.c.b16 %v3218, %v3169
    %v4003 = vpack.c.b16 %v3219, %v3170
    %v4004 = vpack.c.b16 %v3220, %v3171
    %v4005 = vpack.c.b16 %v3221, %v3172
    %v4006 = vpack.c.b16 %v3222, %v3173
    %v4007 = vpack.c.b16 %v3223, %v3174
    %v4008 = vpack.c.b16 %v3224, %v3175
    %v4009 = vpack.c.b16 %v3225, %v3176
    %v4010 = vpack.c.b16 %v3226, %v3177
    %v4011 = vpack.c.b16 %v3227, %v3178
    %v4012 = vpack.c.b16 %v3228, %v3179
    %v4013 = vpack.c.b16 %v3229, %v3180
    %v4014 = vpack.c.b16 %v3230, %v3181
    %v4015 = vpack.c.b16 %v3231, %v3182
    %v4016 = vpack.c.b16 %v3232, %v3183
    %v4017 = vpack.c.b16 %v3233, %v3184
    %v4018 = vpack.c.b16 %v3234, %v3185
    %v4019 = vpack.c.b16 %v3235, %v3186
    %v4020 = vpack.c.b16 %v3236, %v3187
    %v4021 = vpack.c.b16 %v3237, %v3188
    %v4022 = vpack.c.b16 %v3238, %v3189
    %v4023 = vpack.c.b16 %v3239, %v3190
    %v4024 = vpack.c.b16 %v3240, %v3191
    %v4025 = vpack.c.b16 %v3241, %v3192
    %v4026 = vpack.c.b16 %v3242, %v3193
    %v4027 = vpack.c.b16 %v3243, %v3194
    %v4028 = vpack.c.b16 %v3244, %v3195
    %v4029 = vpack.c.b16 %v3245, %v3196
    %4814 = vmatprep.subr.bf16.mxu0 %v3247
    %4815 = vmatpush1.bf16.msra.mxu0 %v3246
    %4816 = vmatprep.subr.bf16.mxu0 %v3296
    %4817 = vmatpush1.bf16.msra.mxu0 %v3295
    %4818 = vmatprep.subr.bf16.mxu0 %v3345
    %4819 = vmatpush1.bf16.msra.mxu0 %v3344
    %4820 = vmatprep.subr.bf16.mxu0 %v3394
    %4821 = vmatpush1.bf16.msra.mxu0 %v3393
    %4822 = vmatprep.subr.bf16.mxu0 %v3443
    %4823 = vmatpush1.bf16.msra.mxu0 %v3442
    %4824 = vmatprep.subr.bf16.mxu0 %v3492
    %4825 = vmatpush1.bf16.msra.mxu0 %v3491
    %4826 = vmatprep.subr.bf16.mxu0 %v3541
    %4827 = vmatpush1.bf16.msra.mxu0 %v3540
    %4828 = vmatprep.subr.bf16.mxu0 %v3590
    %4829 = vmatpush1.bf16.msra.mxu0 %v3589
    %4830 = vmatprep.subr.bf16.mxu0 %v3639
    %4831 = vmatpush1.bf16.msra.mxu0 %v3638
    %4832 = vmatprep.subr.bf16.mxu0 %v3688
    %4833 = vmatpush1.bf16.msra.mxu0 %v3687
    %4834 = vmatprep.subr.bf16.mxu0 %v3737
    %4835 = vmatpush1.bf16.msra.mxu0 %v3736
    %4836 = vmatprep.subr.bf16.mxu0 %v3786
    %4837 = vmatpush1.bf16.msra.mxu0 %v3785
    %4838 = vmatprep.subr.bf16.mxu0 %v3835
    %4839 = vmatpush1.bf16.msra.mxu0 %v3834
    %4840 = vmatprep.subr.bf16.mxu0 %v3884
    %4841 = vmatpush1.bf16.msra.mxu0 %v3883
    %4842 = vmatprep.subr.bf16.mxu0 %v3933
    %4843 = vmatpush1.bf16.msra.mxu0 %v3932
    %4844 = vmatprep.subr.bf16.mxu0 %v3982
    %4845 = vmatpush1.bf16.msra.mxu0 %v3981
    %4846 = vmatprep.mubr.bf16.mxu0 %v875
    %4847 = vmatmul.mubr.bf16.gmra.mrb[0].mxu0 %v874
    %v4848 = vpop.f32.mrb[0].mxu0
    %v4849 = vadd.f32 0.0, %v4848
    %v4850 = vpop.f32.mrb[0].mxu0
    %v4851 = vadd.f32 0.0, %v4850
    %v4852 = vpop.f32.mrb[0].mxu0
    %v4853 = vadd.f32 0.0, %v4852
    %v4854 = vpop.f32.mrb[0].mxu0
    %v4855 = vadd.f32 0.0, %v4854
    %4856 = vdwg.mxu0
    %4857 = vmatprep.subr.bf16.mxu0 %v3249
    %4858 = vmatpush1.bf16.msra.mxu0 %v3248
    %4859 = vmatprep.subr.bf16.mxu0 %v3298
    %4860 = vmatpush1.bf16.msra.mxu0 %v3297
    %4861 = vmatprep.subr.bf16.mxu0 %v3347
    %4862 = vmatpush1.bf16.msra.mxu0 %v3346
    %4863 = vmatprep.subr.bf16.mxu0 %v3396
    %4864 = vmatpush1.bf16.msra.mxu0 %v3395
    %4865 = vmatprep.subr.bf16.mxu0 %v3445
    %4866 = vmatpush1.bf16.msra.mxu0 %v3444
    %4867 = vmatprep.subr.bf16.mxu0 %v3494
    %4868 = vmatpush1.bf16.msra.mxu0 %v3493
    %4869 = vmatprep.subr.bf16.mxu0 %v3543
    %4870 = vmatpush1.bf16.msra.mxu0 %v3542
    %4871 = vmatprep.subr.bf16.mxu0 %v3592
    %4872 = vmatpush1.bf16.msra.mxu0 %v3591
    %4873 = vmatprep.subr.bf16.mxu0 %v3641
    %4874 = vmatpush1.bf16.msra.mxu0 %v3640
    %4875 = vmatprep.subr.bf16.mxu0 %v3690
    %4876 = vmatpush1.bf16.msra.mxu0 %v3689
    %4877 = vmatprep.subr.bf16.mxu0 %v3739
    %4878 = vmatpush1.bf16.msra.mxu0 %v3738
    %4879 = vmatprep.subr.bf16.mxu0 %v3788
    %4880 = vmatpush1.bf16.msra.mxu0 %v3787
    %4881 = vmatprep.subr.bf16.mxu0 %v3837
    %4882 = vmatpush1.bf16.msra.mxu0 %v3836
    %4883 = vmatprep.subr.bf16.mxu0 %v3886
    %4884 = vmatpush1.bf16.msra.mxu0 %v3885
    %4885 = vmatprep.subr.bf16.mxu0 %v3935
    %4886 = vmatpush1.bf16.msra.mxu0 %v3934
    %4887 = vmatprep.subr.bf16.mxu0 %v3984
    %4888 = vmatpush1.bf16.msra.mxu0 %v3983
    %4889 = vmatprep.mubr.bf16.mxu0 %v875
    %4890 = vmatmul.mubr.bf16.gmra.mrb[0].mxu0 %v874
    %v4891 = vpop.f32.mrb[0].mxu0
    %v4892 = vadd.f32 0.0, %v4891
    %v4893 = vpop.f32.mrb[0].mxu0
    %v4894 = vadd.f32 0.0, %v4893
    %v4895 = vpop.f32.mrb[0].mxu0
    %v4896 = vadd.f32 0.0, %v4895
    %v4897 = vpop.f32.mrb[0].mxu0
    %v4898 = vadd.f32 0.0, %v4897
    %4899 = vdwg.mxu0
    %4900 = vmatprep.subr.bf16.mxu0 %v3251
    %4901 = vmatpush1.bf16.msra.mxu0 %v3250
    %4902 = vmatprep.subr.bf16.mxu0 %v3300
    %4903 = vmatpush1.bf16.msra.mxu0 %v3299
    %4904 = vmatprep.subr.bf16.mxu0 %v3349
    %4905 = vmatpush1.bf16.msra.mxu0 %v3348
    %4906 = vmatprep.subr.bf16.mxu0 %v3398
    %4907 = vmatpush1.bf16.msra.mxu0 %v3397
    %4908 = vmatprep.subr.bf16.mxu0 %v3447
    %4909 = vmatpush1.bf16.msra.mxu0 %v3446
    %4910 = vmatprep.subr.bf16.mxu0 %v3496
    %4911 = vmatpush1.bf16.msra.mxu0 %v3495
    %4912 = vmatprep.subr.bf16.mxu0 %v3545
    %4913 = vmatpush1.bf16.msra.mxu0 %v3544
    %4914 = vmatprep.subr.bf16.mxu0 %v3594
    %4915 = vmatpush1.bf16.msra.mxu0 %v3593
    %4916 = vmatprep.subr.bf16.mxu0 %v3643
    %4917 = vmatpush1.bf16.msra.mxu0 %v3642
    %4918 = vmatprep.subr.bf16.mxu0 %v3692
    %4919 = vmatpush1.bf16.msra.mxu0 %v3691
    %4920 = vmatprep.subr.bf16.mxu0 %v3741
    %4921 = vmatpush1.bf16.msra.mxu0 %v3740
    %4922 = vmatprep.subr.bf16.mxu0 %v3790
    %4923 = vmatpush1.bf16.msra.mxu0 %v3789
    %4924 = vmatprep.subr.bf16.mxu0 %v3839
    %4925 = vmatpush1.bf16.msra.mxu0 %v3838
    %4926 = vmatprep.subr.bf16.mxu0 %v3888
    %4927 = vmatpush1.bf16.msra.mxu0 %v3887
    %4928 = vmatprep.subr.bf16.mxu0 %v3937
    %4929 = vmatpush1.bf16.msra.mxu0 %v3936
    %4930 = vmatprep.subr.bf16.mxu0 %v3986
    %4931 = vmatpush1.bf16.msra.mxu0 %v3985
    %4932 = vmatprep.mubr.bf16.mxu0 %v875
    %4933 = vmatmul.mubr.bf16.gmra.mrb[0].mxu0 %v874
    %v4934 = vpop.f32.mrb[0].mxu0
    %v4935 = vadd.f32 0.0, %v4934
    %v4936 = vpop.f32.mrb[0].mxu0
    %v4937 = vadd.f32 0.0, %v4936
    %v4938 = vpop.f32.mrb[0].mxu0
    %v4939 = vadd.f32 0.0, %v4938
    %v4940 = vpop.f32.mrb[0].mxu0
    %v4941 = vadd.f32 0.0, %v4940
    %4942 = vdwg.mxu0
    %4943 = vmatprep.subr.bf16.mxu0 %v3253
    %4944 = vmatpush1.bf16.msra.mxu0 %v3252
    %4945 = vmatprep.subr.bf16.mxu0 %v3302
    %4946 = vmatpush1.bf16.msra.mxu0 %v3301
    %4947 = vmatprep.subr.bf16.mxu0 %v3351
    %4948 = vmatpush1.bf16.msra.mxu0 %v3350
    %4949 = vmatprep.subr.bf16.mxu0 %v3400
    %4950 = vmatpush1.bf16.msra.mxu0 %v3399
    %4951 = vmatprep.subr.bf16.mxu0 %v3449
    %4952 = vmatpush1.bf16.msra.mxu0 %v3448
    %4953 = vmatprep.subr.bf16.mxu0 %v3498
    %4954 = vmatpush1.bf16.msra.mxu0 %v3497
    %4955 = vmatprep.subr.bf16.mxu0 %v3547
    %4956 = vmatpush1.bf16.msra.mxu0 %v3546
    %4957 = vmatprep.subr.bf16.mxu0 %v3596
    %4958 = vmatpush1.bf16.msra.mxu0 %v3595
    %4959 = vmatprep.subr.bf16.mxu0 %v3645
    %4960 = vmatpush1.bf16.msra.mxu0 %v3644
    %4961 = vmatprep.subr.bf16.mxu0 %v3694
    %4962 = vmatpush1.bf16.msra.mxu0 %v3693
    %4963 = vmatprep.subr.bf16.mxu0 %v3743
    %4964 = vmatpush1.bf16.msra.mxu0 %v3742
    %4965 = vmatprep.subr.bf16.mxu0 %v3792
    %4966 = vmatpush1.bf16.msra.mxu0 %v3791
    %4967 = vmatprep.subr.bf16.mxu0 %v3841
    %4968 = vmatpush1.bf16.msra.mxu0 %v3840
    %4969 = vmatprep.subr.bf16.mxu0 %v3890
    %4970 = vmatpush1.bf16.msra.mxu0 %v3889
    %4971 = vmatprep.subr.bf16.mxu0 %v3939
    %4972 = vmatpush1.bf16.msra.mxu0 %v3938
    %4973 = vmatprep.subr.bf16.mxu0 %v3988
    %4974 = vmatpush1.bf16.msra.mxu0 %v3987
    %4975 = vmatprep.mubr.bf16.mxu0 %v875
    %4976 = vmatmul.mubr.bf16.gmra.mrb[0].mxu0 %v874
    %v4977 = vpop.f32.mrb[0].mxu0
    %v4978 = vadd.f32 0.0, %v4977
    %v4979 = vpop.f32.mrb[0].mxu0
    %v4980 = vadd.f32 0.0, %v4979
    %v4981 = vpop.f32.mrb[0].mxu0
    %v4982 = vadd.f32 0.0, %v4981
    %v4983 = vpop.f32.mrb[0].mxu0
    %v4984 = vadd.f32 0.0, %v4983
    %4985 = vdwg.mxu0
    %4986 = vmatprep.subr.bf16.mxu0 %v3255
    %4987 = vmatpush1.bf16.msra.mxu0 %v3254
    %4988 = vmatprep.subr.bf16.mxu0 %v3304
    %4989 = vmatpush1.bf16.msra.mxu0 %v3303
    %4990 = vmatprep.subr.bf16.mxu0 %v3353
    %4991 = vmatpush1.bf16.msra.mxu0 %v3352
    %4992 = vmatprep.subr.bf16.mxu0 %v3402
    %4993 = vmatpush1.bf16.msra.mxu0 %v3401
    %4994 = vmatprep.subr.bf16.mxu0 %v3451
    %4995 = vmatpush1.bf16.msra.mxu0 %v3450
    %4996 = vmatprep.subr.bf16.mxu0 %v3500
    %4997 = vmatpush1.bf16.msra.mxu0 %v3499
    %4998 = vmatprep.subr.bf16.mxu0 %v3549
    %4999 = vmatpush1.bf16.msra.mxu0 %v3548
    %5000 = vmatprep.subr.bf16.mxu0 %v3598
    %5001 = vmatpush1.bf16.msra.mxu0 %v3597
    %5002 = vmatprep.subr.bf16.mxu0 %v3647
    %5003 = vmatpush1.bf16.msra.mxu0 %v3646
    %5004 = vmatprep.subr.bf16.mxu0 %v3696
    %5005 = vmatpush1.bf16.msra.mxu0 %v3695
    %5006 = vmatprep.subr.bf16.mxu0 %v3745
    %5007 = vmatpush1.bf16.msra.mxu0 %v3744
    %5008 = vmatprep.subr.bf16.mxu0 %v3794
    %5009 = vmatpush1.bf16.msra.mxu0 %v3793
    %5010 = vmatprep.subr.bf16.mxu0 %v3843
    %5011 = vmatpush1.bf16.msra.mxu0 %v3842
    %5012 = vmatprep.subr.bf16.mxu0 %v3892
    %5013 = vmatpush1.bf16.msra.mxu0 %v3891
    %5014 = vmatprep.subr.bf16.mxu0 %v3941
    %5015 = vmatpush1.bf16.msra.mxu0 %v3940
    %5016 = vmatprep.subr.bf16.mxu0 %v3990
    %5017 = vmatpush1.bf16.msra.mxu0 %v3989
    %5018 = vmatprep.mubr.bf16.mxu0 %v875
    %5019 = vmatmul.mubr.bf16.gmra.mrb[0].mxu0 %v874
    %v5020 = vpop.f32.mrb[0].mxu0
    %v5021 = vadd.f32 0.0, %v5020
    %v5022 = vpop.f32.mrb[0].mxu0
    %v5023 = vadd.f32 0.0, %v5022
    %v5024 = vpop.f32.mrb[0].mxu0
    %v5025 = vadd.f32 0.0, %v5024
    %v5026 = vpop.f32.mrb[0].mxu0
    %v5027 = vadd.f32 0.0, %v5026
    %5028 = vdwg.mxu0
    %5029 = vmatprep.subr.bf16.mxu0 %v3257
    %5030 = vmatpush1.bf16.msra.mxu0 %v3256
    %5031 = vmatprep.subr.bf16.mxu0 %v3306
    %5032 = vmatpush1.bf16.msra.mxu0 %v3305
    %5033 = vmatprep.subr.bf16.mxu0 %v3355
    %5034 = vmatpush1.bf16.msra.mxu0 %v3354
    %5035 = vmatprep.subr.bf16.mxu0 %v3404
    %5036 = vmatpush1.bf16.msra.mxu0 %v3403
    %5037 = vmatprep.subr.bf16.mxu0 %v3453
    %5038 = vmatpush1.bf16.msra.mxu0 %v3452
    %5039 = vmatprep.subr.bf16.mxu0 %v3502
    %5040 = vmatpush1.bf16.msra.mxu0 %v3501
    %5041 = vmatprep.subr.bf16.mxu0 %v3551
    %5042 = vmatpush1.bf16.msra.mxu0 %v3550
    %5043 = vmatprep.subr.bf16.mxu0 %v3600
    %5044 = vmatpush1.bf16.msra.mxu0 %v3599
    %5045 = vmatprep.subr.bf16.mxu0 %v3649
    %5046 = vmatpush1.bf16.msra.mxu0 %v3648
    %5047 = vmatprep.subr.bf16.mxu0 %v3698
    %5048 = vmatpush1.bf16.msra.mxu0 %v3697
    %5049 = vmatprep.subr.bf16.mxu0 %v3747
    %5050 = vmatpush1.bf16.msra.mxu0 %v3746
    %5051 = vmatprep.subr.bf16.mxu0 %v3796
    %5052 = vmatpush1.bf16.msra.mxu0 %v3795
    %5053 = vmatprep.subr.bf16.mxu0 %v3845
    %5054 = vmatpush1.bf16.msra.mxu0 %v3844
    %5055 = vmatprep.subr.bf16.mxu0 %v3894
    %5056 = vmatpush1.bf16.msra.mxu0 %v3893
    %5057 = vmatprep.subr.bf16.mxu0 %v3943
    %5058 = vmatpush1.bf16.msra.mxu0 %v3942
    %5059 = vmatprep.subr.bf16.mxu0 %v3992
    %5060 = vmatpush1.bf16.msra.mxu0 %v3991
    %5061 = vmatprep.mubr.bf16.mxu0 %v875
    %5062 = vmatmul.mubr.bf16.gmra.mrb[0].mxu0 %v874
    %v5063 = vpop.f32.mrb[0].mxu0
    %v5064 = vadd.f32 0.0, %v5063
    %v5065 = vpop.f32.mrb[0].mxu0
    %v5066 = vadd.f32 0.0, %v5065
    %v5067 = vpop.f32.mrb[0].mxu0
    %v5068 = vadd.f32 0.0, %v5067
    %v5069 = vpop.f32.mrb[0].mxu0
    %v5070 = vadd.f32 0.0, %v5069
    %5071 = vdwg.mxu0
    %5072 = vmatprep.subr.bf16.mxu0 %v3259
    %5073 = vmatpush1.bf16.msra.mxu0 %v3258
    %5074 = vmatprep.subr.bf16.mxu0 %v3308
    %5075 = vmatpush1.bf16.msra.mxu0 %v3307
    %5076 = vmatprep.subr.bf16.mxu0 %v3357
    %5077 = vmatpush1.bf16.msra.mxu0 %v3356
    %5078 = vmatprep.subr.bf16.mxu0 %v3406
    %5079 = vmatpush1.bf16.msra.mxu0 %v3405
    %5080 = vmatprep.subr.bf16.mxu0 %v3455
    %5081 = vmatpush1.bf16.msra.mxu0 %v3454
    %5082 = vmatprep.subr.bf16.mxu0 %v3504
    %5083 = vmatpush1.bf16.msra.mxu0 %v3503
    %5084 = vmatprep.subr.bf16.mxu0 %v3553
    %5085 = vmatpush1.bf16.msra.mxu0 %v3552
    %5086 = vmatprep.subr.bf16.mxu0 %v3602
    %5087 = vmatpush1.bf16.msra.mxu0 %v3601
    %5088 = vmatprep.subr.bf16.mxu0 %v3651
    %5089 = vmatpush1.bf16.msra.mxu0 %v3650
    %5090 = vmatprep.subr.bf16.mxu0 %v3700
    %5091 = vmatpush1.bf16.msra.mxu0 %v3699
    %5092 = vmatprep.subr.bf16.mxu0 %v3749
    %5093 = vmatpush1.bf16.msra.mxu0 %v3748
    %5094 = vmatprep.subr.bf16.mxu0 %v3798
    %5095 = vmatpush1.bf16.msra.mxu0 %v3797
    %5096 = vmatprep.subr.bf16.mxu0 %v3847
    %5097 = vmatpush1.bf16.msra.mxu0 %v3846
    %5098 = vmatprep.subr.bf16.mxu0 %v3896
    %5099 = vmatpush1.bf16.msra.mxu0 %v3895
    %5100 = vmatprep.subr.bf16.mxu0 %v3945
    %5101 = vmatpush1.bf16.msra.mxu0 %v3944
    %5102 = vmatprep.subr.bf16.mxu0 %v3994
    %5103 = vmatpush1.bf16.msra.mxu0 %v3993
    %5104 = vmatprep.mubr.bf16.mxu0 %v875
    %5105 = vmatmul.mubr.bf16.gmra.mrb[0].mxu0 %v874
    %v5106 = vpop.f32.mrb[0].mxu0
    %v5107 = vadd.f32 0.0, %v5106
    %v5108 = vpop.f32.mrb[0].mxu0
    %v5109 = vadd.f32 0.0, %v5108
    %v5110 = vpop.f32.mrb[0].mxu0
    %v5111 = vadd.f32 0.0, %v5110
    %v5112 = vpop.f32.mrb[0].mxu0
    %v5113 = vadd.f32 0.0, %v5112
    %5114 = vdwg.mxu0
    %5115 = vmatprep.subr.bf16.mxu0 %v3261
    %5116 = vmatpush1.bf16.msra.mxu0 %v3260
    %5117 = vmatprep.subr.bf16.mxu0 %v3310
    %5118 = vmatpush1.bf16.msra.mxu0 %v3309
    %5119 = vmatprep.subr.bf16.mxu0 %v3359
    %5120 = vmatpush1.bf16.msra.mxu0 %v3358
    %5121 = vmatprep.subr.bf16.mxu0 %v3408
    %5122 = vmatpush1.bf16.msra.mxu0 %v3407
    %5123 = vmatprep.subr.bf16.mxu0 %v3457
    %5124 = vmatpush1.bf16.msra.mxu0 %v3456
    %5125 = vmatprep.subr.bf16.mxu0 %v3506
    %5126 = vmatpush1.bf16.msra.mxu0 %v3505
    %5127 = vmatprep.subr.bf16.mxu0 %v3555
    %5128 = vmatpush1.bf16.msra.mxu0 %v3554
    %5129 = vmatprep.subr.bf16.mxu0 %v3604
    %5130 = vmatpush1.bf16.msra.mxu0 %v3603
    %5131 = vmatprep.subr.bf16.mxu0 %v3653
    %5132 = vmatpush1.bf16.msra.mxu0 %v3652
    %5133 = vmatprep.subr.bf16.mxu0 %v3702
    %5134 = vmatpush1.bf16.msra.mxu0 %v3701
    %5135 = vmatprep.subr.bf16.mxu0 %v3751
    %5136 = vmatpush1.bf16.msra.mxu0 %v3750
    %5137 = vmatprep.subr.bf16.mxu0 %v3800
    %5138 = vmatpush1.bf16.msra.mxu0 %v3799
    %5139 = vmatprep.subr.bf16.mxu0 %v3849
    %5140 = vmatpush1.bf16.msra.mxu0 %v3848
    %5141 = vmatprep.subr.bf16.mxu0 %v3898
    %5142 = vmatpush1.bf16.msra.mxu0 %v3897
    %5143 = vmatprep.subr.bf16.mxu0 %v3947
    %5144 = vmatpush1.bf16.msra.mxu0 %v3946
    %5145 = vmatprep.subr.bf16.mxu0 %v3996
    %5146 = vmatpush1.bf16.msra.mxu0 %v3995
    %5147 = vmatprep.mubr.bf16.mxu0 %v875
    %5148 = vmatmul.mubr.bf16.gmra.mrb[0].mxu0 %v874
    %v5149 = vpop.f32.mrb[0].mxu0
    %v5150 = vadd.f32 0.0, %v5149
    %v5151 = vpop.f32.mrb[0].mxu0
    %v5152 = vadd.f32 0.0, %v5151
    %v5153 = vpop.f32.mrb[0].mxu0
    %v5154 = vadd.f32 0.0, %v5153
    %v5155 = vpop.f32.mrb[0].mxu0
    %v5156 = vadd.f32 0.0, %v5155
    %5157 = vdwg.mxu0
    %5158 = vmatprep.subr.bf16.mxu0 %v3263
    %5159 = vmatpush1.bf16.msra.mxu0 %v3262
    %5160 = vmatprep.subr.bf16.mxu0 %v3312
    %5161 = vmatpush1.bf16.msra.mxu0 %v3311
    %5162 = vmatprep.subr.bf16.mxu0 %v3361
    %5163 = vmatpush1.bf16.msra.mxu0 %v3360
    %5164 = vmatprep.subr.bf16.mxu0 %v3410
    %5165 = vmatpush1.bf16.msra.mxu0 %v3409
    %5166 = vmatprep.subr.bf16.mxu0 %v3459
    %5167 = vmatpush1.bf16.msra.mxu0 %v3458
    %5168 = vmatprep.subr.bf16.mxu0 %v3508
    %5169 = vmatpush1.bf16.msra.mxu0 %v3507
    %5170 = vmatprep.subr.bf16.mxu0 %v3557
    %5171 = vmatpush1.bf16.msra.mxu0 %v3556
    %5172 = vmatprep.subr.bf16.mxu0 %v3606
    %5173 = vmatpush1.bf16.msra.mxu0 %v3605
    %5174 = vmatprep.subr.bf16.mxu0 %v3655
    %5175 = vmatpush1.bf16.msra.mxu0 %v3654
    %5176 = vmatprep.subr.bf16.mxu0 %v3704
    %5177 = vmatpush1.bf16.msra.mxu0 %v3703
    %5178 = vmatprep.subr.bf16.mxu0 %v3753
    %5179 = vmatpush1.bf16.msra.mxu0 %v3752
    %5180 = vmatprep.subr.bf16.mxu0 %v3802
    %5181 = vmatpush1.bf16.msra.mxu0 %v3801
    %5182 = vmatprep.subr.bf16.mxu0 %v3851
    %5183 = vmatpush1.bf16.msra.mxu0 %v3850
    %5184 = vmatprep.subr.bf16.mxu0 %v3900
    %5185 = vmatpush1.bf16.msra.mxu0 %v3899
    %5186 = vmatprep.subr.bf16.mxu0 %v3949
    %5187 = vmatpush1.bf16.msra.mxu0 %v3948
    %5188 = vmatprep.subr.bf16.mxu0 %v3998
    %5189 = vmatpush1.bf16.msra.mxu0 %v3997
    %5190 = vmatprep.mubr.bf16.mxu0 %v875
    %5191 = vmatmul.mubr.bf16.gmra.mrb[0].mxu0 %v874
    %v5192 = vpop.f32.mrb[0].mxu0
    %v5193 = vadd.f32 0.0, %v5192
    %v5194 = vpop.f32.mrb[0].mxu0
    %v5195 = vadd.f32 0.0, %v5194
    %v5196 = vpop.f32.mrb[0].mxu0
    %v5197 = vadd.f32 0.0, %v5196
    %v5198 = vpop.f32.mrb[0].mxu0
    %v5199 = vadd.f32 0.0, %v5198
    %5200 = vdwg.mxu0
    %5201 = vmatprep.subr.bf16.mxu0 %v3265
    %5202 = vmatpush1.bf16.msra.mxu0 %v3264
    %5203 = vmatprep.subr.bf16.mxu0 %v3314
    %5204 = vmatpush1.bf16.msra.mxu0 %v3313
    %5205 = vmatprep.subr.bf16.mxu0 %v3363
    %5206 = vmatpush1.bf16.msra.mxu0 %v3362
    %5207 = vmatprep.subr.bf16.mxu0 %v3412
    %5208 = vmatpush1.bf16.msra.mxu0 %v3411
    %5209 = vmatprep.subr.bf16.mxu0 %v3461
    %5210 = vmatpush1.bf16.msra.mxu0 %v3460
    %5211 = vmatprep.subr.bf16.mxu0 %v3510
    %5212 = vmatpush1.bf16.msra.mxu0 %v3509
    %5213 = vmatprep.subr.bf16.mxu0 %v3559
    %5214 = vmatpush1.bf16.msra.mxu0 %v3558
    %5215 = vmatprep.subr.bf16.mxu0 %v3608
    %5216 = vmatpush1.bf16.msra.mxu0 %v3607
    %5217 = vmatprep.subr.bf16.mxu0 %v3657
    %5218 = vmatpush1.bf16.msra.mxu0 %v3656
    %5219 = vmatprep.subr.bf16.mxu0 %v3706
    %5220 = vmatpush1.bf16.msra.mxu0 %v3705
    %5221 = vmatprep.subr.bf16.mxu0 %v3755
    %5222 = vmatpush1.bf16.msra.mxu0 %v3754
    %5223 = vmatprep.subr.bf16.mxu0 %v3804
    %5224 = vmatpush1.bf16.msra.mxu0 %v3803
    %5225 = vmatprep.subr.bf16.mxu0 %v3853
    %5226 = vmatpush1.bf16.msra.mxu0 %v3852
    %5227 = vmatprep.subr.bf16.mxu0 %v3902
    %5228 = vmatpush1.bf16.msra.mxu0 %v3901
    %5229 = vmatprep.subr.bf16.mxu0 %v3951
    %5230 = vmatpush1.bf16.msra.mxu0 %v3950
    %5231 = vmatprep.subr.bf16.mxu0 %v4000
    %5232 = vmatpush1.bf16.msra.mxu0 %v3999
    %5233 = vmatprep.mubr.bf16.mxu0 %v875
    %5234 = vmatmul.mubr.bf16.gmra.mrb[0].mxu0 %v874
    %v5235 = vpop.f32.mrb[0].mxu0
    %v5236 = vadd.f32 0.0, %v5235
    %v5237 = vpop.f32.mrb[0].mxu0
    %v5238 = vadd.f32 0.0, %v5237
    %v5239 = vpop.f32.mrb[0].mxu0
    %v5240 = vadd.f32 0.0, %v5239
    %v5241 = vpop.f32.mrb[0].mxu0
    %v5242 = vadd.f32 0.0, %v5241
    %5243 = vdwg.mxu0
    %5244 = vmatprep.subr.bf16.mxu0 %v3267
    %5245 = vmatpush1.bf16.msra.mxu0 %v3266
    %5246 = vmatprep.subr.bf16.mxu0 %v3316
    %5247 = vmatpush1.bf16.msra.mxu0 %v3315
    %5248 = vmatprep.subr.bf16.mxu0 %v3365
    %5249 = vmatpush1.bf16.msra.mxu0 %v3364
    %5250 = vmatprep.subr.bf16.mxu0 %v3414
    %5251 = vmatpush1.bf16.msra.mxu0 %v3413
    %5252 = vmatprep.subr.bf16.mxu0 %v3463
    %5253 = vmatpush1.bf16.msra.mxu0 %v3462
    %5254 = vmatprep.subr.bf16.mxu0 %v3512
    %5255 = vmatpush1.bf16.msra.mxu0 %v3511
    %5256 = vmatprep.subr.bf16.mxu0 %v3561
    %5257 = vmatpush1.bf16.msra.mxu0 %v3560
    %5258 = vmatprep.subr.bf16.mxu0 %v3610
    %5259 = vmatpush1.bf16.msra.mxu0 %v3609
    %5260 = vmatprep.subr.bf16.mxu0 %v3659
    %5261 = vmatpush1.bf16.msra.mxu0 %v3658
    %5262 = vmatprep.subr.bf16.mxu0 %v3708
    %5263 = vmatpush1.bf16.msra.mxu0 %v3707
    %5264 = vmatprep.subr.bf16.mxu0 %v3757
    %5265 = vmatpush1.bf16.msra.mxu0 %v3756
    %5266 = vmatprep.subr.bf16.mxu0 %v3806
    %5267 = vmatpush1.bf16.msra.mxu0 %v3805
    %5268 = vmatprep.subr.bf16.mxu0 %v3855
    %5269 = vmatpush1.bf16.msra.mxu0 %v3854
    %5270 = vmatprep.subr.bf16.mxu0 %v3904
    %5271 = vmatpush1.bf16.msra.mxu0 %v3903
    %5272 = vmatprep.subr.bf16.mxu0 %v3953
    %5273 = vmatpush1.bf16.msra.mxu0 %v3952
    %5274 = vmatprep.subr.bf16.mxu0 %v4002
    %5275 = vmatpush1.bf16.msra.mxu0 %v4001
    %5276 = vmatprep.mubr.bf16.mxu0 %v875
    %5277 = vmatmul.mubr.bf16.gmra.mrb[0].mxu0 %v874
    %v5278 = vpop.f32.mrb[0].mxu0
    %v5279 = vadd.f32 0.0, %v5278
    %v5280 = vpop.f32.mrb[0].mxu0
    %v5281 = vadd.f32 0.0, %v5280
    %v5282 = vpop.f32.mrb[0].mxu0
    %v5283 = vadd.f32 0.0, %v5282
    %v5284 = vpop.f32.mrb[0].mxu0
    %v5285 = vadd.f32 0.0, %v5284
    %5286 = vdwg.mxu0
    %5287 = vmatprep.subr.bf16.mxu0 %v3269
    %5288 = vmatpush1.bf16.msra.mxu0 %v3268
    %5289 = vmatprep.subr.bf16.mxu0 %v3318
    %5290 = vmatpush1.bf16.msra.mxu0 %v3317
    %5291 = vmatprep.subr.bf16.mxu0 %v3367
    %5292 = vmatpush1.bf16.msra.mxu0 %v3366
    %5293 = vmatprep.subr.bf16.mxu0 %v3416
    %5294 = vmatpush1.bf16.msra.mxu0 %v3415
    %5295 = vmatprep.subr.bf16.mxu0 %v3465
    %5296 = vmatpush1.bf16.msra.mxu0 %v3464
    %5297 = vmatprep.subr.bf16.mxu0 %v3514
    %5298 = vmatpush1.bf16.msra.mxu0 %v3513
    %5299 = vmatprep.subr.bf16.mxu0 %v3563
    %5300 = vmatpush1.bf16.msra.mxu0 %v3562
    %5301 = vmatprep.subr.bf16.mxu0 %v3612
    %5302 = vmatpush1.bf16.msra.mxu0 %v3611
    %5303 = vmatprep.subr.bf16.mxu0 %v3661
    %5304 = vmatpush1.bf16.msra.mxu0 %v3660
    %5305 = vmatprep.subr.bf16.mxu0 %v3710
    %5306 = vmatpush1.bf16.msra.mxu0 %v3709
    %5307 = vmatprep.subr.bf16.mxu0 %v3759
    %5308 = vmatpush1.bf16.msra.mxu0 %v3758
    %5309 = vmatprep.subr.bf16.mxu0 %v3808
    %5310 = vmatpush1.bf16.msra.mxu0 %v3807
    %5311 = vmatprep.subr.bf16.mxu0 %v3857
    %5312 = vmatpush1.bf16.msra.mxu0 %v3856
    %5313 = vmatprep.subr.bf16.mxu0 %v3906
    %5314 = vmatpush1.bf16.msra.mxu0 %v3905
    %5315 = vmatprep.subr.bf16.mxu0 %v3955
    %5316 = vmatpush1.bf16.msra.mxu0 %v3954
    %5317 = vmatprep.subr.bf16.mxu0 %v4004
    %5318 = vmatpush1.bf16.msra.mxu0 %v4003
    %5319 = vmatprep.mubr.bf16.mxu0 %v875
    %5320 = vmatmul.mubr.bf16.gmra.mrb[0].mxu0 %v874
    %v5321 = vpop.f32.mrb[0].mxu0
    %v5322 = vadd.f32 0.0, %v5321
    %v5323 = vpop.f32.mrb[0].mxu0
    %v5324 = vadd.f32 0.0, %v5323
    %v5325 = vpop.f32.mrb[0].mxu0
    %v5326 = vadd.f32 0.0, %v5325
    %v5327 = vpop.f32.mrb[0].mxu0
    %v5328 = vadd.f32 0.0, %v5327
    %5329 = vdwg.mxu0
    %5330 = vmatprep.subr.bf16.mxu0 %v3271
    %5331 = vmatpush1.bf16.msra.mxu0 %v3270
    %5332 = vmatprep.subr.bf16.mxu0 %v3320
    %5333 = vmatpush1.bf16.msra.mxu0 %v3319
    %5334 = vmatprep.subr.bf16.mxu0 %v3369
    %5335 = vmatpush1.bf16.msra.mxu0 %v3368
    %5336 = vmatprep.subr.bf16.mxu0 %v3418
    %5337 = vmatpush1.bf16.msra.mxu0 %v3417
    %5338 = vmatprep.subr.bf16.mxu0 %v3467
    %5339 = vmatpush1.bf16.msra.mxu0 %v3466
    %5340 = vmatprep.subr.bf16.mxu0 %v3516
    %5341 = vmatpush1.bf16.msra.mxu0 %v3515
    %5342 = vmatprep.subr.bf16.mxu0 %v3565
    %5343 = vmatpush1.bf16.msra.mxu0 %v3564
    %5344 = vmatprep.subr.bf16.mxu0 %v3614
    %5345 = vmatpush1.bf16.msra.mxu0 %v3613
    %5346 = vmatprep.subr.bf16.mxu0 %v3663
    %5347 = vmatpush1.bf16.msra.mxu0 %v3662
    %5348 = vmatprep.subr.bf16.mxu0 %v3712
    %5349 = vmatpush1.bf16.msra.mxu0 %v3711
    %5350 = vmatprep.subr.bf16.mxu0 %v3761
    %5351 = vmatpush1.bf16.msra.mxu0 %v3760
    %5352 = vmatprep.subr.bf16.mxu0 %v3810
    %5353 = vmatpush1.bf16.msra.mxu0 %v3809
    %5354 = vmatprep.subr.bf16.mxu0 %v3859
    %5355 = vmatpush1.bf16.msra.mxu0 %v3858
    %5356 = vmatprep.subr.bf16.mxu0 %v3908
    %5357 = vmatpush1.bf16.msra.mxu0 %v3907
    %5358 = vmatprep.subr.bf16.mxu0 %v3957
    %5359 = vmatpush1.bf16.msra.mxu0 %v3956
    %5360 = vmatprep.subr.bf16.mxu0 %v4006
    %5361 = vmatpush1.bf16.msra.mxu0 %v4005
    %5362 = vmatprep.mubr.bf16.mxu0 %v875
    %5363 = vmatmul.mubr.bf16.gmra.mrb[0].mxu0 %v874
    %v5364 = vpop.f32.mrb[0].mxu0
    %v5365 = vadd.f32 0.0, %v5364
    %v5366 = vpop.f32.mrb[0].mxu0
    %v5367 = vadd.f32 0.0, %v5366
    %v5368 = vpop.f32.mrb[0].mxu0
    %v5369 = vadd.f32 0.0, %v5368
    %v5370 = vpop.f32.mrb[0].mxu0
    %v5371 = vadd.f32 0.0, %v5370
    %5372 = vdwg.mxu0
    %5373 = vmatprep.subr.bf16.mxu0 %v3273
    %5374 = vmatpush1.bf16.msra.mxu0 %v3272
    %5375 = vmatprep.subr.bf16.mxu0 %v3322
    %5376 = vmatpush1.bf16.msra.mxu0 %v3321
    %5377 = vmatprep.subr.bf16.mxu0 %v3371
    %5378 = vmatpush1.bf16.msra.mxu0 %v3370
    %5379 = vmatprep.subr.bf16.mxu0 %v3420
    %5380 = vmatpush1.bf16.msra.mxu0 %v3419
    %5381 = vmatprep.subr.bf16.mxu0 %v3469
    %5382 = vmatpush1.bf16.msra.mxu0 %v3468
    %5383 = vmatprep.subr.bf16.mxu0 %v3518
    %5384 = vmatpush1.bf16.msra.mxu0 %v3517
    %5385 = vmatprep.subr.bf16.mxu0 %v3567
    %5386 = vmatpush1.bf16.msra.mxu0 %v3566
    %5387 = vmatprep.subr.bf16.mxu0 %v3616
    %5388 = vmatpush1.bf16.msra.mxu0 %v3615
    %5389 = vmatprep.subr.bf16.mxu0 %v3665
    %5390 = vmatpush1.bf16.msra.mxu0 %v3664
    %5391 = vmatprep.subr.bf16.mxu0 %v3714
    %5392 = vmatpush1.bf16.msra.mxu0 %v3713
    %5393 = vmatprep.subr.bf16.mxu0 %v3763
    %5394 = vmatpush1.bf16.msra.mxu0 %v3762
    %5395 = vmatprep.subr.bf16.mxu0 %v3812
    %5396 = vmatpush1.bf16.msra.mxu0 %v3811
    %5397 = vmatprep.subr.bf16.mxu0 %v3861
    %5398 = vmatpush1.bf16.msra.mxu0 %v3860
    %5399 = vmatprep.subr.bf16.mxu0 %v3910
    %5400 = vmatpush1.bf16.msra.mxu0 %v3909
    %5401 = vmatprep.subr.bf16.mxu0 %v3959
    %5402 = vmatpush1.bf16.msra.mxu0 %v3958
    %5403 = vmatprep.subr.bf16.mxu0 %v4008
    %5404 = vmatpush1.bf16.msra.mxu0 %v4007
    %5405 = vmatprep.mubr.bf16.mxu0 %v875
    %5406 = vmatmul.mubr.bf16.gmra.mrb[0].mxu0 %v874
    %v5407 = vpop.f32.mrb[0].mxu0
    %v5408 = vadd.f32 0.0, %v5407
    %v5409 = vpop.f32.mrb[0].mxu0
    %v5410 = vadd.f32 0.0, %v5409
    %v5411 = vpop.f32.mrb[0].mxu0
    %v5412 = vadd.f32 0.0, %v5411
    %v5413 = vpop.f32.mrb[0].mxu0
    %v5414 = vadd.f32 0.0, %v5413
    %5415 = vdwg.mxu0
    %5416 = vmatprep.subr.bf16.mxu0 %v3275
    %5417 = vmatpush1.bf16.msra.mxu0 %v3274
    %5418 = vmatprep.subr.bf16.mxu0 %v3324
    %5419 = vmatpush1.bf16.msra.mxu0 %v3323
    %5420 = vmatprep.subr.bf16.mxu0 %v3373
    %5421 = vmatpush1.bf16.msra.mxu0 %v3372
    %5422 = vmatprep.subr.bf16.mxu0 %v3422
    %5423 = vmatpush1.bf16.msra.mxu0 %v3421
    %5424 = vmatprep.subr.bf16.mxu0 %v3471
    %5425 = vmatpush1.bf16.msra.mxu0 %v3470
    %5426 = vmatprep.subr.bf16.mxu0 %v3520
    %5427 = vmatpush1.bf16.msra.mxu0 %v3519
    %5428 = vmatprep.subr.bf16.mxu0 %v3569
    %5429 = vmatpush1.bf16.msra.mxu0 %v3568
    %5430 = vmatprep.subr.bf16.mxu0 %v3618
    %5431 = vmatpush1.bf16.msra.mxu0 %v3617
    %5432 = vmatprep.subr.bf16.mxu0 %v3667
    %5433 = vmatpush1.bf16.msra.mxu0 %v3666
    %5434 = vmatprep.subr.bf16.mxu0 %v3716
    %5435 = vmatpush1.bf16.msra.mxu0 %v3715
    %5436 = vmatprep.subr.bf16.mxu0 %v3765
    %5437 = vmatpush1.bf16.msra.mxu0 %v3764
    %5438 = vmatprep.subr.bf16.mxu0 %v3814
    %5439 = vmatpush1.bf16.msra.mxu0 %v3813
    %5440 = vmatprep.subr.bf16.mxu0 %v3863
    %5441 = vmatpush1.bf16.msra.mxu0 %v3862
    %5442 = vmatprep.subr.bf16.mxu0 %v3912
    %5443 = vmatpush1.bf16.msra.mxu0 %v3911
    %5444 = vmatprep.subr.bf16.mxu0 %v3961
    %5445 = vmatpush1.bf16.msra.mxu0 %v3960
    %5446 = vmatprep.subr.bf16.mxu0 %v4010
    %5447 = vmatpush1.bf16.msra.mxu0 %v4009
    %5448 = vmatprep.mubr.bf16.mxu0 %v875
    %5449 = vmatmul.mubr.bf16.gmra.mrb[0].mxu0 %v874
    %v5450 = vpop.f32.mrb[0].mxu0
    %v5451 = vadd.f32 0.0, %v5450
    %v5452 = vpop.f32.mrb[0].mxu0
    %v5453 = vadd.f32 0.0, %v5452
    %v5454 = vpop.f32.mrb[0].mxu0
    %v5455 = vadd.f32 0.0, %v5454
    %v5456 = vpop.f32.mrb[0].mxu0
    %v5457 = vadd.f32 0.0, %v5456
    %5458 = vdwg.mxu0
    %5459 = vmatprep.subr.bf16.mxu0 %v3277
    %5460 = vmatpush1.bf16.msra.mxu0 %v3276
    %5461 = vmatprep.subr.bf16.mxu0 %v3326
    %5462 = vmatpush1.bf16.msra.mxu0 %v3325
    %5463 = vmatprep.subr.bf16.mxu0 %v3375
    %5464 = vmatpush1.bf16.msra.mxu0 %v3374
    %5465 = vmatprep.subr.bf16.mxu0 %v3424
    %5466 = vmatpush1.bf16.msra.mxu0 %v3423
    %5467 = vmatprep.subr.bf16.mxu0 %v3473
    %5468 = vmatpush1.bf16.msra.mxu0 %v3472
    %5469 = vmatprep.subr.bf16.mxu0 %v3522
    %5470 = vmatpush1.bf16.msra.mxu0 %v3521
    %5471 = vmatprep.subr.bf16.mxu0 %v3571
    %5472 = vmatpush1.bf16.msra.mxu0 %v3570
    %5473 = vmatprep.subr.bf16.mxu0 %v3620
    %5474 = vmatpush1.bf16.msra.mxu0 %v3619
    %5475 = vmatprep.subr.bf16.mxu0 %v3669
    %5476 = vmatpush1.bf16.msra.mxu0 %v3668
    %5477 = vmatprep.subr.bf16.mxu0 %v3718
    %5478 = vmatpush1.bf16.msra.mxu0 %v3717
    %5479 = vmatprep.subr.bf16.mxu0 %v3767
    %5480 = vmatpush1.bf16.msra.mxu0 %v3766
    %5481 = vmatprep.subr.bf16.mxu0 %v3816
    %5482 = vmatpush1.bf16.msra.mxu0 %v3815
    %5483 = vmatprep.subr.bf16.mxu0 %v3865
    %5484 = vmatpush1.bf16.msra.mxu0 %v3864
    %5485 = vmatprep.subr.bf16.mxu0 %v3914
    %5486 = vmatpush1.bf16.msra.mxu0 %v3913
    %5487 = vmatprep.subr.bf16.mxu0 %v3963
    %5488 = vmatpush1.bf16.msra.mxu0 %v3962
    %5489 = vmatprep.subr.bf16.mxu0 %v4012
    %5490 = vmatpush1.bf16.msra.mxu0 %v4011
    %5491 = vmatprep.mubr.bf16.mxu0 %v875
    %5492 = vmatmul.mubr.bf16.gmra.mrb[0].mxu0 %v874
    %v5493 = vpop.f32.mrb[0].mxu0
    %v5494 = vadd.f32 0.0, %v5493
    %v5495 = vpop.f32.mrb[0].mxu0
    %v5496 = vadd.f32 0.0, %v5495
    %v5497 = vpop.f32.mrb[0].mxu0
    %v5498 = vadd.f32 0.0, %v5497
    %v5499 = vpop.f32.mrb[0].mxu0
    %v5500 = vadd.f32 0.0, %v5499
    %5501 = vdwg.mxu0
    %5502 = vmatprep.subr.bf16.mxu0 %v3279
    %5503 = vmatpush1.bf16.msra.mxu0 %v3278
    %5504 = vmatprep.subr.bf16.mxu0 %v3328
    %5505 = vmatpush1.bf16.msra.mxu0 %v3327
    %5506 = vmatprep.subr.bf16.mxu0 %v3377
    %5507 = vmatpush1.bf16.msra.mxu0 %v3376
    %5508 = vmatprep.subr.bf16.mxu0 %v3426
    %5509 = vmatpush1.bf16.msra.mxu0 %v3425
    %5510 = vmatprep.subr.bf16.mxu0 %v3475
    %5511 = vmatpush1.bf16.msra.mxu0 %v3474
    %5512 = vmatprep.subr.bf16.mxu0 %v3524
    %5513 = vmatpush1.bf16.msra.mxu0 %v3523
    %5514 = vmatprep.subr.bf16.mxu0 %v3573
    %5515 = vmatpush1.bf16.msra.mxu0 %v3572
    %5516 = vmatprep.subr.bf16.mxu0 %v3622
    %5517 = vmatpush1.bf16.msra.mxu0 %v3621
    %5518 = vmatprep.subr.bf16.mxu0 %v3671
    %5519 = vmatpush1.bf16.msra.mxu0 %v3670
    %5520 = vmatprep.subr.bf16.mxu0 %v3720
    %5521 = vmatpush1.bf16.msra.mxu0 %v3719
    %5522 = vmatprep.subr.bf16.mxu0 %v3769
    %5523 = vmatpush1.bf16.msra.mxu0 %v3768
    %5524 = vmatprep.subr.bf16.mxu0 %v3818
    %5525 = vmatpush1.bf16.msra.mxu0 %v3817
    %5526 = vmatprep.subr.bf16.mxu0 %v3867
    %5527 = vmatpush1.bf16.msra.mxu0 %v3866
    %5528 = vmatprep.subr.bf16.mxu0 %v3916
    %5529 = vmatpush1.bf16.msra.mxu0 %v3915
    %5530 = vmatprep.subr.bf16.mxu0 %v3965
    %5531 = vmatpush1.bf16.msra.mxu0 %v3964
    %5532 = vmatprep.subr.bf16.mxu0 %v4014
    %5533 = vmatpush1.bf16.msra.mxu0 %v4013
    %5534 = vmatprep.mubr.bf16.mxu0 %v875
    %5535 = vmatmul.mubr.bf16.gmra.mrb[0].mxu0 %v874
    %v5536 = vpop.f32.mrb[0].mxu0
    %v5537 = vadd.f32 0.0, %v5536
    %v5538 = vpop.f32.mrb[0].mxu0
    %v5539 = vadd.f32 0.0, %v5538
    %v5540 = vpop.f32.mrb[0].mxu0
    %v5541 = vadd.f32 0.0, %v5540
    %v5542 = vpop.f32.mrb[0].mxu0
    %v5543 = vadd.f32 0.0, %v5542
    %5544 = vdwg.mxu0
    %5545 = vmatprep.subr.bf16.mxu0 %v3281
    %5546 = vmatpush1.bf16.msra.mxu0 %v3280
    %5547 = vmatprep.subr.bf16.mxu0 %v3330
    %5548 = vmatpush1.bf16.msra.mxu0 %v3329
    %5549 = vmatprep.subr.bf16.mxu0 %v3379
    %5550 = vmatpush1.bf16.msra.mxu0 %v3378
    %5551 = vmatprep.subr.bf16.mxu0 %v3428
    %5552 = vmatpush1.bf16.msra.mxu0 %v3427
    %5553 = vmatprep.subr.bf16.mxu0 %v3477
    %5554 = vmatpush1.bf16.msra.mxu0 %v3476
    %5555 = vmatprep.subr.bf16.mxu0 %v3526
    %5556 = vmatpush1.bf16.msra.mxu0 %v3525
    %5557 = vmatprep.subr.bf16.mxu0 %v3575
    %5558 = vmatpush1.bf16.msra.mxu0 %v3574
    %5559 = vmatprep.subr.bf16.mxu0 %v3624
    %5560 = vmatpush1.bf16.msra.mxu0 %v3623
    %5561 = vmatprep.subr.bf16.mxu0 %v3673
    %5562 = vmatpush1.bf16.msra.mxu0 %v3672
    %5563 = vmatprep.subr.bf16.mxu0 %v3722
    %5564 = vmatpush1.bf16.msra.mxu0 %v3721
    %5565 = vmatprep.subr.bf16.mxu0 %v3771
    %5566 = vmatpush1.bf16.msra.mxu0 %v3770
    %5567 = vmatprep.subr.bf16.mxu0 %v3820
    %5568 = vmatpush1.bf16.msra.mxu0 %v3819
    %5569 = vmatprep.subr.bf16.mxu0 %v3869
    %5570 = vmatpush1.bf16.msra.mxu0 %v3868
    %5571 = vmatprep.subr.bf16.mxu0 %v3918
    %5572 = vmatpush1.bf16.msra.mxu0 %v3917
    %5573 = vmatprep.subr.bf16.mxu0 %v3967
    %5574 = vmatpush1.bf16.msra.mxu0 %v3966
    %5575 = vmatprep.subr.bf16.mxu0 %v4016
    %5576 = vmatpush1.bf16.msra.mxu0 %v4015
    %5577 = vmatprep.mubr.bf16.mxu0 %v875
    %5578 = vmatmul.mubr.bf16.gmra.mrb[0].mxu0 %v874
    %v5579 = vpop.f32.mrb[0].mxu0
    %v5580 = vadd.f32 0.0, %v5579
    %v5581 = vpop.f32.mrb[0].mxu0
    %v5582 = vadd.f32 0.0, %v5581
    %v5583 = vpop.f32.mrb[0].mxu0
    %v5584 = vadd.f32 0.0, %v5583
    %v5585 = vpop.f32.mrb[0].mxu0
    %v5586 = vadd.f32 0.0, %v5585
    %5587 = vdwg.mxu0
    %5588 = vmatprep.subr.bf16.mxu0 %v3283
    %5589 = vmatpush1.bf16.msra.mxu0 %v3282
    %5590 = vmatprep.subr.bf16.mxu0 %v3332
    %5591 = vmatpush1.bf16.msra.mxu0 %v3331
    %5592 = vmatprep.subr.bf16.mxu0 %v3381
    %5593 = vmatpush1.bf16.msra.mxu0 %v3380
    %5594 = vmatprep.subr.bf16.mxu0 %v3430
    %5595 = vmatpush1.bf16.msra.mxu0 %v3429
    %5596 = vmatprep.subr.bf16.mxu0 %v3479
    %5597 = vmatpush1.bf16.msra.mxu0 %v3478
    %5598 = vmatprep.subr.bf16.mxu0 %v3528
    %5599 = vmatpush1.bf16.msra.mxu0 %v3527
    %5600 = vmatprep.subr.bf16.mxu0 %v3577
    %5601 = vmatpush1.bf16.msra.mxu0 %v3576
    %5602 = vmatprep.subr.bf16.mxu0 %v3626
    %5603 = vmatpush1.bf16.msra.mxu0 %v3625
    %5604 = vmatprep.subr.bf16.mxu0 %v3675
    %5605 = vmatpush1.bf16.msra.mxu0 %v3674
    %5606 = vmatprep.subr.bf16.mxu0 %v3724
    %5607 = vmatpush1.bf16.msra.mxu0 %v3723
    %5608 = vmatprep.subr.bf16.mxu0 %v3773
    %5609 = vmatpush1.bf16.msra.mxu0 %v3772
    %5610 = vmatprep.subr.bf16.mxu0 %v3822
    %5611 = vmatpush1.bf16.msra.mxu0 %v3821
    %5612 = vmatprep.subr.bf16.mxu0 %v3871
    %5613 = vmatpush1.bf16.msra.mxu0 %v3870
    %5614 = vmatprep.subr.bf16.mxu0 %v3920
    %5615 = vmatpush1.bf16.msra.mxu0 %v3919
    %5616 = vmatprep.subr.bf16.mxu0 %v3969
    %5617 = vmatpush1.bf16.msra.mxu0 %v3968
    %5618 = vmatprep.subr.bf16.mxu0 %v4018
    %5619 = vmatpush1.bf16.msra.mxu0 %v4017
    %5620 = vmatprep.mubr.bf16.mxu0 %v875
    %5621 = vmatmul.mubr.bf16.gmra.mrb[0].mxu0 %v874
    %v5622 = vpop.f32.mrb[0].mxu0
    %v5623 = vadd.f32 0.0, %v5622
    %v5624 = vpop.f32.mrb[0].mxu0
    %v5625 = vadd.f32 0.0, %v5624
    %v5626 = vpop.f32.mrb[0].mxu0
    %v5627 = vadd.f32 0.0, %v5626
    %v5628 = vpop.f32.mrb[0].mxu0
    %v5629 = vadd.f32 0.0, %v5628
    %5630 = vdwg.mxu0
    %5631 = vmatprep.subr.bf16.mxu0 %v3285
    %5632 = vmatpush1.bf16.msra.mxu0 %v3284
    %5633 = vmatprep.subr.bf16.mxu0 %v3334
    %5634 = vmatpush1.bf16.msra.mxu0 %v3333
    %5635 = vmatprep.subr.bf16.mxu0 %v3383
    %5636 = vmatpush1.bf16.msra.mxu0 %v3382
    %5637 = vmatprep.subr.bf16.mxu0 %v3432
    %5638 = vmatpush1.bf16.msra.mxu0 %v3431
    %5639 = vmatprep.subr.bf16.mxu0 %v3481
    %5640 = vmatpush1.bf16.msra.mxu0 %v3480
    %5641 = vmatprep.subr.bf16.mxu0 %v3530
    %5642 = vmatpush1.bf16.msra.mxu0 %v3529
    %5643 = vmatprep.subr.bf16.mxu0 %v3579
    %5644 = vmatpush1.bf16.msra.mxu0 %v3578
    %5645 = vmatprep.subr.bf16.mxu0 %v3628
    %5646 = vmatpush1.bf16.msra.mxu0 %v3627
    %5647 = vmatprep.subr.bf16.mxu0 %v3677
    %5648 = vmatpush1.bf16.msra.mxu0 %v3676
    %5649 = vmatprep.subr.bf16.mxu0 %v3726
    %5650 = vmatpush1.bf16.msra.mxu0 %v3725
    %5651 = vmatprep.subr.bf16.mxu0 %v3775
    %5652 = vmatpush1.bf16.msra.mxu0 %v3774
    %5653 = vmatprep.subr.bf16.mxu0 %v3824
    %5654 = vmatpush1.bf16.msra.mxu0 %v3823
    %5655 = vmatprep.subr.bf16.mxu0 %v3873
    %5656 = vmatpush1.bf16.msra.mxu0 %v3872
    %5657 = vmatprep.subr.bf16.mxu0 %v3922
    %5658 = vmatpush1.bf16.msra.mxu0 %v3921
    %5659 = vmatprep.subr.bf16.mxu0 %v3971
    %5660 = vmatpush1.bf16.msra.mxu0 %v3970
    %5661 = vmatprep.subr.bf16.mxu0 %v4020
    %5662 = vmatpush1.bf16.msra.mxu0 %v4019
    %5663 = vmatprep.mubr.bf16.mxu0 %v875
    %5664 = vmatmul.mubr.bf16.gmra.mrb[0].mxu0 %v874
    %v5665 = vpop.f32.mrb[0].mxu0
    %v5666 = vadd.f32 0.0, %v5665
    %v5667 = vpop.f32.mrb[0].mxu0
    %v5668 = vadd.f32 0.0, %v5667
    %v5669 = vpop.f32.mrb[0].mxu0
    %v5670 = vadd.f32 0.0, %v5669
    %v5671 = vpop.f32.mrb[0].mxu0
    %v5672 = vadd.f32 0.0, %v5671
    %5673 = vdwg.mxu0
    %5674 = vmatprep.subr.bf16.mxu0 %v3287
    %5675 = vmatpush1.bf16.msra.mxu0 %v3286
    %5676 = vmatprep.subr.bf16.mxu0 %v3336
    %5677 = vmatpush1.bf16.msra.mxu0 %v3335
    %5678 = vmatprep.subr.bf16.mxu0 %v3385
    %5679 = vmatpush1.bf16.msra.mxu0 %v3384
    %5680 = vmatprep.subr.bf16.mxu0 %v3434
    %5681 = vmatpush1.bf16.msra.mxu0 %v3433
    %5682 = vmatprep.subr.bf16.mxu0 %v3483
    %5683 = vmatpush1.bf16.msra.mxu0 %v3482
    %5684 = vmatprep.subr.bf16.mxu0 %v3532
    %5685 = vmatpush1.bf16.msra.mxu0 %v3531
    %5686 = vmatprep.subr.bf16.mxu0 %v3581
    %5687 = vmatpush1.bf16.msra.mxu0 %v3580
    %5688 = vmatprep.subr.bf16.mxu0 %v3630
    %5689 = vmatpush1.bf16.msra.mxu0 %v3629
    %5690 = vmatprep.subr.bf16.mxu0 %v3679
    %5691 = vmatpush1.bf16.msra.mxu0 %v3678
    %5692 = vmatprep.subr.bf16.mxu0 %v3728
    %5693 = vmatpush1.bf16.msra.mxu0 %v3727
    %5694 = vmatprep.subr.bf16.mxu0 %v3777
    %5695 = vmatpush1.bf16.msra.mxu0 %v3776
    %5696 = vmatprep.subr.bf16.mxu0 %v3826
    %5697 = vmatpush1.bf16.msra.mxu0 %v3825
    %5698 = vmatprep.subr.bf16.mxu0 %v3875
    %5699 = vmatpush1.bf16.msra.mxu0 %v3874
    %5700 = vmatprep.subr.bf16.mxu0 %v3924
    %5701 = vmatpush1.bf16.msra.mxu0 %v3923
    %5702 = vmatprep.subr.bf16.mxu0 %v3973
    %5703 = vmatpush1.bf16.msra.mxu0 %v3972
    %5704 = vmatprep.subr.bf16.mxu0 %v4022
    %5705 = vmatpush1.bf16.msra.mxu0 %v4021
    %5706 = vmatprep.mubr.bf16.mxu0 %v875
    %5707 = vmatmul.mubr.bf16.gmra.mrb[0].mxu0 %v874
    %v5708 = vpop.f32.mrb[0].mxu0
    %v5709 = vadd.f32 0.0, %v5708
    %v5710 = vpop.f32.mrb[0].mxu0
    %v5711 = vadd.f32 0.0, %v5710
    %v5712 = vpop.f32.mrb[0].mxu0
    %v5713 = vadd.f32 0.0, %v5712
    %v5714 = vpop.f32.mrb[0].mxu0
    %v5715 = vadd.f32 0.0, %v5714
    %5716 = vdwg.mxu0
    %5717 = vmatprep.subr.bf16.mxu0 %v3289
    %5718 = vmatpush1.bf16.msra.mxu0 %v3288
    %5719 = vmatprep.subr.bf16.mxu0 %v3338
    %5720 = vmatpush1.bf16.msra.mxu0 %v3337
    %5721 = vmatprep.subr.bf16.mxu0 %v3387
    %5722 = vmatpush1.bf16.msra.mxu0 %v3386
    %5723 = vmatprep.subr.bf16.mxu0 %v3436
    %5724 = vmatpush1.bf16.msra.mxu0 %v3435
    %5725 = vmatprep.subr.bf16.mxu0 %v3485
    %5726 = vmatpush1.bf16.msra.mxu0 %v3484
    %5727 = vmatprep.subr.bf16.mxu0 %v3534
    %5728 = vmatpush1.bf16.msra.mxu0 %v3533
    %5729 = vmatprep.subr.bf16.mxu0 %v3583
    %5730 = vmatpush1.bf16.msra.mxu0 %v3582
    %5731 = vmatprep.subr.bf16.mxu0 %v3632
    %5732 = vmatpush1.bf16.msra.mxu0 %v3631
    %5733 = vmatprep.subr.bf16.mxu0 %v3681
    %5734 = vmatpush1.bf16.msra.mxu0 %v3680
    %5735 = vmatprep.subr.bf16.mxu0 %v3730
    %5736 = vmatpush1.bf16.msra.mxu0 %v3729
    %5737 = vmatprep.subr.bf16.mxu0 %v3779
    %5738 = vmatpush1.bf16.msra.mxu0 %v3778
    %5739 = vmatprep.subr.bf16.mxu0 %v3828
    %5740 = vmatpush1.bf16.msra.mxu0 %v3827
    %5741 = vmatprep.subr.bf16.mxu0 %v3877
    %5742 = vmatpush1.bf16.msra.mxu0 %v3876
    %5743 = vmatprep.subr.bf16.mxu0 %v3926
    %5744 = vmatpush1.bf16.msra.mxu0 %v3925
    %5745 = vmatprep.subr.bf16.mxu0 %v3975
    %5746 = vmatpush1.bf16.msra.mxu0 %v3974
    %5747 = vmatprep.subr.bf16.mxu0 %v4024
    %5748 = vmatpush1.bf16.msra.mxu0 %v4023
    %5749 = vmatprep.mubr.bf16.mxu0 %v875
    %5750 = vmatmul.mubr.bf16.gmra.mrb[0].mxu0 %v874
    %v5751 = vpop.f32.mrb[0].mxu0
    %v5752 = vadd.f32 0.0, %v5751
    %v5753 = vpop.f32.mrb[0].mxu0
    %v5754 = vadd.f32 0.0, %v5753
    %v5755 = vpop.f32.mrb[0].mxu0
    %v5756 = vadd.f32 0.0, %v5755
    %v5757 = vpop.f32.mrb[0].mxu0
    %v5758 = vadd.f32 0.0, %v5757
    %5759 = vdwg.mxu0
    %5760 = vmatprep.subr.bf16.mxu0 %v3291
    %5761 = vmatpush1.bf16.msra.mxu0 %v3290
    %5762 = vmatprep.subr.bf16.mxu0 %v3340
    %5763 = vmatpush1.bf16.msra.mxu0 %v3339
    %5764 = vmatprep.subr.bf16.mxu0 %v3389
    %5765 = vmatpush1.bf16.msra.mxu0 %v3388
    %5766 = vmatprep.subr.bf16.mxu0 %v3438
    %5767 = vmatpush1.bf16.msra.mxu0 %v3437
    %5768 = vmatprep.subr.bf16.mxu0 %v3487
    %5769 = vmatpush1.bf16.msra.mxu0 %v3486
    %5770 = vmatprep.subr.bf16.mxu0 %v3536
    %5771 = vmatpush1.bf16.msra.mxu0 %v3535
    %5772 = vmatprep.subr.bf16.mxu0 %v3585
    %5773 = vmatpush1.bf16.msra.mxu0 %v3584
    %5774 = vmatprep.subr.bf16.mxu0 %v3634
    %5775 = vmatpush1.bf16.msra.mxu0 %v3633
    %5776 = vmatprep.subr.bf16.mxu0 %v3683
    %5777 = vmatpush1.bf16.msra.mxu0 %v3682
    %5778 = vmatprep.subr.bf16.mxu0 %v3732
    %5779 = vmatpush1.bf16.msra.mxu0 %v3731
    %5780 = vmatprep.subr.bf16.mxu0 %v3781
    %5781 = vmatpush1.bf16.msra.mxu0 %v3780
    %5782 = vmatprep.subr.bf16.mxu0 %v3830
    %5783 = vmatpush1.bf16.msra.mxu0 %v3829
    %5784 = vmatprep.subr.bf16.mxu0 %v3879
    %5785 = vmatpush1.bf16.msra.mxu0 %v3878
    %5786 = vmatprep.subr.bf16.mxu0 %v3928
    %5787 = vmatpush1.bf16.msra.mxu0 %v3927
    %5788 = vmatprep.subr.bf16.mxu0 %v3977
    %5789 = vmatpush1.bf16.msra.mxu0 %v3976
    %5790 = vmatprep.subr.bf16.mxu0 %v4026
    %5791 = vmatpush1.bf16.msra.mxu0 %v4025
    %5792 = vmatprep.mubr.bf16.mxu0 %v875
    %5793 = vmatmul.mubr.bf16.gmra.mrb[0].mxu0 %v874
    %v5794 = vpop.f32.mrb[0].mxu0
    %v5795 = vadd.f32 0.0, %v5794
    %v5796 = vpop.f32.mrb[0].mxu0
    %v5797 = vadd.f32 0.0, %v5796
    %v5798 = vpop.f32.mrb[0].mxu0
    %v5799 = vadd.f32 0.0, %v5798
    %v5800 = vpop.f32.mrb[0].mxu0
    %v5801 = vadd.f32 0.0, %v5800
    %5802 = vdwg.mxu0
    %5803 = vmatprep.subr.bf16.mxu0 %v3293
    %5804 = vmatpush1.bf16.msra.mxu0 %v3292
    %5805 = vmatprep.subr.bf16.mxu0 %v3342
    %5806 = vmatpush1.bf16.msra.mxu0 %v3341
    %5807 = vmatprep.subr.bf16.mxu0 %v3391
    %5808 = vmatpush1.bf16.msra.mxu0 %v3390
    %5809 = vmatprep.subr.bf16.mxu0 %v3440
    %5810 = vmatpush1.bf16.msra.mxu0 %v3439
    %5811 = vmatprep.subr.bf16.mxu0 %v3489
    %5812 = vmatpush1.bf16.msra.mxu0 %v3488
    %5813 = vmatprep.subr.bf16.mxu0 %v3538
    %5814 = vmatpush1.bf16.msra.mxu0 %v3537
    %5815 = vmatprep.subr.bf16.mxu0 %v3587
    %5816 = vmatpush1.bf16.msra.mxu0 %v3586
    %5817 = vmatprep.subr.bf16.mxu0 %v3636
    %5818 = vmatpush1.bf16.msra.mxu0 %v3635
    %5819 = vmatprep.subr.bf16.mxu0 %v3685
    %5820 = vmatpush1.bf16.msra.mxu0 %v3684
    %5821 = vmatprep.subr.bf16.mxu0 %v3734
    %5822 = vmatpush1.bf16.msra.mxu0 %v3733
    %5823 = vmatprep.subr.bf16.mxu0 %v3783
    %5824 = vmatpush1.bf16.msra.mxu0 %v3782
    %5825 = vmatprep.subr.bf16.mxu0 %v3832
    %5826 = vmatpush1.bf16.msra.mxu0 %v3831
    %5827 = vmatprep.subr.bf16.mxu0 %v3881
    %5828 = vmatpush1.bf16.msra.mxu0 %v3880
    %5829 = vmatprep.subr.bf16.mxu0 %v3930
    %5830 = vmatpush1.bf16.msra.mxu0 %v3929
    %5831 = vmatprep.subr.bf16.mxu0 %v3979
    %5832 = vmatpush1.bf16.msra.mxu0 %v3978
    %5833 = vmatprep.subr.bf16.mxu0 %v4028
    %5834 = vmatpush1.bf16.msra.mxu0 %v4027
    %5835 = vmatprep.mubr.bf16.mxu0 %v875
    %5836 = vmatmul.mubr.bf16.gmra.mrb[0].mxu0 %v874
    %v5837 = vpop.f32.mrb[0].mxu0
    %v5838 = vadd.f32 0.0, %v5837
    %v5839 = vpop.f32.mrb[0].mxu0
    %v5840 = vadd.f32 0.0, %v5839
    %v5841 = vpop.f32.mrb[0].mxu0
    %v5842 = vadd.f32 0.0, %v5841
    %v5843 = vpop.f32.mrb[0].mxu0
    %v5844 = vadd.f32 0.0, %v5843
    %5845 = vdwg.mxu0
    %5846 = vmatprep.subr.bf16.mxu0 0
    %5847 = vmatpush1.bf16.msra.mxu0 %v3294
    %5848 = vmatprep.subr.bf16.mxu0 0
    %5849 = vmatpush1.bf16.msra.mxu0 %v3343
    %5850 = vmatprep.subr.bf16.mxu0 0
    %5851 = vmatpush1.bf16.msra.mxu0 %v3392
    %5852 = vmatprep.subr.bf16.mxu0 0
    %5853 = vmatpush1.bf16.msra.mxu0 %v3441
    %5854 = vmatprep.subr.bf16.mxu0 0
    %5855 = vmatpush1.bf16.msra.mxu0 %v3490
    %5856 = vmatprep.subr.bf16.mxu0 0
    %5857 = vmatpush1.bf16.msra.mxu0 %v3539
    %5858 = vmatprep.subr.bf16.mxu0 0
    %5859 = vmatpush1.bf16.msra.mxu0 %v3588
    %5860 = vmatprep.subr.bf16.mxu0 0
    %5861 = vmatpush1.bf16.msra.mxu0 %v3637
    %5862 = vmatprep.subr.bf16.mxu0 0
    %5863 = vmatpush1.bf16.msra.mxu0 %v3686
    %5864 = vmatprep.subr.bf16.mxu0 0
    %5865 = vmatpush1.bf16.msra.mxu0 %v3735
    %5866 = vmatprep.subr.bf16.mxu0 0
    %5867 = vmatpush1.bf16.msra.mxu0 %v3784
    %5868 = vmatprep.subr.bf16.mxu0 0
    %5869 = vmatpush1.bf16.msra.mxu0 %v3833
    %5870 = vmatprep.subr.bf16.mxu0 0
    %5871 = vmatpush1.bf16.msra.mxu0 %v3882
    %5872 = vmatprep.subr.bf16.mxu0 0
    %5873 = vmatpush1.bf16.msra.mxu0 %v3931
    %5874 = vmatprep.subr.bf16.mxu0 0
    %5875 = vmatpush1.bf16.msra.mxu0 %v3980
    %5876 = vmatprep.subr.bf16.mxu0 0
    %5877 = vmatpush1.bf16.msra.mxu0 %v4029
    %5878 = vmatprep.mubr.bf16.mxu0 %v875
    %5879 = vmatmul.mubr.bf16.gmra.mrb[0].mxu0 %v874
    %v5880 = vpop.f32.mrb[0].mxu0
    %v5881 = vadd.f32 0.0, %v5880
    %v5882 = vpop.f32.mrb[0].mxu0
    %v5883 = vpop.f32.mrb[0].mxu0
    %v5884 = vadd.f32 0.0, %v5883
    %v5885 = vpop.f32.mrb[0].mxu0
    %5886 = vdwg.mxu0
    %v5887 = vld [vmem:[#allocation7] sm:$0xff]
    %v5888 = vld [vmem:[#allocation7 + $0x8] sm:$0xff]
    %v5889 = vld [vmem:[#allocation7 + $0x10] sm:$0xff]
    %v5890 = vld [vmem:[#allocation7 + $0x18] sm:$0xff]
    %v5891 = vld [vmem:[#allocation7 + $0x20] sm:$0xff]
    %v5892 = vld [vmem:[#allocation7 + $0x28] sm:$0xff]
    %v5893 = vld [vmem:[#allocation7 + $0x30] sm:$0x1]
    %v5894 = vadd.f32 %v4849, %v4853
    %v5895 = vrot.slane %v5894, 4
    %v5896 = vadd.f32 %v5894, %v5895
    %v5897 = vrot.slane %v5896, 2
    %v5898 = vadd.f32 %v5896, %v5897
    %v5899 = vrot.slane %v5898, 1
    %v5900 = vadd.f32 %v5898, %v5899
    %v5901 = vadd.f32 %v4851, %v4855
    %v5902 = vrot.slane %v5901, 4
    %v5903 = vadd.f32 %v5901, %v5902
    %v5904 = vrot.slane %v5903, 2
    %v5905 = vadd.f32 %v5903, %v5904
    %v5906 = vrot.slane %v5905, 1
    %v5907 = vadd.f32 %v5905, %v5906
    %v5908 = vadd.f32 %v4892, %v4896
    %v5909 = vrot.slane %v5908, 4
    %v5910 = vadd.f32 %v5908, %v5909
    %v5911 = vrot.slane %v5910, 2
    %v5912 = vadd.f32 %v5910, %v5911
    %v5913 = vrot.slane %v5912, 1
    %v5914 = vadd.f32 %v5912, %v5913
    %v5915 = vadd.f32 %v4894, %v4898
    %v5916 = vrot.slane %v5915, 4
    %v5917 = vadd.f32 %v5915, %v5916
    %v5918 = vrot.slane %v5917, 2
    %v5919 = vadd.f32 %v5917, %v5918
    %v5920 = vrot.slane %v5919, 1
    %v5921 = vadd.f32 %v5919, %v5920
    %v5922 = vadd.f32 %v4935, %v4939
    %v5923 = vrot.slane %v5922, 4
    %v5924 = vadd.f32 %v5922, %v5923
    %v5925 = vrot.slane %v5924, 2
    %v5926 = vadd.f32 %v5924, %v5925
    %v5927 = vrot.slane %v5926, 1
    %v5928 = vadd.f32 %v5926, %v5927
    %v5929 = vadd.f32 %v4937, %v4941
    %v5930 = vrot.slane %v5929, 4
    %v5931 = vadd.f32 %v5929, %v5930
    %v5932 = vrot.slane %v5931, 2
    %v5933 = vadd.f32 %v5931, %v5932
    %v5934 = vrot.slane %v5933, 1
    %v5935 = vadd.f32 %v5933, %v5934
    %v5936 = vadd.f32 %v4978, %v4982
    %v5937 = vrot.slane %v5936, 4
    %v5938 = vadd.f32 %v5936, %v5937
    %v5939 = vrot.slane %v5938, 2
    %v5940 = vadd.f32 %v5938, %v5939
    %v5941 = vrot.slane %v5940, 1
    %v5942 = vadd.f32 %v5940, %v5941
    %v5943 = vadd.f32 %v4980, %v4984
    %v5944 = vrot.slane %v5943, 4
    %v5945 = vadd.f32 %v5943, %v5944
    %v5946 = vrot.slane %v5945, 2
    %v5947 = vadd.f32 %v5945, %v5946
    %v5948 = vrot.slane %v5947, 1
    %v5949 = vadd.f32 %v5947, %v5948
    %v5950 = vadd.f32 %v5021, %v5025
    %v5951 = vrot.slane %v5950, 4
    %v5952 = vadd.f32 %v5950, %v5951
    %v5953 = vrot.slane %v5952, 2
    %v5954 = vadd.f32 %v5952, %v5953
    %v5955 = vrot.slane %v5954, 1
    %v5956 = vadd.f32 %v5954, %v5955
    %v5957 = vadd.f32 %v5023, %v5027
    %v5958 = vrot.slane %v5957, 4
    %v5959 = vadd.f32 %v5957, %v5958
    %v5960 = vrot.slane %v5959, 2
    %v5961 = vadd.f32 %v5959, %v5960
    %v5962 = vrot.slane %v5961, 1
    %v5963 = vadd.f32 %v5961, %v5962
    %v5964 = vadd.f32 %v5064, %v5068
    %v5965 = vrot.slane %v5964, 4
    %v5966 = vadd.f32 %v5964, %v5965
    %v5967 = vrot.slane %v5966, 2
    %v5968 = vadd.f32 %v5966, %v5967
    %v5969 = vrot.slane %v5968, 1
    %v5970 = vadd.f32 %v5968, %v5969
    %v5971 = vadd.f32 %v5066, %v5070
    %v5972 = vrot.slane %v5971, 4
    %v5973 = vadd.f32 %v5971, %v5972
    %v5974 = vrot.slane %v5973, 2
    %v5975 = vadd.f32 %v5973, %v5974
    %v5976 = vrot.slane %v5975, 1
    %v5977 = vadd.f32 %v5975, %v5976
    %v5978 = vadd.f32 %v5107, %v5111
    %v5979 = vrot.slane %v5978, 4
    %v5980 = vadd.f32 %v5978, %v5979
    %v5981 = vrot.slane %v5980, 2
    %v5982 = vadd.f32 %v5980, %v5981
    %v5983 = vrot.slane %v5982, 1
    %v5984 = vadd.f32 %v5982, %v5983
    %v5985 = vadd.f32 %v5109, %v5113
    %v5986 = vrot.slane %v5985, 4
    %v5987 = vadd.f32 %v5985, %v5986
    %v5988 = vrot.slane %v5987, 2
    %v5989 = vadd.f32 %v5987, %v5988
    %v5990 = vrot.slane %v5989, 1
    %v5991 = vadd.f32 %v5989, %v5990
    %v5992 = vadd.f32 %v5150, %v5154
    %v5993 = vrot.slane %v5992, 4
    %v5994 = vadd.f32 %v5992, %v5993
    %v5995 = vrot.slane %v5994, 2
    %v5996 = vadd.f32 %v5994, %v5995
    %v5997 = vrot.slane %v5996, 1
    %v5998 = vadd.f32 %v5996, %v5997
    %v5999 = vadd.f32 %v5152, %v5156
    %v6000 = vrot.slane %v5999, 4
    %v6001 = vadd.f32 %v5999, %v6000
    %v6002 = vrot.slane %v6001, 2
    %v6003 = vadd.f32 %v6001, %v6002
    %v6004 = vrot.slane %v6003, 1
    %v6005 = vadd.f32 %v6003, %v6004
    %v6006 = vadd.f32 %v5193, %v5197
    %v6007 = vrot.slane %v6006, 4
    %v6008 = vadd.f32 %v6006, %v6007
    %v6009 = vrot.slane %v6008, 2
    %v6010 = vadd.f32 %v6008, %v6009
    %v6011 = vrot.slane %v6010, 1
    %v6012 = vadd.f32 %v6010, %v6011
    %v6013 = vadd.f32 %v5195, %v5199
    %v6014 = vrot.slane %v6013, 4
    %v6015 = vadd.f32 %v6013, %v6014
    %v6016 = vrot.slane %v6015, 2
    %v6017 = vadd.f32 %v6015, %v6016
    %v6018 = vrot.slane %v6017, 1
    %v6019 = vadd.f32 %v6017, %v6018
    %v6020 = vadd.f32 %v5236, %v5240
    %v6021 = vrot.slane %v6020, 4
    %v6022 = vadd.f32 %v6020, %v6021
    %v6023 = vrot.slane %v6022, 2
    %v6024 = vadd.f32 %v6022, %v6023
    %v6025 = vrot.slane %v6024, 1
    %v6026 = vadd.f32 %v6024, %v6025
    %v6027 = vadd.f32 %v5238, %v5242
    %v6028 = vrot.slane %v6027, 4
    %v6029 = vadd.f32 %v6027, %v6028
    %v6030 = vrot.slane %v6029, 2
    %v6031 = vadd.f32 %v6029, %v6030
    %v6032 = vrot.slane %v6031, 1
    %v6033 = vadd.f32 %v6031, %v6032
    %v6034 = vadd.f32 %v5279, %v5283
    %v6035 = vrot.slane %v6034, 4
    %v6036 = vadd.f32 %v6034, %v6035
    %v6037 = vrot.slane %v6036, 2
    %v6038 = vadd.f32 %v6036, %v6037
    %v6039 = vrot.slane %v6038, 1
    %v6040 = vadd.f32 %v6038, %v6039
    %v6041 = vadd.f32 %v5281, %v5285
    %v6042 = vrot.slane %v6041, 4
    %v6043 = vadd.f32 %v6041, %v6042
    %v6044 = vrot.slane %v6043, 2
    %v6045 = vadd.f32 %v6043, %v6044
    %v6046 = vrot.slane %v6045, 1
    %v6047 = vadd.f32 %v6045, %v6046
    %v6048 = vadd.f32 %v5322, %v5326
    %v6049 = vrot.slane %v6048, 4
    %v6050 = vadd.f32 %v6048, %v6049
    %v6051 = vrot.slane %v6050, 2
    %v6052 = vadd.f32 %v6050, %v6051
    %v6053 = vrot.slane %v6052, 1
    %v6054 = vadd.f32 %v6052, %v6053
    %v6055 = vadd.f32 %v5324, %v5328
    %v6056 = vrot.slane %v6055, 4
    %v6057 = vadd.f32 %v6055, %v6056
    %v6058 = vrot.slane %v6057, 2
    %v6059 = vadd.f32 %v6057, %v6058
    %v6060 = vrot.slane %v6059, 1
    %v6061 = vadd.f32 %v6059, %v6060
    %v6062 = vadd.f32 %v5365, %v5369
    %v6063 = vrot.slane %v6062, 4
    %v6064 = vadd.f32 %v6062, %v6063
    %v6065 = vrot.slane %v6064, 2
    %v6066 = vadd.f32 %v6064, %v6065
    %v6067 = vrot.slane %v6066, 1
    %v6068 = vadd.f32 %v6066, %v6067
    %v6069 = vadd.f32 %v5367, %v5371
    %v6070 = vrot.slane %v6069, 4
    %v6071 = vadd.f32 %v6069, %v6070
    %v6072 = vrot.slane %v6071, 2
    %v6073 = vadd.f32 %v6071, %v6072
    %v6074 = vrot.slane %v6073, 1
    %v6075 = vadd.f32 %v6073, %v6074
    %v6076 = vadd.f32 %v5408, %v5412
    %v6077 = vrot.slane %v6076, 4
    %v6078 = vadd.f32 %v6076, %v6077
    %v6079 = vrot.slane %v6078, 2
    %v6080 = vadd.f32 %v6078, %v6079
    %v6081 = vrot.slane %v6080, 1
    %v6082 = vadd.f32 %v6080, %v6081
    %v6083 = vadd.f32 %v5410, %v5414
    %v6084 = vrot.slane %v6083, 4
    %v6085 = vadd.f32 %v6083, %v6084
    %v6086 = vrot.slane %v6085, 2
    %v6087 = vadd.f32 %v6085, %v6086
    %v6088 = vrot.slane %v6087, 1
    %v6089 = vadd.f32 %v6087, %v6088
    %v6090 = vadd.f32 %v5451, %v5455
    %v6091 = vrot.slane %v6090, 4
    %v6092 = vadd.f32 %v6090, %v6091
    %v6093 = vrot.slane %v6092, 2
    %v6094 = vadd.f32 %v6092, %v6093
    %v6095 = vrot.slane %v6094, 1
    %v6096 = vadd.f32 %v6094, %v6095
    %v6097 = vadd.f32 %v5453, %v5457
    %v6098 = vrot.slane %v6097, 4
    %v6099 = vadd.f32 %v6097, %v6098
    %v6100 = vrot.slane %v6099, 2
    %v6101 = vadd.f32 %v6099, %v6100
    %v6102 = vrot.slane %v6101, 1
    %v6103 = vadd.f32 %v6101, %v6102
    %v6104 = vadd.f32 %v5494, %v5498
    %v6105 = vrot.slane %v6104, 4
    %v6106 = vadd.f32 %v6104, %v6105
    %v6107 = vrot.slane %v6106, 2
    %v6108 = vadd.f32 %v6106, %v6107
    %v6109 = vrot.slane %v6108, 1
    %v6110 = vadd.f32 %v6108, %v6109
    %v6111 = vadd.f32 %v5496, %v5500
    %v6112 = vrot.slane %v6111, 4
    %v6113 = vadd.f32 %v6111, %v6112
    %v6114 = vrot.slane %v6113, 2
    %v6115 = vadd.f32 %v6113, %v6114
    %v6116 = vrot.slane %v6115, 1
    %v6117 = vadd.f32 %v6115, %v6116
    %v6118 = vadd.f32 %v5537, %v5541
    %v6119 = vrot.slane %v6118, 4
    %v6120 = vadd.f32 %v6118, %v6119
    %v6121 = vrot.slane %v6120, 2
    %v6122 = vadd.f32 %v6120, %v6121
    %v6123 = vrot.slane %v6122, 1
    %v6124 = vadd.f32 %v6122, %v6123
    %v6125 = vadd.f32 %v5539, %v5543
    %v6126 = vrot.slane %v6125, 4
    %v6127 = vadd.f32 %v6125, %v6126
    %v6128 = vrot.slane %v6127, 2
    %v6129 = vadd.f32 %v6127, %v6128
    %v6130 = vrot.slane %v6129, 1
    %v6131 = vadd.f32 %v6129, %v6130
    %v6132 = vadd.f32 %v5580, %v5584
    %v6133 = vrot.slane %v6132, 4
    %v6134 = vadd.f32 %v6132, %v6133
    %v6135 = vrot.slane %v6134, 2
    %v6136 = vadd.f32 %v6134, %v6135
    %v6137 = vrot.slane %v6136, 1
    %v6138 = vadd.f32 %v6136, %v6137
    %v6139 = vadd.f32 %v5582, %v5586
    %v6140 = vrot.slane %v6139, 4
    %v6141 = vadd.f32 %v6139, %v6140
    %v6142 = vrot.slane %v6141, 2
    %v6143 = vadd.f32 %v6141, %v6142
    %v6144 = vrot.slane %v6143, 1
    %v6145 = vadd.f32 %v6143, %v6144
    %v6146 = vadd.f32 %v5623, %v5627
    %v6147 = vrot.slane %v6146, 4
    %v6148 = vadd.f32 %v6146, %v6147
    %v6149 = vrot.slane %v6148, 2
    %v6150 = vadd.f32 %v6148, %v6149
    %v6151 = vrot.slane %v6150, 1
    %v6152 = vadd.f32 %v6150, %v6151
    %v6153 = vadd.f32 %v5625, %v5629
    %v6154 = vrot.slane %v6153, 4
    %v6155 = vadd.f32 %v6153, %v6154
    %v6156 = vrot.slane %v6155, 2
    %v6157 = vadd.f32 %v6155, %v6156
    %v6158 = vrot.slane %v6157, 1
    %v6159 = vadd.f32 %v6157, %v6158
    %v6160 = vadd.f32 %v5666, %v5670
    %v6161 = vrot.slane %v6160, 4
    %v6162 = vadd.f32 %v6160, %v6161
    %v6163 = vrot.slane %v6162, 2
    %v6164 = vadd.f32 %v6162, %v6163
    %v6165 = vrot.slane %v6164, 1
    %v6166 = vadd.f32 %v6164, %v6165
    %v6167 = vadd.f32 %v5668, %v5672
    %v6168 = vrot.slane %v6167, 4
    %v6169 = vadd.f32 %v6167, %v6168
    %v6170 = vrot.slane %v6169, 2
    %v6171 = vadd.f32 %v6169, %v6170
    %v6172 = vrot.slane %v6171, 1
    %v6173 = vadd.f32 %v6171, %v6172
    %v6174 = vadd.f32 %v5709, %v5713
    %v6175 = vrot.slane %v6174, 4
    %v6176 = vadd.f32 %v6174, %v6175
    %v6177 = vrot.slane %v6176, 2
    %v6178 = vadd.f32 %v6176, %v6177
    %v6179 = vrot.slane %v6178, 1
    %v6180 = vadd.f32 %v6178, %v6179
    %v6181 = vadd.f32 %v5711, %v5715
    %v6182 = vrot.slane %v6181, 4
    %v6183 = vadd.f32 %v6181, %v6182
    %v6184 = vrot.slane %v6183, 2
    %v6185 = vadd.f32 %v6183, %v6184
    %v6186 = vrot.slane %v6185, 1
    %v6187 = vadd.f32 %v6185, %v6186
    %v6188 = vadd.f32 %v5752, %v5756
    %v6189 = vrot.slane %v6188, 4
    %v6190 = vadd.f32 %v6188, %v6189
    %v6191 = vrot.slane %v6190, 2
    %v6192 = vadd.f32 %v6190, %v6191
    %v6193 = vrot.slane %v6192, 1
    %v6194 = vadd.f32 %v6192, %v6193
    %v6195 = vadd.f32 %v5754, %v5758
    %v6196 = vrot.slane %v6195, 4
    %v6197 = vadd.f32 %v6195, %v6196
    %v6198 = vrot.slane %v6197, 2
    %v6199 = vadd.f32 %v6197, %v6198
    %v6200 = vrot.slane %v6199, 1
    %v6201 = vadd.f32 %v6199, %v6200
    %v6202 = vadd.f32 %v5795, %v5799
    %v6203 = vrot.slane %v6202, 4
    %v6204 = vadd.f32 %v6202, %v6203
    %v6205 = vrot.slane %v6204, 2
    %v6206 = vadd.f32 %v6204, %v6205
    %v6207 = vrot.slane %v6206, 1
    %v6208 = vadd.f32 %v6206, %v6207
    %v6209 = vadd.f32 %v5797, %v5801
    %v6210 = vrot.slane %v6209, 4
    %v6211 = vadd.f32 %v6209, %v6210
    %v6212 = vrot.slane %v6211, 2
    %v6213 = vadd.f32 %v6211, %v6212
    %v6214 = vrot.slane %v6213, 1
    %v6215 = vadd.f32 %v6213, %v6214
    %v6216 = vadd.f32 %v5838, %v5842
    %v6217 = vrot.slane %v6216, 4
    %v6218 = vadd.f32 %v6216, %v6217
    %v6219 = vrot.slane %v6218, 2
    %v6220 = vadd.f32 %v6218, %v6219
    %v6221 = vrot.slane %v6220, 1
    %v6222 = vadd.f32 %v6220, %v6221
    %v6223 = vadd.f32 %v5840, %v5844
    %v6224 = vrot.slane %v6223, 4
    %v6225 = vadd.f32 %v6223, %v6224
    %v6226 = vrot.slane %v6225, 2
    %v6227 = vadd.f32 %v6225, %v6226
    %v6228 = vrot.slane %v6227, 1
    %v6229 = vadd.f32 %v6227, %v6228
    %v6230 = vadd.f32 %v5881, %v5884
    %v6231 = vrot.slane %v6230, 4
    %v6232 = vadd.f32 %v6230, %v6231
    %v6233 = vrot.slane %v6232, 2
    %v6234 = vadd.f32 %v6232, %v6233
    %v6235 = vrot.slane %v6234, 1
    %v6236 = vadd.f32 %v6234, %v6235
    %v6286 = vcombine.low %v5900, %v5907
    %v6287 = vcombine.low %v5914, %v5921
    %v6288 = vcombine.low %v5928, %v5935
    %v6289 = vcombine.low %v5942, %v5949
    %v6291 = vunpack.c.l.s4 1966171168
    %v6292 = vunpack.c.0.s8 %v6291
    %v6293 = vlaneseq
    %v6294 = vshrl.u32 %v6293, 7
    %v6295 = vsub.s32 %v6292, %v6294
    %v6296 = vrot.slane %v6286, %v6295
    %v6298 = vunpack.c.l.s4 1966171168
    %v6299 = vunpack.c.0.s8 %v6298
    %v6300 = vlaneseq
    %v6301 = vshrl.u32 %v6300, 7
    %v6302 = vsub.s32 %v6299, %v6301
    %v6303 = vrot.slane %v6287, %v6302
    %v6305 = vunpack.c.l.s4 1966171168
    %v6306 = vunpack.c.0.s8 %v6305
    %v6307 = vlaneseq
    %v6308 = vshrl.u32 %v6307, 7
    %v6309 = vsub.s32 %v6306, %v6308
    %v6310 = vrot.slane %v6288, %v6309
    %v6312 = vunpack.c.l.s4 1966171168
    %v6313 = vunpack.c.0.s8 %v6312
    %v6314 = vlaneseq
    %v6315 = vshrl.u32 %v6314, 7
    %v6316 = vsub.s32 %v6313, %v6315
    %v6317 = vrot.slane %v6289, %v6316
    %v6318 = vcombine.low %v6296, %v6303
    %v6319 = vcombine.low %v6310, %v6317
    %v6321 = vunpack.c.l.s4 1966171168
    %v6322 = vunpack.c.0.s8 %v6321
    %v6323 = vlaneseq
    %v6324 = vshrl.u32 %v6323, 7
    %v6325 = vsub.s32 %v6322, %v6324
    %v6326 = vrot.slane %v6318, %v6325
    %v6328 = vunpack.c.l.s4 1966171168
    %v6329 = vunpack.c.0.s8 %v6328
    %v6330 = vlaneseq
    %v6331 = vshrl.u32 %v6330, 7
    %v6332 = vsub.s32 %v6329, %v6331
    %v6333 = vrot.slane %v6319, %v6332
    %v6334 = vcombine.low %v6326, %v6333
    %v6335 = vcombine.low %v5956, %v5963
    %v6336 = vcombine.low %v5970, %v5977
    %v6337 = vcombine.low %v5984, %v5991
    %v6338 = vcombine.low %v5998, %v6005
    %v6340 = vunpack.c.l.s4 1966171168
    %v6341 = vunpack.c.0.s8 %v6340
    %v6342 = vlaneseq
    %v6343 = vshrl.u32 %v6342, 7
    %v6344 = vsub.s32 %v6341, %v6343
    %v6345 = vrot.slane %v6335, %v6344
    %v6347 = vunpack.c.l.s4 1966171168
    %v6348 = vunpack.c.0.s8 %v6347
    %v6349 = vlaneseq
    %v6350 = vshrl.u32 %v6349, 7
    %v6351 = vsub.s32 %v6348, %v6350
    %v6352 = vrot.slane %v6336, %v6351
    %v6354 = vunpack.c.l.s4 1966171168
    %v6355 = vunpack.c.0.s8 %v6354
    %v6356 = vlaneseq
    %v6357 = vshrl.u32 %v6356, 7
    %v6358 = vsub.s32 %v6355, %v6357
    %v6359 = vrot.slane %v6337, %v6358
    %v6361 = vunpack.c.l.s4 1966171168
    %v6362 = vunpack.c.0.s8 %v6361
    %v6363 = vlaneseq
    %v6364 = vshrl.u32 %v6363, 7
    %v6365 = vsub.s32 %v6362, %v6364
    %v6366 = vrot.slane %v6338, %v6365
    %v6367 = vcombine.low %v6345, %v6352
    %v6368 = vcombine.low %v6359, %v6366
    %v6370 = vunpack.c.l.s4 1966171168
    %v6371 = vunpack.c.0.s8 %v6370
    %v6372 = vlaneseq
    %v6373 = vshrl.u32 %v6372, 7
    %v6374 = vsub.s32 %v6371, %v6373
    %v6375 = vrot.slane %v6367, %v6374
    %v6377 = vunpack.c.l.s4 1966171168
    %v6378 = vunpack.c.0.s8 %v6377
    %v6379 = vlaneseq
    %v6380 = vshrl.u32 %v6379, 7
    %v6381 = vsub.s32 %v6378, %v6380
    %v6382 = vrot.slane %v6368, %v6381
    %v6383 = vcombine.low %v6375, %v6382
    %v6384 = vcombine.low %v6012, %v6019
    %v6385 = vcombine.low %v6026, %v6033
    %v6386 = vcombine.low %v6040, %v6047
    %v6387 = vcombine.low %v6054, %v6061
    %v6389 = vunpack.c.l.s4 1966171168
    %v6390 = vunpack.c.0.s8 %v6389
    %v6391 = vlaneseq
    %v6392 = vshrl.u32 %v6391, 7
    %v6393 = vsub.s32 %v6390, %v6392
    %v6394 = vrot.slane %v6384, %v6393
    %v6396 = vunpack.c.l.s4 1966171168
    %v6397 = vunpack.c.0.s8 %v6396
    %v6398 = vlaneseq
    %v6399 = vshrl.u32 %v6398, 7
    %v6400 = vsub.s32 %v6397, %v6399
    %v6401 = vrot.slane %v6385, %v6400
    %v6403 = vunpack.c.l.s4 1966171168
    %v6404 = vunpack.c.0.s8 %v6403
    %v6405 = vlaneseq
    %v6406 = vshrl.u32 %v6405, 7
    %v6407 = vsub.s32 %v6404, %v6406
    %v6408 = vrot.slane %v6386, %v6407
    %v6410 = vunpack.c.l.s4 1966171168
    %v6411 = vunpack.c.0.s8 %v6410
    %v6412 = vlaneseq
    %v6413 = vshrl.u32 %v6412, 7
    %v6414 = vsub.s32 %v6411, %v6413
    %v6415 = vrot.slane %v6387, %v6414
    %v6416 = vcombine.low %v6394, %v6401
    %v6417 = vcombine.low %v6408, %v6415
    %v6419 = vunpack.c.l.s4 1966171168
    %v6420 = vunpack.c.0.s8 %v6419
    %v6421 = vlaneseq
    %v6422 = vshrl.u32 %v6421, 7
    %v6423 = vsub.s32 %v6420, %v6422
    %v6424 = vrot.slane %v6416, %v6423
    %v6426 = vunpack.c.l.s4 1966171168
    %v6427 = vunpack.c.0.s8 %v6426
    %v6428 = vlaneseq
    %v6429 = vshrl.u32 %v6428, 7
    %v6430 = vsub.s32 %v6427, %v6429
    %v6431 = vrot.slane %v6417, %v6430
    %v6432 = vcombine.low %v6424, %v6431
    %v6433 = vcombine.low %v6068, %v6075
    %v6434 = vcombine.low %v6082, %v6089
    %v6435 = vcombine.low %v6096, %v6103
    %v6436 = vcombine.low %v6110, %v6117
    %v6438 = vunpack.c.l.s4 1966171168
    %v6439 = vunpack.c.0.s8 %v6438
    %v6440 = vlaneseq
    %v6441 = vshrl.u32 %v6440, 7
    %v6442 = vsub.s32 %v6439, %v6441
    %v6443 = vrot.slane %v6433, %v6442
    %v6445 = vunpack.c.l.s4 1966171168
    %v6446 = vunpack.c.0.s8 %v6445
    %v6447 = vlaneseq
    %v6448 = vshrl.u32 %v6447, 7
    %v6449 = vsub.s32 %v6446, %v6448
    %v6450 = vrot.slane %v6434, %v6449
    %v6452 = vunpack.c.l.s4 1966171168
    %v6453 = vunpack.c.0.s8 %v6452
    %v6454 = vlaneseq
    %v6455 = vshrl.u32 %v6454, 7
    %v6456 = vsub.s32 %v6453, %v6455
    %v6457 = vrot.slane %v6435, %v6456
    %v6459 = vunpack.c.l.s4 1966171168
    %v6460 = vunpack.c.0.s8 %v6459
    %v6461 = vlaneseq
    %v6462 = vshrl.u32 %v6461, 7
    %v6463 = vsub.s32 %v6460, %v6462
    %v6464 = vrot.slane %v6436, %v6463
    %v6465 = vcombine.low %v6443, %v6450
    %v6466 = vcombine.low %v6457, %v6464
    %v6468 = vunpack.c.l.s4 1966171168
    %v6469 = vunpack.c.0.s8 %v6468
    %v6470 = vlaneseq
    %v6471 = vshrl.u32 %v6470, 7
    %v6472 = vsub.s32 %v6469, %v6471
    %v6473 = vrot.slane %v6465, %v6472
    %v6475 = vunpack.c.l.s4 1966171168
    %v6476 = vunpack.c.0.s8 %v6475
    %v6477 = vlaneseq
    %v6478 = vshrl.u32 %v6477, 7
    %v6479 = vsub.s32 %v6476, %v6478
    %v6480 = vrot.slane %v6466, %v6479
    %v6481 = vcombine.low %v6473, %v6480
    %v6482 = vcombine.low %v6124, %v6131
    %v6483 = vcombine.low %v6138, %v6145
    %v6484 = vcombine.low %v6152, %v6159
    %v6485 = vcombine.low %v6166, %v6173
    %v6487 = vunpack.c.l.s4 1966171168
    %v6488 = vunpack.c.0.s8 %v6487
    %v6489 = vlaneseq
    %v6490 = vshrl.u32 %v6489, 7
    %v6491 = vsub.s32 %v6488, %v6490
    %v6492 = vrot.slane %v6482, %v6491
    %v6494 = vunpack.c.l.s4 1966171168
    %v6495 = vunpack.c.0.s8 %v6494
    %v6496 = vlaneseq
    %v6497 = vshrl.u32 %v6496, 7
    %v6498 = vsub.s32 %v6495, %v6497
    %v6499 = vrot.slane %v6483, %v6498
    %v6501 = vunpack.c.l.s4 1966171168
    %v6502 = vunpack.c.0.s8 %v6501
    %v6503 = vlaneseq
    %v6504 = vshrl.u32 %v6503, 7
    %v6505 = vsub.s32 %v6502, %v6504
    %v6506 = vrot.slane %v6484, %v6505
    %v6508 = vunpack.c.l.s4 1966171168
    %v6509 = vunpack.c.0.s8 %v6508
    %v6510 = vlaneseq
    %v6511 = vshrl.u32 %v6510, 7
    %v6512 = vsub.s32 %v6509, %v6511
    %v6513 = vrot.slane %v6485, %v6512
    %v6514 = vcombine.low %v6492, %v6499
    %v6515 = vcombine.low %v6506, %v6513
    %v6517 = vunpack.c.l.s4 1966171168
    %v6518 = vunpack.c.0.s8 %v6517
    %v6519 = vlaneseq
    %v6520 = vshrl.u32 %v6519, 7
    %v6521 = vsub.s32 %v6518, %v6520
    %v6522 = vrot.slane %v6514, %v6521
    %v6524 = vunpack.c.l.s4 1966171168
    %v6525 = vunpack.c.0.s8 %v6524
    %v6526 = vlaneseq
    %v6527 = vshrl.u32 %v6526, 7
    %v6528 = vsub.s32 %v6525, %v6527
    %v6529 = vrot.slane %v6515, %v6528
    %v6530 = vcombine.low %v6522, %v6529
    %v6531 = vcombine.low %v6180, %v6187
    %v6532 = vcombine.low %v6194, %v6201
    %v6533 = vcombine.low %v6208, %v6215
    %v6534 = vcombine.low %v6222, %v6229
    %v6536 = vunpack.c.l.s4 1966171168
    %v6537 = vunpack.c.0.s8 %v6536
    %v6538 = vlaneseq
    %v6539 = vshrl.u32 %v6538, 7
    %v6540 = vsub.s32 %v6537, %v6539
    %v6541 = vrot.slane %v6531, %v6540
    %v6543 = vunpack.c.l.s4 1966171168
    %v6544 = vunpack.c.0.s8 %v6543
    %v6545 = vlaneseq
    %v6546 = vshrl.u32 %v6545, 7
    %v6547 = vsub.s32 %v6544, %v6546
    %v6548 = vrot.slane %v6532, %v6547
    %v6550 = vunpack.c.l.s4 1966171168
    %v6551 = vunpack.c.0.s8 %v6550
    %v6552 = vlaneseq
    %v6553 = vshrl.u32 %v6552, 7
    %v6554 = vsub.s32 %v6551, %v6553
    %v6555 = vrot.slane %v6533, %v6554
    %v6557 = vunpack.c.l.s4 1966171168
    %v6558 = vunpack.c.0.s8 %v6557
    %v6559 = vlaneseq
    %v6560 = vshrl.u32 %v6559, 7
    %v6561 = vsub.s32 %v6558, %v6560
    %v6562 = vrot.slane %v6534, %v6561
    %v6563 = vcombine.low %v6541, %v6548
    %v6564 = vcombine.low %v6555, %v6562
    %v6566 = vunpack.c.l.s4 1966171168
    %v6567 = vunpack.c.0.s8 %v6566
    %v6568 = vlaneseq
    %v6569 = vshrl.u32 %v6568, 7
    %v6570 = vsub.s32 %v6567, %v6569
    %v6571 = vrot.slane %v6563, %v6570
    %v6573 = vunpack.c.l.s4 1966171168
    %v6574 = vunpack.c.0.s8 %v6573
    %v6575 = vlaneseq
    %v6576 = vshrl.u32 %v6575, 7
    %v6577 = vsub.s32 %v6574, %v6576
    %v6578 = vrot.slane %v6564, %v6577
    %v6579 = vcombine.low %v6571, %v6578
    %v6581 = vunpack.c.l.s4 1966171168
    %v6582 = vunpack.c.0.s8 %v6581
    %v6583 = vlaneseq
    %v6584 = vshrl.u32 %v6583, 7
    %v6585 = vsub.s32 %v6582, %v6584
    %v6586 = vrot.slane %v6236, %v6585
    %v6588 = vunpack.c.l.s4 1966171168
    %v6589 = vunpack.c.0.s8 %v6588
    %v6590 = vlaneseq
    %v6591 = vshrl.u32 %v6590, 7
    %v6592 = vsub.s32 %v6589, %v6591
    %v6593 = vrot.slane %v6586, %v6592
    %v6601 = vadd.f32 %v5887, %v6334
    %v6602 = vadd.f32 %v5888, %v6383
    %v6603 = vadd.f32 %v5889, %v6432
    %v6604 = vadd.f32 %v5890, %v6481
    %v6605 = vadd.f32 %v5891, %v6530
    %v6606 = vadd.f32 %v5892, %v6579
    %v6607 = vadd.f32 %v5893, %v6593
    %6608 = vst [vmem:[#allocation7] sm:$0xff] %v6601
    %6609 = vst [vmem:[#allocation7 + $0x8] sm:$0xff] %v6602
    %6610 = vst [vmem:[#allocation7 + $0x10] sm:$0xff] %v6603
    %6611 = vst [vmem:[#allocation7 + $0x18] sm:$0xff] %v6604
    %6612 = vst [vmem:[#allocation7 + $0x20] sm:$0xff] %v6605
    %6613 = vst [vmem:[#allocation7 + $0x28] sm:$0xff] %v6606
    %v6614 = vlaneseq
    %vm6615 = vcmp.ge.s32.totalorder %v6614, 0
    %vm6616 = vcmp.lt.s32.totalorder %v6614, 128
    %vm6617 = vmand %vm6615, %vm6616
    %6618 = vst.msk [vmem:[#allocation7 + $0x30] sm:$0x1] %vm6617, %v6607
    %v6619 = vld [vmem:[#allocation8] sm:$0xff]
    %v6620 = vld [vmem:[#allocation8 + $0x8] sm:$0xff]
    %v6621 = vld [vmem:[#allocation8 + $0x10] sm:$0xff]
    %v6622 = vld [vmem:[#allocation8 + $0x18] sm:$0xff]
    %v6623 = vld [vmem:[#allocation8 + $0x20] sm:$0xff]
    %v6624 = vld [vmem:[#allocation8 + $0x28] sm:$0xff]
    %v6625 = vld [vmem:[#allocation8 + $0x30] sm:$0x1]
    %v6626 = vmul.f32 %v4849, %v4849
    %v6627 = vmul.f32 %v4851, %v4851
    %v6628 = vmul.f32 %v4892, %v4892
    %v6629 = vmul.f32 %v4894, %v4894
    %v6630 = vmul.f32 %v4935, %v4935
    %v6631 = vmul.f32 %v4937, %v4937
    %v6632 = vmul.f32 %v4978, %v4978
    %v6633 = vmul.f32 %v4980, %v4980
    %v6634 = vmul.f32 %v5021, %v5021
    %v6635 = vmul.f32 %v5023, %v5023
    %v6636 = vmul.f32 %v5064, %v5064
    %v6637 = vmul.f32 %v5066, %v5066
    %v6638 = vmul.f32 %v5107, %v5107
    %v6639 = vmul.f32 %v5109, %v5109
    %v6640 = vmul.f32 %v5150, %v5150
    %v6641 = vmul.f32 %v5152, %v5152
    %v6642 = vmul.f32 %v5193, %v5193
    %v6643 = vmul.f32 %v5195, %v5195
    %v6644 = vmul.f32 %v5236, %v5236
    %v6645 = vmul.f32 %v5238, %v5238
    %v6646 = vmul.f32 %v5279, %v5279
    %v6647 = vmul.f32 %v5281, %v5281
    %v6648 = vmul.f32 %v5322, %v5322
    %v6649 = vmul.f32 %v5324, %v5324
    %v6650 = vmul.f32 %v5365, %v5365
    %v6651 = vmul.f32 %v5367, %v5367
    %v6652 = vmul.f32 %v5408, %v5408
    %v6653 = vmul.f32 %v5410, %v5410
    %v6654 = vmul.f32 %v5451, %v5451
    %v6655 = vmul.f32 %v5453, %v5453
    %v6656 = vmul.f32 %v5494, %v5494
    %v6657 = vmul.f32 %v5496, %v5496
    %v6658 = vmul.f32 %v5537, %v5537
    %v6659 = vmul.f32 %v5539, %v5539
    %v6660 = vmul.f32 %v5580, %v5580
    %v6661 = vmul.f32 %v5582, %v5582
    %v6662 = vmul.f32 %v5623, %v5623
    %v6663 = vmul.f32 %v5625, %v5625
    %v6664 = vmul.f32 %v5666, %v5666
    %v6665 = vmul.f32 %v5668, %v5668
    %v6666 = vmul.f32 %v5709, %v5709
    %v6667 = vmul.f32 %v5711, %v5711
    %v6668 = vmul.f32 %v5752, %v5752
    %v6669 = vmul.f32 %v5754, %v5754
    %v6670 = vmul.f32 %v5795, %v5795
    %v6671 = vmul.f32 %v5797, %v5797
    %v6672 = vmul.f32 %v5838, %v5838
    %v6673 = vmul.f32 %v5840, %v5840
    %v6674 = vmul.f32 %v5881, %v5881
    %v6675 = vmul.f32 %v4853, %v4853
    %v6676 = vmul.f32 %v4855, %v4855
    %v6677 = vmul.f32 %v4896, %v4896
    %v6678 = vmul.f32 %v4898, %v4898
    %v6679 = vmul.f32 %v4939, %v4939
    %v6680 = vmul.f32 %v4941, %v4941
    %v6681 = vmul.f32 %v4982, %v4982
    %v6682 = vmul.f32 %v4984, %v4984
    %v6683 = vmul.f32 %v5025, %v5025
    %v6684 = vmul.f32 %v5027, %v5027
    %v6685 = vmul.f32 %v5068, %v5068
    %v6686 = vmul.f32 %v5070, %v5070
    %v6687 = vmul.f32 %v5111, %v5111
    %v6688 = vmul.f32 %v5113, %v5113
    %v6689 = vmul.f32 %v5154, %v5154
    %v6690 = vmul.f32 %v5156, %v5156
    %v6691 = vmul.f32 %v5197, %v5197
    %v6692 = vmul.f32 %v5199, %v5199
    %v6693 = vmul.f32 %v5240, %v5240
    %v6694 = vmul.f32 %v5242, %v5242
    %v6695 = vmul.f32 %v5283, %v5283
    %v6696 = vmul.f32 %v5285, %v5285
    %v6697 = vmul.f32 %v5326, %v5326
    %v6698 = vmul.f32 %v5328, %v5328
    %v6699 = vmul.f32 %v5369, %v5369
    %v6700 = vmul.f32 %v5371, %v5371
    %v6701 = vmul.f32 %v5412, %v5412
    %v6702 = vmul.f32 %v5414, %v5414
    %v6703 = vmul.f32 %v5455, %v5455
    %v6704 = vmul.f32 %v5457, %v5457
    %v6705 = vmul.f32 %v5498, %v5498
    %v6706 = vmul.f32 %v5500, %v5500
    %v6707 = vmul.f32 %v5541, %v5541
    %v6708 = vmul.f32 %v5543, %v5543
    %v6709 = vmul.f32 %v5584, %v5584
    %v6710 = vmul.f32 %v5586, %v5586
    %v6711 = vmul.f32 %v5627, %v5627
    %v6712 = vmul.f32 %v5629, %v5629
    %v6713 = vmul.f32 %v5670, %v5670
    %v6714 = vmul.f32 %v5672, %v5672
    %v6715 = vmul.f32 %v5713, %v5713
    %v6716 = vmul.f32 %v5715, %v5715
    %v6717 = vmul.f32 %v5756, %v5756
    %v6718 = vmul.f32 %v5758, %v5758
    %v6719 = vmul.f32 %v5799, %v5799
    %v6720 = vmul.f32 %v5801, %v5801
    %v6721 = vmul.f32 %v5842, %v5842
    %v6722 = vmul.f32 %v5844, %v5844
    %v6723 = vmul.f32 %v5884, %v5884
    %v6724 = vadd.f32 %v6626, %v6675
    %v6725 = vrot.slane %v6724, 4
    %v6726 = vadd.f32 %v6724, %v6725
    %v6727 = vrot.slane %v6726, 2
    %v6728 = vadd.f32 %v6726, %v6727
    %v6729 = vrot.slane %v6728, 1
    %v6730 = vadd.f32 %v6728, %v6729
    %v6731 = vadd.f32 %v6627, %v6676
    %v6732 = vrot.slane %v6731, 4
    %v6733 = vadd.f32 %v6731, %v6732
    %v6734 = vrot.slane %v6733, 2
    %v6735 = vadd.f32 %v6733, %v6734
    %v6736 = vrot.slane %v6735, 1
    %v6737 = vadd.f32 %v6735, %v6736
    %v6738 = vadd.f32 %v6628, %v6677
    %v6739 = vrot.slane %v6738, 4
    %v6740 = vadd.f32 %v6738, %v6739
    %v6741 = vrot.slane %v6740, 2
    %v6742 = vadd.f32 %v6740, %v6741
    %v6743 = vrot.slane %v6742, 1
    %v6744 = vadd.f32 %v6742, %v6743
    %v6745 = vadd.f32 %v6629, %v6678
    %v6746 = vrot.slane %v6745, 4
    %v6747 = vadd.f32 %v6745, %v6746
    %v6748 = vrot.slane %v6747, 2
    %v6749 = vadd.f32 %v6747, %v6748
    %v6750 = vrot.slane %v6749, 1
    %v6751 = vadd.f32 %v6749, %v6750
    %v6752 = vadd.f32 %v6630, %v6679
    %v6753 = vrot.slane %v6752, 4
    %v6754 = vadd.f32 %v6752, %v6753
    %v6755 = vrot.slane %v6754, 2
    %v6756 = vadd.f32 %v6754, %v6755
    %v6757 = vrot.slane %v6756, 1
    %v6758 = vadd.f32 %v6756, %v6757
    %v6759 = vadd.f32 %v6631, %v6680
    %v6760 = vrot.slane %v6759, 4
    %v6761 = vadd.f32 %v6759, %v6760
    %v6762 = vrot.slane %v6761, 2
    %v6763 = vadd.f32 %v6761, %v6762
    %v6764 = vrot.slane %v6763, 1
    %v6765 = vadd.f32 %v6763, %v6764
    %v6766 = vadd.f32 %v6632, %v6681
    %v6767 = vrot.slane %v6766, 4
    %v6768 = vadd.f32 %v6766, %v6767
    %v6769 = vrot.slane %v6768, 2
    %v6770 = vadd.f32 %v6768, %v6769
    %v6771 = vrot.slane %v6770, 1
    %v6772 = vadd.f32 %v6770, %v6771
    %v6773 = vadd.f32 %v6633, %v6682
    %v6774 = vrot.slane %v6773, 4
    %v6775 = vadd.f32 %v6773, %v6774
    %v6776 = vrot.slane %v6775, 2
    %v6777 = vadd.f32 %v6775, %v6776
    %v6778 = vrot.slane %v6777, 1
    %v6779 = vadd.f32 %v6777, %v6778
    %v6780 = vadd.f32 %v6634, %v6683
    %v6781 = vrot.slane %v6780, 4
    %v6782 = vadd.f32 %v6780, %v6781
    %v6783 = vrot.slane %v6782, 2
    %v6784 = vadd.f32 %v6782, %v6783
    %v6785 = vrot.slane %v6784, 1
    %v6786 = vadd.f32 %v6784, %v6785
    %v6787 = vadd.f32 %v6635, %v6684
    %v6788 = vrot.slane %v6787, 4
    %v6789 = vadd.f32 %v6787, %v6788
    %v6790 = vrot.slane %v6789, 2
    %v6791 = vadd.f32 %v6789, %v6790
    %v6792 = vrot.slane %v6791, 1
    %v6793 = vadd.f32 %v6791, %v6792
    %v6794 = vadd.f32 %v6636, %v6685
    %v6795 = vrot.slane %v6794, 4
    %v6796 = vadd.f32 %v6794, %v6795
    %v6797 = vrot.slane %v6796, 2
    %v6798 = vadd.f32 %v6796, %v6797
    %v6799 = vrot.slane %v6798, 1
    %v6800 = vadd.f32 %v6798, %v6799
    %v6801 = vadd.f32 %v6637, %v6686
    %v6802 = vrot.slane %v6801, 4
    %v6803 = vadd.f32 %v6801, %v6802
    %v6804 = vrot.slane %v6803, 2
    %v6805 = vadd.f32 %v6803, %v6804
    %v6806 = vrot.slane %v6805, 1
    %v6807 = vadd.f32 %v6805, %v6806
    %v6808 = vadd.f32 %v6638, %v6687
    %v6809 = vrot.slane %v6808, 4
    %v6810 = vadd.f32 %v6808, %v6809
    %v6811 = vrot.slane %v6810, 2
    %v6812 = vadd.f32 %v6810, %v6811
    %v6813 = vrot.slane %v6812, 1
    %v6814 = vadd.f32 %v6812, %v6813
    %v6815 = vadd.f32 %v6639, %v6688
    %v6816 = vrot.slane %v6815, 4
    %v6817 = vadd.f32 %v6815, %v6816
    %v6818 = vrot.slane %v6817, 2
    %v6819 = vadd.f32 %v6817, %v6818
    %v6820 = vrot.slane %v6819, 1
    %v6821 = vadd.f32 %v6819, %v6820
    %v6822 = vadd.f32 %v6640, %v6689
    %v6823 = vrot.slane %v6822, 4
    %v6824 = vadd.f32 %v6822, %v6823
    %v6825 = vrot.slane %v6824, 2
    %v6826 = vadd.f32 %v6824, %v6825
    %v6827 = vrot.slane %v6826, 1
    %v6828 = vadd.f32 %v6826, %v6827
    %v6829 = vadd.f32 %v6641, %v6690
    %v6830 = vrot.slane %v6829, 4
    %v6831 = vadd.f32 %v6829, %v6830
    %v6832 = vrot.slane %v6831, 2
    %v6833 = vadd.f32 %v6831, %v6832
    %v6834 = vrot.slane %v6833, 1
    %v6835 = vadd.f32 %v6833, %v6834
    %v6836 = vadd.f32 %v6642, %v6691
    %v6837 = vrot.slane %v6836, 4
    %v6838 = vadd.f32 %v6836, %v6837
    %v6839 = vrot.slane %v6838, 2
    %v6840 = vadd.f32 %v6838, %v6839
    %v6841 = vrot.slane %v6840, 1
    %v6842 = vadd.f32 %v6840, %v6841
    %v6843 = vadd.f32 %v6643, %v6692
    %v6844 = vrot.slane %v6843, 4
    %v6845 = vadd.f32 %v6843, %v6844
    %v6846 = vrot.slane %v6845, 2
    %v6847 = vadd.f32 %v6845, %v6846
    %v6848 = vrot.slane %v6847, 1
    %v6849 = vadd.f32 %v6847, %v6848
    %v6850 = vadd.f32 %v6644, %v6693
    %v6851 = vrot.slane %v6850, 4
    %v6852 = vadd.f32 %v6850, %v6851
    %v6853 = vrot.slane %v6852, 2
    %v6854 = vadd.f32 %v6852, %v6853
    %v6855 = vrot.slane %v6854, 1
    %v6856 = vadd.f32 %v6854, %v6855
    %v6857 = vadd.f32 %v6645, %v6694
    %v6858 = vrot.slane %v6857, 4
    %v6859 = vadd.f32 %v6857, %v6858
    %v6860 = vrot.slane %v6859, 2
    %v6861 = vadd.f32 %v6859, %v6860
    %v6862 = vrot.slane %v6861, 1
    %v6863 = vadd.f32 %v6861, %v6862
    %v6864 = vadd.f32 %v6646, %v6695
    %v6865 = vrot.slane %v6864, 4
    %v6866 = vadd.f32 %v6864, %v6865
    %v6867 = vrot.slane %v6866, 2
    %v6868 = vadd.f32 %v6866, %v6867
    %v6869 = vrot.slane %v6868, 1
    %v6870 = vadd.f32 %v6868, %v6869
    %v6871 = vadd.f32 %v6647, %v6696
    %v6872 = vrot.slane %v6871, 4
    %v6873 = vadd.f32 %v6871, %v6872
    %v6874 = vrot.slane %v6873, 2
    %v6875 = vadd.f32 %v6873, %v6874
    %v6876 = vrot.slane %v6875, 1
    %v6877 = vadd.f32 %v6875, %v6876
    %v6878 = vadd.f32 %v6648, %v6697
    %v6879 = vrot.slane %v6878, 4
    %v6880 = vadd.f32 %v6878, %v6879
    %v6881 = vrot.slane %v6880, 2
    %v6882 = vadd.f32 %v6880, %v6881
    %v6883 = vrot.slane %v6882, 1
    %v6884 = vadd.f32 %v6882, %v6883
    %v6885 = vadd.f32 %v6649, %v6698
    %v6886 = vrot.slane %v6885, 4
    %v6887 = vadd.f32 %v6885, %v6886
    %v6888 = vrot.slane %v6887, 2
    %v6889 = vadd.f32 %v6887, %v6888
    %v6890 = vrot.slane %v6889, 1
    %v6891 = vadd.f32 %v6889, %v6890
    %v6892 = vadd.f32 %v6650, %v6699
    %v6893 = vrot.slane %v6892, 4
    %v6894 = vadd.f32 %v6892, %v6893
    %v6895 = vrot.slane %v6894, 2
    %v6896 = vadd.f32 %v6894, %v6895
    %v6897 = vrot.slane %v6896, 1
    %v6898 = vadd.f32 %v6896, %v6897
    %v6899 = vadd.f32 %v6651, %v6700
    %v6900 = vrot.slane %v6899, 4
    %v6901 = vadd.f32 %v6899, %v6900
    %v6902 = vrot.slane %v6901, 2
    %v6903 = vadd.f32 %v6901, %v6902
    %v6904 = vrot.slane %v6903, 1
    %v6905 = vadd.f32 %v6903, %v6904
    %v6906 = vadd.f32 %v6652, %v6701
    %v6907 = vrot.slane %v6906, 4
    %v6908 = vadd.f32 %v6906, %v6907
    %v6909 = vrot.slane %v6908, 2
    %v6910 = vadd.f32 %v6908, %v6909
    %v6911 = vrot.slane %v6910, 1
    %v6912 = vadd.f32 %v6910, %v6911
    %v6913 = vadd.f32 %v6653, %v6702
    %v6914 = vrot.slane %v6913, 4
    %v6915 = vadd.f32 %v6913, %v6914
    %v6916 = vrot.slane %v6915, 2
    %v6917 = vadd.f32 %v6915, %v6916
    %v6918 = vrot.slane %v6917, 1
    %v6919 = vadd.f32 %v6917, %v6918
    %v6920 = vadd.f32 %v6654, %v6703
    %v6921 = vrot.slane %v6920, 4
    %v6922 = vadd.f32 %v6920, %v6921
    %v6923 = vrot.slane %v6922, 2
    %v6924 = vadd.f32 %v6922, %v6923
    %v6925 = vrot.slane %v6924, 1
    %v6926 = vadd.f32 %v6924, %v6925
    %v6927 = vadd.f32 %v6655, %v6704
    %v6928 = vrot.slane %v6927, 4
    %v6929 = vadd.f32 %v6927, %v6928
    %v6930 = vrot.slane %v6929, 2
    %v6931 = vadd.f32 %v6929, %v6930
    %v6932 = vrot.slane %v6931, 1
    %v6933 = vadd.f32 %v6931, %v6932
    %v6934 = vadd.f32 %v6656, %v6705
    %v6935 = vrot.slane %v6934, 4
    %v6936 = vadd.f32 %v6934, %v6935
    %v6937 = vrot.slane %v6936, 2
    %v6938 = vadd.f32 %v6936, %v6937
    %v6939 = vrot.slane %v6938, 1
    %v6940 = vadd.f32 %v6938, %v6939
    %v6941 = vadd.f32 %v6657, %v6706
    %v6942 = vrot.slane %v6941, 4
    %v6943 = vadd.f32 %v6941, %v6942
    %v6944 = vrot.slane %v6943, 2
    %v6945 = vadd.f32 %v6943, %v6944
    %v6946 = vrot.slane %v6945, 1
    %v6947 = vadd.f32 %v6945, %v6946
    %v6948 = vadd.f32 %v6658, %v6707
    %v6949 = vrot.slane %v6948, 4
    %v6950 = vadd.f32 %v6948, %v6949
    %v6951 = vrot.slane %v6950, 2
    %v6952 = vadd.f32 %v6950, %v6951
    %v6953 = vrot.slane %v6952, 1
    %v6954 = vadd.f32 %v6952, %v6953
    %v6955 = vadd.f32 %v6659, %v6708
    %v6956 = vrot.slane %v6955, 4
    %v6957 = vadd.f32 %v6955, %v6956
    %v6958 = vrot.slane %v6957, 2
    %v6959 = vadd.f32 %v6957, %v6958
    %v6960 = vrot.slane %v6959, 1
    %v6961 = vadd.f32 %v6959, %v6960
    %v6962 = vadd.f32 %v6660, %v6709
    %v6963 = vrot.slane %v6962, 4
    %v6964 = vadd.f32 %v6962, %v6963
    %v6965 = vrot.slane %v6964, 2
    %v6966 = vadd.f32 %v6964, %v6965
    %v6967 = vrot.slane %v6966, 1
    %v6968 = vadd.f32 %v6966, %v6967
    %v6969 = vadd.f32 %v6661, %v6710
    %v6970 = vrot.slane %v6969, 4
    %v6971 = vadd.f32 %v6969, %v6970
    %v6972 = vrot.slane %v6971, 2
    %v6973 = vadd.f32 %v6971, %v6972
    %v6974 = vrot.slane %v6973, 1
    %v6975 = vadd.f32 %v6973, %v6974
    %v6976 = vadd.f32 %v6662, %v6711
    %v6977 = vrot.slane %v6976, 4
    %v6978 = vadd.f32 %v6976, %v6977
    %v6979 = vrot.slane %v6978, 2
    %v6980 = vadd.f32 %v6978, %v6979
    %v6981 = vrot.slane %v6980, 1
    %v6982 = vadd.f32 %v6980, %v6981
    %v6983 = vadd.f32 %v6663, %v6712
    %v6984 = vrot.slane %v6983, 4
    %v6985 = vadd.f32 %v6983, %v6984
    %v6986 = vrot.slane %v6985, 2
    %v6987 = vadd.f32 %v6985, %v6986
    %v6988 = vrot.slane %v6987, 1
    %v6989 = vadd.f32 %v6987, %v6988
    %v6990 = vadd.f32 %v6664, %v6713
    %v6991 = vrot.slane %v6990, 4
    %v6992 = vadd.f32 %v6990, %v6991
    %v6993 = vrot.slane %v6992, 2
    %v6994 = vadd.f32 %v6992, %v6993
    %v6995 = vrot.slane %v6994, 1
    %v6996 = vadd.f32 %v6994, %v6995
    %v6997 = vadd.f32 %v6665, %v6714
    %v6998 = vrot.slane %v6997, 4
    %v6999 = vadd.f32 %v6997, %v6998
    %v7000 = vrot.slane %v6999, 2
    %v7001 = vadd.f32 %v6999, %v7000
    %v7002 = vrot.slane %v7001, 1
    %v7003 = vadd.f32 %v7001, %v7002
    %v7004 = vadd.f32 %v6666, %v6715
    %v7005 = vrot.slane %v7004, 4
    %v7006 = vadd.f32 %v7004, %v7005
    %v7007 = vrot.slane %v7006, 2
    %v7008 = vadd.f32 %v7006, %v7007
    %v7009 = vrot.slane %v7008, 1
    %v7010 = vadd.f32 %v7008, %v7009
    %v7011 = vadd.f32 %v6667, %v6716
    %v7012 = vrot.slane %v7011, 4
    %v7013 = vadd.f32 %v7011, %v7012
    %v7014 = vrot.slane %v7013, 2
    %v7015 = vadd.f32 %v7013, %v7014
    %v7016 = vrot.slane %v7015, 1
    %v7017 = vadd.f32 %v7015, %v7016
    %v7018 = vadd.f32 %v6668, %v6717
    %v7019 = vrot.slane %v7018, 4
    %v7020 = vadd.f32 %v7018, %v7019
    %v7021 = vrot.slane %v7020, 2
    %v7022 = vadd.f32 %v7020, %v7021
    %v7023 = vrot.slane %v7022, 1
    %v7024 = vadd.f32 %v7022, %v7023
    %v7025 = vadd.f32 %v6669, %v6718
    %v7026 = vrot.slane %v7025, 4
    %v7027 = vadd.f32 %v7025, %v7026
    %v7028 = vrot.slane %v7027, 2
    %v7029 = vadd.f32 %v7027, %v7028
    %v7030 = vrot.slane %v7029, 1
    %v7031 = vadd.f32 %v7029, %v7030
    %v7032 = vadd.f32 %v6670, %v6719
    %v7033 = vrot.slane %v7032, 4
    %v7034 = vadd.f32 %v7032, %v7033
    %v7035 = vrot.slane %v7034, 2
    %v7036 = vadd.f32 %v7034, %v7035
    %v7037 = vrot.slane %v7036, 1
    %v7038 = vadd.f32 %v7036, %v7037
    %v7039 = vadd.f32 %v6671, %v6720
    %v7040 = vrot.slane %v7039, 4
    %v7041 = vadd.f32 %v7039, %v7040
    %v7042 = vrot.slane %v7041, 2
    %v7043 = vadd.f32 %v7041, %v7042
    %v7044 = vrot.slane %v7043, 1
    %v7045 = vadd.f32 %v7043, %v7044
    %v7046 = vadd.f32 %v6672, %v6721
    %v7047 = vrot.slane %v7046, 4
    %v7048 = vadd.f32 %v7046, %v7047
    %v7049 = vrot.slane %v7048, 2
    %v7050 = vadd.f32 %v7048, %v7049
    %v7051 = vrot.slane %v7050, 1
    %v7052 = vadd.f32 %v7050, %v7051
    %v7053 = vadd.f32 %v6673, %v6722
    %v7054 = vrot.slane %v7053, 4
    %v7055 = vadd.f32 %v7053, %v7054
    %v7056 = vrot.slane %v7055, 2
    %v7057 = vadd.f32 %v7055, %v7056
    %v7058 = vrot.slane %v7057, 1
    %v7059 = vadd.f32 %v7057, %v7058
    %v7060 = vadd.f32 %v6674, %v6723
    %v7061 = vrot.slane %v7060, 4
    %v7062 = vadd.f32 %v7060, %v7061
    %v7063 = vrot.slane %v7062, 2
    %v7064 = vadd.f32 %v7062, %v7063
    %v7065 = vrot.slane %v7064, 1
    %v7066 = vadd.f32 %v7064, %v7065
    %v7116 = vcombine.low %v6730, %v6737
    %v7117 = vcombine.low %v6744, %v6751
    %v7118 = vcombine.low %v6758, %v6765
    %v7119 = vcombine.low %v6772, %v6779
    %v7121 = vunpack.c.l.s4 1966171168
    %v7122 = vunpack.c.0.s8 %v7121
    %v7123 = vlaneseq
    %v7124 = vshrl.u32 %v7123, 7
    %v7125 = vsub.s32 %v7122, %v7124
    %v7126 = vrot.slane %v7116, %v7125
    %v7128 = vunpack.c.l.s4 1966171168
    %v7129 = vunpack.c.0.s8 %v7128
    %v7130 = vlaneseq
    %v7131 = vshrl.u32 %v7130, 7
    %v7132 = vsub.s32 %v7129, %v7131
    %v7133 = vrot.slane %v7117, %v7132
    %v7135 = vunpack.c.l.s4 1966171168
    %v7136 = vunpack.c.0.s8 %v7135
    %v7137 = vlaneseq
    %v7138 = vshrl.u32 %v7137, 7
    %v7139 = vsub.s32 %v7136, %v7138
    %v7140 = vrot.slane %v7118, %v7139
    %v7142 = vunpack.c.l.s4 1966171168
    %v7143 = vunpack.c.0.s8 %v7142
    %v7144 = vlaneseq
    %v7145 = vshrl.u32 %v7144, 7
    %v7146 = vsub.s32 %v7143, %v7145
    %v7147 = vrot.slane %v7119, %v7146
    %v7148 = vcombine.low %v7126, %v7133
    %v7149 = vcombine.low %v7140, %v7147
    %v7151 = vunpack.c.l.s4 1966171168
    %v7152 = vunpack.c.0.s8 %v7151
    %v7153 = vlaneseq
    %v7154 = vshrl.u32 %v7153, 7
    %v7155 = vsub.s32 %v7152, %v7154
    %v7156 = vrot.slane %v7148, %v7155
    %v7158 = vunpack.c.l.s4 1966171168
    %v7159 = vunpack.c.0.s8 %v7158
    %v7160 = vlaneseq
    %v7161 = vshrl.u32 %v7160, 7
    %v7162 = vsub.s32 %v7159, %v7161
    %v7163 = vrot.slane %v7149, %v7162
    %v7164 = vcombine.low %v7156, %v7163
    %v7165 = vcombine.low %v6786, %v6793
    %v7166 = vcombine.low %v6800, %v6807
    %v7167 = vcombine.low %v6814, %v6821
    %v7168 = vcombine.low %v6828, %v6835
    %v7170 = vunpack.c.l.s4 1966171168
    %v7171 = vunpack.c.0.s8 %v7170
    %v7172 = vlaneseq
    %v7173 = vshrl.u32 %v7172, 7
    %v7174 = vsub.s32 %v7171, %v7173
    %v7175 = vrot.slane %v7165, %v7174
    %v7177 = vunpack.c.l.s4 1966171168
    %v7178 = vunpack.c.0.s8 %v7177
    %v7179 = vlaneseq
    %v7180 = vshrl.u32 %v7179, 7
    %v7181 = vsub.s32 %v7178, %v7180
    %v7182 = vrot.slane %v7166, %v7181
    %v7184 = vunpack.c.l.s4 1966171168
    %v7185 = vunpack.c.0.s8 %v7184
    %v7186 = vlaneseq
    %v7187 = vshrl.u32 %v7186, 7
    %v7188 = vsub.s32 %v7185, %v7187
    %v7189 = vrot.slane %v7167, %v7188
    %v7191 = vunpack.c.l.s4 1966171168
    %v7192 = vunpack.c.0.s8 %v7191
    %v7193 = vlaneseq
    %v7194 = vshrl.u32 %v7193, 7
    %v7195 = vsub.s32 %v7192, %v7194
    %v7196 = vrot.slane %v7168, %v7195
    %v7197 = vcombine.low %v7175, %v7182
    %v7198 = vcombine.low %v7189, %v7196
    %v7200 = vunpack.c.l.s4 1966171168
    %v7201 = vunpack.c.0.s8 %v7200
    %v7202 = vlaneseq
    %v7203 = vshrl.u32 %v7202, 7
    %v7204 = vsub.s32 %v7201, %v7203
    %v7205 = vrot.slane %v7197, %v7204
    %v7207 = vunpack.c.l.s4 1966171168
    %v7208 = vunpack.c.0.s8 %v7207
    %v7209 = vlaneseq
    %v7210 = vshrl.u32 %v7209, 7
    %v7211 = vsub.s32 %v7208, %v7210
    %v7212 = vrot.slane %v7198, %v7211
    %v7213 = vcombine.low %v7205, %v7212
    %v7214 = vcombine.low %v6842, %v6849
    %v7215 = vcombine.low %v6856, %v6863
    %v7216 = vcombine.low %v6870, %v6877
    %v7217 = vcombine.low %v6884, %v6891
    %v7219 = vunpack.c.l.s4 1966171168
    %v7220 = vunpack.c.0.s8 %v7219
    %v7221 = vlaneseq
    %v7222 = vshrl.u32 %v7221, 7
    %v7223 = vsub.s32 %v7220, %v7222
    %v7224 = vrot.slane %v7214, %v7223
    %v7226 = vunpack.c.l.s4 1966171168
    %v7227 = vunpack.c.0.s8 %v7226
    %v7228 = vlaneseq
    %v7229 = vshrl.u32 %v7228, 7
    %v7230 = vsub.s32 %v7227, %v7229
    %v7231 = vrot.slane %v7215, %v7230
    %v7233 = vunpack.c.l.s4 1966171168
    %v7234 = vunpack.c.0.s8 %v7233
    %v7235 = vlaneseq
    %v7236 = vshrl.u32 %v7235, 7
    %v7237 = vsub.s32 %v7234, %v7236
    %v7238 = vrot.slane %v7216, %v7237
    %v7240 = vunpack.c.l.s4 1966171168
    %v7241 = vunpack.c.0.s8 %v7240
    %v7242 = vlaneseq
    %v7243 = vshrl.u32 %v7242, 7
    %v7244 = vsub.s32 %v7241, %v7243
    %v7245 = vrot.slane %v7217, %v7244
    %v7246 = vcombine.low %v7224, %v7231
    %v7247 = vcombine.low %v7238, %v7245
    %v7249 = vunpack.c.l.s4 1966171168
    %v7250 = vunpack.c.0.s8 %v7249
    %v7251 = vlaneseq
    %v7252 = vshrl.u32 %v7251, 7
    %v7253 = vsub.s32 %v7250, %v7252
    %v7254 = vrot.slane %v7246, %v7253
    %v7256 = vunpack.c.l.s4 1966171168
    %v7257 = vunpack.c.0.s8 %v7256
    %v7258 = vlaneseq
    %v7259 = vshrl.u32 %v7258, 7
    %v7260 = vsub.s32 %v7257, %v7259
    %v7261 = vrot.slane %v7247, %v7260
    %v7262 = vcombine.low %v7254, %v7261
    %v7263 = vcombine.low %v6898, %v6905
    %v7264 = vcombine.low %v6912, %v6919
    %v7265 = vcombine.low %v6926, %v6933
    %v7266 = vcombine.low %v6940, %v6947
    %v7268 = vunpack.c.l.s4 1966171168
    %v7269 = vunpack.c.0.s8 %v7268
    %v7270 = vlaneseq
    %v7271 = vshrl.u32 %v7270, 7
    %v7272 = vsub.s32 %v7269, %v7271
    %v7273 = vrot.slane %v7263, %v7272
    %v7275 = vunpack.c.l.s4 1966171168
    %v7276 = vunpack.c.0.s8 %v7275
    %v7277 = vlaneseq
    %v7278 = vshrl.u32 %v7277, 7
    %v7279 = vsub.s32 %v7276, %v7278
    %v7280 = vrot.slane %v7264, %v7279
    %v7282 = vunpack.c.l.s4 1966171168
    %v7283 = vunpack.c.0.s8 %v7282
    %v7284 = vlaneseq
    %v7285 = vshrl.u32 %v7284, 7
    %v7286 = vsub.s32 %v7283, %v7285
    %v7287 = vrot.slane %v7265, %v7286
    %v7289 = vunpack.c.l.s4 1966171168
    %v7290 = vunpack.c.0.s8 %v7289
    %v7291 = vlaneseq
    %v7292 = vshrl.u32 %v7291, 7
    %v7293 = vsub.s32 %v7290, %v7292
    %v7294 = vrot.slane %v7266, %v7293
    %v7295 = vcombine.low %v7273, %v7280
    %v7296 = vcombine.low %v7287, %v7294
    %v7298 = vunpack.c.l.s4 1966171168
    %v7299 = vunpack.c.0.s8 %v7298
    %v7300 = vlaneseq
    %v7301 = vshrl.u32 %v7300, 7
    %v7302 = vsub.s32 %v7299, %v7301
    %v7303 = vrot.slane %v7295, %v7302
    %v7305 = vunpack.c.l.s4 1966171168
    %v7306 = vunpack.c.0.s8 %v7305
    %v7307 = vlaneseq
    %v7308 = vshrl.u32 %v7307, 7
    %v7309 = vsub.s32 %v7306, %v7308
    %v7310 = vrot.slane %v7296, %v7309
    %v7311 = vcombine.low %v7303, %v7310
    %v7312 = vcombine.low %v6954, %v6961
    %v7313 = vcombine.low %v6968, %v6975
    %v7314 = vcombine.low %v6982, %v6989
    %v7315 = vcombine.low %v6996, %v7003
    %v7317 = vunpack.c.l.s4 1966171168
    %v7318 = vunpack.c.0.s8 %v7317
    %v7319 = vlaneseq
    %v7320 = vshrl.u32 %v7319, 7
    %v7321 = vsub.s32 %v7318, %v7320
    %v7322 = vrot.slane %v7312, %v7321
    %v7324 = vunpack.c.l.s4 1966171168
    %v7325 = vunpack.c.0.s8 %v7324
    %v7326 = vlaneseq
    %v7327 = vshrl.u32 %v7326, 7
    %v7328 = vsub.s32 %v7325, %v7327
    %v7329 = vrot.slane %v7313, %v7328
    %v7331 = vunpack.c.l.s4 1966171168
    %v7332 = vunpack.c.0.s8 %v7331
    %v7333 = vlaneseq
    %v7334 = vshrl.u32 %v7333, 7
    %v7335 = vsub.s32 %v7332, %v7334
    %v7336 = vrot.slane %v7314, %v7335
    %v7338 = vunpack.c.l.s4 1966171168
    %v7339 = vunpack.c.0.s8 %v7338
    %v7340 = vlaneseq
    %v7341 = vshrl.u32 %v7340, 7
    %v7342 = vsub.s32 %v7339, %v7341
    %v7343 = vrot.slane %v7315, %v7342
    %v7344 = vcombine.low %v7322, %v7329
    %v7345 = vcombine.low %v7336, %v7343
    %v7347 = vunpack.c.l.s4 1966171168
    %v7348 = vunpack.c.0.s8 %v7347
    %v7349 = vlaneseq
    %v7350 = vshrl.u32 %v7349, 7
    %v7351 = vsub.s32 %v7348, %v7350
    %v7352 = vrot.slane %v7344, %v7351
    %v7354 = vunpack.c.l.s4 1966171168
    %v7355 = vunpack.c.0.s8 %v7354
    %v7356 = vlaneseq
    %v7357 = vshrl.u32 %v7356, 7
    %v7358 = vsub.s32 %v7355, %v7357
    %v7359 = vrot.slane %v7345, %v7358
    %v7360 = vcombine.low %v7352, %v7359
    %v7361 = vcombine.low %v7010, %v7017
    %v7362 = vcombine.low %v7024, %v7031
    %v7363 = vcombine.low %v7038, %v7045
    %v7364 = vcombine.low %v7052, %v7059
    %v7366 = vunpack.c.l.s4 1966171168
    %v7367 = vunpack.c.0.s8 %v7366
    %v7368 = vlaneseq
    %v7369 = vshrl.u32 %v7368, 7
    %v7370 = vsub.s32 %v7367, %v7369
    %v7371 = vrot.slane %v7361, %v7370
    %v7373 = vunpack.c.l.s4 1966171168
    %v7374 = vunpack.c.0.s8 %v7373
    %v7375 = vlaneseq
    %v7376 = vshrl.u32 %v7375, 7
    %v7377 = vsub.s32 %v7374, %v7376
    %v7378 = vrot.slane %v7362, %v7377
    %v7380 = vunpack.c.l.s4 1966171168
    %v7381 = vunpack.c.0.s8 %v7380
    %v7382 = vlaneseq
    %v7383 = vshrl.u32 %v7382, 7
    %v7384 = vsub.s32 %v7381, %v7383
    %v7385 = vrot.slane %v7363, %v7384
    %v7387 = vunpack.c.l.s4 1966171168
    %v7388 = vunpack.c.0.s8 %v7387
    %v7389 = vlaneseq
    %v7390 = vshrl.u32 %v7389, 7
    %v7391 = vsub.s32 %v7388, %v7390
    %v7392 = vrot.slane %v7364, %v7391
    %v7393 = vcombine.low %v7371, %v7378
    %v7394 = vcombine.low %v7385, %v7392
    %v7396 = vunpack.c.l.s4 1966171168
    %v7397 = vunpack.c.0.s8 %v7396
    %v7398 = vlaneseq
    %v7399 = vshrl.u32 %v7398, 7
    %v7400 = vsub.s32 %v7397, %v7399
    %v7401 = vrot.slane %v7393, %v7400
    %v7403 = vunpack.c.l.s4 1966171168
    %v7404 = vunpack.c.0.s8 %v7403
    %v7405 = vlaneseq
    %v7406 = vshrl.u32 %v7405, 7
    %v7407 = vsub.s32 %v7404, %v7406
    %v7408 = vrot.slane %v7394, %v7407
    %v7409 = vcombine.low %v7401, %v7408
    %v7411 = vunpack.c.l.s4 1966171168
    %v7412 = vunpack.c.0.s8 %v7411
    %v7413 = vlaneseq
    %v7414 = vshrl.u32 %v7413, 7
    %v7415 = vsub.s32 %v7412, %v7414
    %v7416 = vrot.slane %v7066, %v7415
    %v7418 = vunpack.c.l.s4 1966171168
    %v7419 = vunpack.c.0.s8 %v7418
    %v7420 = vlaneseq
    %v7421 = vshrl.u32 %v7420, 7
    %v7422 = vsub.s32 %v7419, %v7421
    %v7423 = vrot.slane %v7416, %v7422
    %v7431 = vadd.f32 %v6619, %v7164
    %v7432 = vadd.f32 %v6620, %v7213
    %v7433 = vadd.f32 %v6621, %v7262
    %v7434 = vadd.f32 %v6622, %v7311
    %v7435 = vadd.f32 %v6623, %v7360
    %v7436 = vadd.f32 %v6624, %v7409
    %v7437 = vadd.f32 %v6625, %v7423
    %7438 = vst [vmem:[#allocation8] sm:$0xff] %v7431
    %7439 = vst [vmem:[#allocation8 + $0x8] sm:$0xff] %v7432
    %7440 = vst [vmem:[#allocation8 + $0x10] sm:$0xff] %v7433
    %7441 = vst [vmem:[#allocation8 + $0x18] sm:$0xff] %v7434
    %7442 = vst [vmem:[#allocation8 + $0x20] sm:$0xff] %v7435
    %7443 = vst [vmem:[#allocation8 + $0x28] sm:$0xff] %v7436
    %7444 = vst.msk [vmem:[#allocation8 + $0x30] sm:$0x1] %vm6617, %v7437
    // Predicated region
    $region22: #{tpu_custom_call.1} parent=1 // pred_check
      _
    $region23: #{tpu_custom_call.1} parent=1 // pred_check_branch
      %7446 = sbr.rel (0) target = $region25
    $region24: #{tpu_custom_call.1} parent=1 // pred_region
      %s7448 = ssub.s32 784, 784
      %7449 = vsyncadd [#allocation4], %s7448
      %s7451 = sshll.u32 [#allocation7], 4
      %s7452 = int_to_ptr.vmem [resolvable:$true] %s7451
      %7454 = dma.vmem_to_hbm [thread:$0]  %s7452, 784, %s2, [#allocation4]
    $region25: #{tpu_custom_call.1} parent=1 // pred_fallthru
      _
    // Predicated region
    $region26: #{tpu_custom_call.1} parent=1 // pred_check
      _
    $region27: #{tpu_custom_call.1} parent=1 // pred_check_branch
      %7456 = sbr.rel (0) target = $region29
    $region28: #{tpu_custom_call.1} parent=1 // pred_region
      %s7458 = ssub.s32 784, 784
      %7459 = vsyncadd [#allocation9], %s7458
      %s7461 = sshll.u32 [#allocation8], 4
      %s7462 = int_to_ptr.vmem [resolvable:$true] %s7461
      %7464 = dma.vmem_to_hbm [thread:$0]  %s7462, 784, %s3, [#allocation9]
    $region29: #{tpu_custom_call.1} parent=1 // pred_fallthru
      _
    // Predicated region
    $region30: #{tpu_custom_call.1} parent=1 // pred_check
      _
    $region31: #{tpu_custom_call.1} parent=1 // pred_check_branch
      %7466 = sbr.rel (0) target = $region33
    $region32: #{tpu_custom_call.1} parent=1 // pred_region
      %7467 = dma.done [#allocation4], 784
    $region33: #{tpu_custom_call.1} parent=1 // pred_fallthru
      _
    // Predicated region
    $region34: #{tpu_custom_call.1} parent=1 // pred_check
      _
    $region35: #{tpu_custom_call.1} parent=1 // pred_check_branch
      %7469 = sbr.rel (0) target = $region37
    $region36: #{tpu_custom_call.1} parent=1 // pred_region
      %7470 = dma.done [#allocation9], 784
    $region37: #{tpu_custom_call.1} parent=1 // pred_fallthru
      _
    %7471 = vsyncpa [#allocation3], 1
    %7472 = vsyncpa [#allocation6], 1
    %7473 = vsyncpa [#allocation4], 1
    %7474 = vsyncpa [#allocation9], 1

</llo_original>
